<compile_context>
chip_gen: v6e
topology: v6e:2x2x1
jax: 0.10.0
libtpu: 0.0.40
codegen_flags: <defaults>
</compile_context>

<pallas_src>
import jax
import jax.numpy as jnp
from jax.experimental import pallas as pl
from jax.experimental.pallas import tpu as pltpu


_HEAD_LANES = 128  # lane-dense width for the fused (mu | log_sigma2) head


# ----------------------------- Pallas kernel -----------------------------

def encoder_kernel(x_ref,
                   w1_ref, b1_ref,
                   w2_ref, b2_ref,
                   w3_ref, b3_ref,
                   wh_ref, bh_ref,
                   out_ref):
    # x is already bf16 (cast in the wrapper); every matmul runs bf16 x bf16
    # on the MXU with f32 accumulation.
    # Linear(48 -> 500) + ReLU
    h = jnp.dot(x_ref[...], w1_ref[...], preferred_element_type=jnp.float32)
    h = jnp.maximum(h + b1_ref[...], 0.0)
    # Linear(500 -> 500) + ReLU
    h = jnp.dot(h.astype(jnp.bfloat16), w2_ref[...],
                preferred_element_type=jnp.float32)
    h = jnp.maximum(h + b2_ref[...], 0.0)
    # Linear(500 -> 2000) + ReLU
    h = jnp.dot(h.astype(jnp.bfloat16), w3_ref[...],
                preferred_element_type=jnp.float32)
    h = jnp.maximum(h + b3_ref[...], 0.0)
    # Fused heads: Linear(2000 -> 128) = [mu | log_sigma2 | zero-pad]
    out_ref[...] = (jnp.dot(h.astype(jnp.bfloat16), wh_ref[...],
                            preferred_element_type=jnp.float32)
                    + bh_ref[...])


# ----------------------------- Helpers -----------------------------

def _cdiv(a, b):
    return (a + b - 1) // b


def _round_up(n, m):
    return _cdiv(n, m) * m


def _pad_to(a, shape):
    pads = [(0, t - s) for s, t in zip(a.shape, shape)]
    if any(p[1] for p in pads):
        return jnp.pad(a, pads)
    return a


# ----------------------------- Wrapper -----------------------------

def encoder_forward(x, params, *, batch_tile=256, min_grid_steps=1,
                    pad_inner_dims=None, vmem_limit_bytes=32 << 20):
    """Fused Encoder forward pass via one pallas_call.

    x: (B, input_dim) float32
    params: dict of pre-transposed f32 weights (in, out) and biases (1, out).
    Returns (mu, log_sigma2), each (B, hid_dim) float32.

    Tuning notes (perf review):
      * v6e large-batch:  batch_tile=1024, vmem_limit_bytes=64<<20.
      * v7x:              batch_tile<=512, vmem_limit_bytes<=48<<20,
                          min_grid_steps=2 so both TensorCores are used.
    """
    B, input_dim = x.shape
    hid_dim = params["wmu"].shape[1]
    assert 2 * hid_dim <= _HEAD_LANES

    # (8,128)-clean inner dims only pay off in the MXU-bound (large-batch)
    # regime; at tiny B the kernel is a pure weight stream.
    if pad_inner_dims is None:
        pad_inner_dims = B >= 512

    d1 = params["w1"].shape[1]
    d2 = params["w2"].shape[1]
    d3 = params["w3"].shape[1]
    if pad_inner_dims:
        d1p, d2p, d3p = (_round_up(d1, 128), _round_up(d2, 128),
                         _round_up(d3, 128))
    else:
        d1p, d2p, d3p = d1, d2, d3

    # bf16 weight streaming (halves HBM weight traffic); biases stay f32.
    w1 = _pad_to(params["w1"], (input_dim, d1p)).astype(jnp.bfloat16)
    b1 = _pad_to(params["b1"], (1, d1p))
    w2 = _pad_to(params["w2"], (d1p, d2p)).astype(jnp.bfloat16)
    b2 = _pad_to(params["b2"], (1, d2p))
    w3 = _pad_to(params["w3"], (d2p, d3p)).astype(jnp.bfloat16)
    b3 = _pad_to(params["b3"], (1, d3p))

    # Fused mu/log_sigma2 head, zero-padded to a lane-dense 128-wide output.
    wh = jnp.concatenate([params["wmu"], params["wls"]], axis=1)  # (d3, 2*hid)
    bh = jnp.concatenate([params["bmu"], params["bls"]], axis=1)  # (1, 2*hid)
    wh = _pad_to(wh, (d3p, _HEAD_LANES)).astype(jnp.bfloat16)
    bh = _pad_to(bh, (1, _HEAD_LANES))

    # Balanced batch tiles (bounded padding); weights stay VMEM-resident.
    n_tiles = max(_cdiv(B, batch_tile), min_grid_steps)
    tb = _round_up(_cdiv(B, n_tiles), 8)
    n_tiles = max(_cdiv(B, tb), min_grid_steps)
    b_pad = n_tiles * tb

    x = x.astype(jnp.bfloat16)
    if b_pad != B:
        x = jnp.pad(x, ((0, b_pad - B), (0, 0)))

    def const_spec(a):
        # Grid-invariant operand: constant index_map + single buffer
        # (Buffered(1)) -- it is never re-fetched across grid steps.
        return pl.BlockSpec(a.shape, lambda i: (0,) * a.ndim,
                            memory_space=pltpu.MemorySpace.VMEM,
                            pipeline_mode=pl.Buffered(1))

    in_specs = [
        pl.BlockSpec((tb, input_dim), lambda i: (i, 0),
                     memory_space=pltpu.MemorySpace.VMEM),   # x: batch-tiled
        const_spec(w1), const_spec(b1),
        const_spec(w2), const_spec(b2),
        const_spec(w3), const_spec(b3),
        const_spec(wh), const_spec(bh),
    ]
    out_spec = pl.BlockSpec((tb, _HEAD_LANES), lambda i: (i, 0),
                            memory_space=pltpu.MemorySpace.VMEM)

    out = pl.pallas_call(
        encoder_kernel,
        out_shape=jax.ShapeDtypeStruct((b_pad, _HEAD_LANES), jnp.float32),
        grid=(n_tiles,),
        in_specs=in_specs,
        out_specs=out_spec,
        compiler_params=pltpu.CompilerParams(
            dimension_semantics=("parallel",),
            vmem_limit_bytes=vmem_limit_bytes,
        ),
    )(x, w1, b1, w2, b2, w3, b3, wh, bh)

    # Slice off both the batch padding and the head lane padding.
    mu = out[:B, :hid_dim]
    log_sigma2 = out[:B, hid_dim:2 * hid_dim]
    return mu, log_sigma2

    # TODO(synk): int8 (v5e/v6e) / fp8-e4m3 (v7x) weight compression for
    # w2/w3 would further halve the weight stream at tiny batch; omitted here
    # pending end-to-end accuracy validation of the VaDE loss.


# ----------------------------- Parameter init -----------------------------

def init_params(key, input_dim=48, inter_dims=(500, 500, 2000), hid_dim=10):
    """Deterministic synthetic parameters.

    Mirrors PyTorch nn.Linear default init (uniform(-1/sqrt(in), 1/sqrt(in))),
    but stores each weight already transposed to (in, out) for the kernel.
    """
    dims = [(input_dim, inter_dims[0]),
            (inter_dims[0], inter_dims[1]),
            (inter_dims[1], inter_dims[2]),
            (inter_dims[2], hid_dim),   # mu head
            (inter_dims[2], hid_dim)]   # log_sigma2 head
    names = ["1", "2", "3", "mu", "ls"]
    params = {}
    for (d_in, d_out), name in zip(dims, names):
        key, kw, kb = jax.random.split(key, 3)
        bound = 1.0 / jnp.sqrt(jnp.float32(d_in))
        params[f"w{name}"] = jax.random.uniform(
            kw, (d_in, d_out), jnp.float32, -bound, bound)
        params[f"b{name}"] = jax.random.uniform(
            kb, (1, d_out), jnp.float32, -bound, bound)
    return params


# ----------------------------- Reference (pure JAX, f32) -----------------------------

def encoder_reference(x, p):
    h = jnp.maximum(x @ p["w1"] + p["b1"], 0.0)
    h = jnp.maximum(h @ p["w2"] + p["b2"], 0.0)
    h = jnp.maximum(h @ p["w3"] + p["b3"], 0.0)
    mu = h @ p["wmu"] + p["bmu"]
    ls = h @ p["wls"] + p["bls"]
    return mu, ls


# ----------------------------- Main -----------------------------

if __name__ == "__main__":
    key = jax.random.PRNGKey(0)
    k_x, k_p = jax.random.split(key)

    B, INPUT_DIM, HID_DIM = 8, 48, 10
    x = jax.random.normal(k_x, (B, INPUT_DIM), dtype=jnp.float32)
    params = init_params(k_p, input_dim=INPUT_DIM, hid_dim=HID_DIM)

    mu, log_sigma2 = encoder_forward(x, params)
    mu = jax.block_until_ready(mu)
    log_sigma2 = jax.block_until_ready(log_sigma2)

    mu_ref, ls_ref = encoder_reference(x, params)
    assert mu.shape == (B, HID_DIM) and log_sigma2.shape == (B, HID_DIM)
    # bf16 weight/activation streaming -> loosened tolerance vs the f32 ref.
    assert jnp.allclose(mu, mu_ref, atol=1e-2, rtol=1e-2)
    assert jnp.allclose(log_sigma2, ls_ref, atol=1e-2, rtol=1e-2)

    print("KERNEL_OK")
</pallas_src>

<mosaic_0001>
module attributes {stable_mosaic.version = 11 : i64} {
  func.func @encoder_kernel(%arg0: i32, %arg1: memref<8x48xbf16, #tpu.memory_space<vmem>>, %arg2: memref<48x500xbf16, #tpu.memory_space<vmem>>, %arg3: memref<1x500xf32, #tpu.memory_space<vmem>>, %arg4: memref<500x500xbf16, #tpu.memory_space<vmem>>, %arg5: memref<1x500xf32, #tpu.memory_space<vmem>>, %arg6: memref<500x2000xbf16, #tpu.memory_space<vmem>>, %arg7: memref<1x2000xf32, #tpu.memory_space<vmem>>, %arg8: memref<2000x128xbf16, #tpu.memory_space<vmem>>, %arg9: memref<1x128xf32, #tpu.memory_space<vmem>>, %arg10: memref<8x128xf32, #tpu.memory_space<vmem>>) attributes {dimension_semantics = [#tpu.dimension_semantics<parallel>], iteration_bounds = array<i64: 1>, scalar_prefetch = 0 : i64, scratch_operands = 0 : i64, tpu.core_type = #tpu.core_type<tc>, window_params = [{transform_indices = @transform_0, window_bounds = array<i64: 8, 48>}, {pipeline_mode = #tpu.pipeline_mode<synchronous>, transform_indices = @transform_1, window_bounds = array<i64: 48, 500>}, {pipeline_mode = #tpu.pipeline_mode<synchronous>, transform_indices = @transform_2, window_bounds = array<i64: 1, 500>}, {pipeline_mode = #tpu.pipeline_mode<synchronous>, transform_indices = @transform_3, window_bounds = array<i64: 500, 500>}, {pipeline_mode = #tpu.pipeline_mode<synchronous>, transform_indices = @transform_4, window_bounds = array<i64: 1, 500>}, {pipeline_mode = #tpu.pipeline_mode<synchronous>, transform_indices = @transform_5, window_bounds = array<i64: 500, 2000>}, {pipeline_mode = #tpu.pipeline_mode<synchronous>, transform_indices = @transform_6, window_bounds = array<i64: 1, 2000>}, {pipeline_mode = #tpu.pipeline_mode<synchronous>, transform_indices = @transform_7, window_bounds = array<i64: 2000, 128>}, {pipeline_mode = #tpu.pipeline_mode<synchronous>, transform_indices = @transform_8, window_bounds = array<i64: 1, 128>}, {transform_indices = @transform_9, window_bounds = array<i64: 8, 128>}]} {
    %c0 = arith.constant 0 : index
    %c0_0 = arith.constant 0 : index
    %0 = vector.load %arg1[%c0, %c0_0] : memref<8x48xbf16, #tpu.memory_space<vmem>>, vector<8x48xbf16>
    %c0_1 = arith.constant 0 : index
    %c0_2 = arith.constant 0 : index
    %1 = vector.load %arg2[%c0_1, %c0_2] : memref<48x500xbf16, #tpu.memory_space<vmem>>, vector<48x500xbf16>
    %cst = arith.constant dense<0.000000e+00> : vector<8x500xf32>
    %2 = tpu.matmul %0, %1, %cst {dimension_numbers = #tpu.dot_dimension_numbers<[1], [0], [0], [1], [0, 0, 1, 1], [], []>} : vector<8x48xbf16>, vector<48x500xbf16>, vector<8x500xf32> -> vector<8x500xf32>
    %c0_3 = arith.constant 0 : index
    %c0_4 = arith.constant 0 : index
    %3 = vector.load %arg3[%c0_3, %c0_4] : memref<1x500xf32, #tpu.memory_space<vmem>>, vector<1x500xf32>
    %4 = vector.broadcast %3 : vector<1x500xf32> to vector<8x500xf32>
    %5 = arith.addf %2, %4 : vector<8x500xf32>
    %cst_5 = arith.constant 0.000000e+00 : f32
    %6 = vector.broadcast %cst_5 : f32 to vector<8x500xf32>
    %7 = arith.maximumf %5, %6 : vector<8x500xf32>
    %8 = arith.truncf %7 : vector<8x500xf32> to vector<8x500xbf16>
    %c0_6 = arith.constant 0 : index
    %c0_7 = arith.constant 0 : index
    %9 = vector.load %arg4[%c0_6, %c0_7] : memref<500x500xbf16, #tpu.memory_space<vmem>>, vector<500x500xbf16>
    %cst_8 = arith.constant dense<0.000000e+00> : vector<8x500xf32>
    %10 = tpu.matmul %8, %9, %cst_8 {dimension_numbers = #tpu.dot_dimension_numbers<[1], [0], [0], [1], [0, 0, 1, 1], [], []>} : vector<8x500xbf16>, vector<500x500xbf16>, vector<8x500xf32> -> vector<8x500xf32>
    %c0_9 = arith.constant 0 : index
    %c0_10 = arith.constant 0 : index
    %11 = vector.load %arg5[%c0_9, %c0_10] : memref<1x500xf32, #tpu.memory_space<vmem>>, vector<1x500xf32>
    %12 = vector.broadcast %11 : vector<1x500xf32> to vector<8x500xf32>
    %13 = arith.addf %10, %12 : vector<8x500xf32>
    %cst_11 = arith.constant 0.000000e+00 : f32
    %14 = vector.broadcast %cst_11 : f32 to vector<8x500xf32>
    %15 = arith.maximumf %13, %14 : vector<8x500xf32>
    %16 = arith.truncf %15 : vector<8x500xf32> to vector<8x500xbf16>
    %c0_12 = arith.constant 0 : index
    %c0_13 = arith.constant 0 : index
    %17 = vector.load %arg6[%c0_12, %c0_13] : memref<500x2000xbf16, #tpu.memory_space<vmem>>, vector<500x2000xbf16>
    %cst_14 = arith.constant dense<0.000000e+00> : vector<8x2000xf32>
    %18 = tpu.matmul %16, %17, %cst_14 {dimension_numbers = #tpu.dot_dimension_numbers<[1], [0], [0], [1], [0, 0, 1, 1], [], []>} : vector<8x500xbf16>, vector<500x2000xbf16>, vector<8x2000xf32> -> vector<8x2000xf32>
    %c0_15 = arith.constant 0 : index
    %c0_16 = arith.constant 0 : index
    %19 = vector.load %arg7[%c0_15, %c0_16] : memref<1x2000xf32, #tpu.memory_space<vmem>>, vector<1x2000xf32>
    %20 = vector.broadcast %19 : vector<1x2000xf32> to vector<8x2000xf32>
    %21 = arith.addf %18, %20 : vector<8x2000xf32>
    %cst_17 = arith.constant 0.000000e+00 : f32
    %22 = vector.broadcast %cst_17 : f32 to vector<8x2000xf32>
    %23 = arith.maximumf %21, %22 : vector<8x2000xf32>
    %24 = arith.truncf %23 : vector<8x2000xf32> to vector<8x2000xbf16>
    %c0_18 = arith.constant 0 : index
    %c0_19 = arith.constant 0 : index
    %25 = vector.load %arg8[%c0_18, %c0_19] : memref<2000x128xbf16, #tpu.memory_space<vmem>>, vector<2000x128xbf16>
    %cst_20 = arith.constant dense<0.000000e+00> : vector<8x128xf32>
    %26 = tpu.matmul %24, %25, %cst_20 {dimension_numbers = #tpu.dot_dimension_numbers<[1], [0], [0], [1], [0, 0, 1, 1], [], []>} : vector<8x2000xbf16>, vector<2000x128xbf16>, vector<8x128xf32> -> vector<8x128xf32>
    %c0_21 = arith.constant 0 : index
    %c0_22 = arith.constant 0 : index
    %27 = vector.load %arg9[%c0_21, %c0_22] : memref<1x128xf32, #tpu.memory_space<vmem>>, vector<1x128xf32>
    %28 = vector.broadcast %27 : vector<1x128xf32> to vector<8x128xf32>
    %29 = arith.addf %26, %28 : vector<8x128xf32>
    %c0_23 = arith.constant 0 : index
    %c0_24 = arith.constant 0 : index
    %30 = vector.load %arg10[%c0_23, %c0_24] : memref<8x128xf32, #tpu.memory_space<vmem>>, vector<8x128xf32>
    tpu.vector_store %arg10[%c0_23, %c0_24], %29 {strides = array<i32>} : memref<8x128xf32, #tpu.memory_space<vmem>>, vector<8x128xf32>,
    return
  }
  func.func @transform_0(%arg0: i32) -> (i32, i32) {
    %c0_i32 = arith.constant 0 : i32
    %c0_i32_0 = arith.constant 0 : i32
    return %arg0, %c0_i32 : i32, i32
  }
  func.func @transform_1(%arg0: i32) -> (i32, i32) {
    %c0_i32 = arith.constant 0 : i32
    %c0_i32_0 = arith.constant 0 : i32
    %c0_i32_1 = arith.constant 0 : i32
    return %c0_i32, %c0_i32_0 : i32, i32
  }
  func.func @transform_2(%arg0: i32) -> (i32, i32) {
    %c0_i32 = arith.constant 0 : i32
    %c0_i32_0 = arith.constant 0 : i32
    %c0_i32_1 = arith.constant 0 : i32
    return %c0_i32, %c0_i32_0 : i32, i32
  }
  func.func @transform_3(%arg0: i32) -> (i32, i32) {
    %c0_i32 = arith.constant 0 : i32
    %c0_i32_0 = arith.constant 0 : i32
    %c0_i32_1 = arith.constant 0 : i32
    return %c0_i32, %c0_i32_0 : i32, i32
  }
  func.func @transform_4(%arg0: i32) -> (i32, i32) {
    %c0_i32 = arith.constant 0 : i32
    %c0_i32_0 = arith.constant 0 : i32
    %c0_i32_1 = arith.constant 0 : i32
    return %c0_i32, %c0_i32_0 : i32, i32
  }
  func.func @transform_5(%arg0: i32) -> (i32, i32) {
    %c0_i32 = arith.constant 0 : i32
    %c0_i32_0 = arith.constant 0 : i32
    %c0_i32_1 = arith.constant 0 : i32
    return %c0_i32, %c0_i32_0 : i32, i32
  }
  func.func @transform_6(%arg0: i32) -> (i32, i32) {
    %c0_i32 = arith.constant 0 : i32
    %c0_i32_0 = arith.constant 0 : i32
    %c0_i32_1 = arith.constant 0 : i32
    return %c0_i32, %c0_i32_0 : i32, i32
  }
  func.func @transform_7(%arg0: i32) -> (i32, i32) {
    %c0_i32 = arith.constant 0 : i32
    %c0_i32_0 = arith.constant 0 : i32
    %c0_i32_1 = arith.constant 0 : i32
    return %c0_i32, %c0_i32_0 : i32, i32
  }
  func.func @transform_8(%arg0: i32) -> (i32, i32) {
    %c0_i32 = arith.constant 0 : i32
    %c0_i32_0 = arith.constant 0 : i32
    %c0_i32_1 = arith.constant 0 : i32
    return %c0_i32, %c0_i32_0 : i32, i32
  }
  func.func @transform_9(%arg0: i32) -> (i32, i32) {
    %c0_i32 = arith.constant 0 : i32
    %c0_i32_0 = arith.constant 0 : i32
    return %arg0, %c0_i32 : i32, i32
  }
}

</mosaic_0001>

<llo_original>
// kernel: tpu_custom_call.1
$region0: #{tpu_custom_call.1}
  #allocation0 [shape = 'u32[]', space=smem, size = 0x4, offset = 0x4, fixed_abs, tag = 'smem constant byte address 0x4 - core index']
  #allocation1 [shape = 'u32[144,128]{1,0:T(1,128)}', space=vmem, size = 0x12000, scoped, tag = 'internal scratch']
  %s0 = inlined_call_operand.vmem [shape: bf16[8,48], index: 0, kind: input, shape index: {}]
  %s1 = inlined_call_operand.vmem [shape: bf16[48,500], index: 1, kind: input, shape index: {}]
  %s2 = inlined_call_operand.vmem [shape: f32[1,500], index: 2, kind: input, shape index: {}]
  %s3 = inlined_call_operand.vmem [shape: bf16[500,500], index: 3, kind: input, shape index: {}]
  %s4 = inlined_call_operand.vmem [shape: f32[1,500], index: 4, kind: input, shape index: {}]
  %s5 = inlined_call_operand.vmem [shape: bf16[500,2000], index: 5, kind: input, shape index: {}]
  %s6 = inlined_call_operand.vmem [shape: f32[1,2000], index: 6, kind: input, shape index: {}]
  %s7 = inlined_call_operand.vmem [shape: bf16[2000,128], index: 7, kind: input, shape index: {}]
  %s8 = inlined_call_operand.vmem [shape: f32[1,128], index: 8, kind: input, shape index: {}]
  %s9 = inlined_call_operand.hbm [shape: f32[8,128], index: 9, kind: output, shape index: {}]
  %s10 = sld [smem:[#allocation0]]
  $region46: #{tpu_custom_call.1} parent=0
    _
  %s12 = ssub.s32 1, %s10
  %s13 = scalar_select 0, %s12, %s10
  $region1: #{tpu_custom_call.1} parent=0
    #allocation2 [shape = 'u8[4096]{0}', space=vmem, size = 0x1000, scoped, tag = 'output window, operand 0, single buffered']
    #allocation3 [shape = 's32[1]{0}', space=sflag, size = 0x4, scoped, tag = 'scoped memory for tpu_custom_call.1']
    %14 = vsyncpa [#allocation3], 0
    // Predicated region
    $region2: #{tpu_custom_call.1} parent=1 // pred_check
      _
    $region3: #{tpu_custom_call.1} parent=1 // pred_check_branch
      %16 = sbr.rel (0) target = $region5
    $region4: #{tpu_custom_call.1} parent=1 // pred_region
      _
    $region5: #{tpu_custom_call.1} parent=1 // pred_fallthru
      _
    // Predicated region
    $region6: #{tpu_custom_call.1} parent=1 // pred_check
      _
    $region7: #{tpu_custom_call.1} parent=1 // pred_check_branch
      %18 = sbr.rel (0) target = $region9
    $region8: #{tpu_custom_call.1} parent=1 // pred_region
      _
    $region9: #{tpu_custom_call.1} parent=1 // pred_fallthru
      _
    // Predicated region
    $region10: #{tpu_custom_call.1} parent=1 // pred_check
      _
    $region11: #{tpu_custom_call.1} parent=1 // pred_check_branch
      %20 = sbr.rel (0) target = $region13
    $region12: #{tpu_custom_call.1} parent=1 // pred_region
      _
    $region13: #{tpu_custom_call.1} parent=1 // pred_fallthru
      _
    // Predicated region
    $region14: #{tpu_custom_call.1} parent=1 // pred_check
      _
    $region15: #{tpu_custom_call.1} parent=1 // pred_check_branch
      %22 = sbr.rel (0) target = $region17
    $region16: #{tpu_custom_call.1} parent=1 // pred_region
      _
    $region17: #{tpu_custom_call.1} parent=1 // pred_fallthru
      _
    // Predicated region
    $region18: #{tpu_custom_call.1} parent=1 // pred_check
      _
    $region19: #{tpu_custom_call.1} parent=1 // pred_check_branch
      %24 = sbr.rel (0) target = $region21
    $region20: #{tpu_custom_call.1} parent=1 // pred_region
      _
    $region21: #{tpu_custom_call.1} parent=1 // pred_fallthru
      _
    // Predicated region
    $region22: #{tpu_custom_call.1} parent=1 // pred_check
      _
    $region23: #{tpu_custom_call.1} parent=1 // pred_check_branch
      %26 = sbr.rel (0) target = $region25
    $region24: #{tpu_custom_call.1} parent=1 // pred_region
      _
    $region25: #{tpu_custom_call.1} parent=1 // pred_fallthru
      _
    // Predicated region
    $region26: #{tpu_custom_call.1} parent=1 // pred_check
      _
    $region27: #{tpu_custom_call.1} parent=1 // pred_check_branch
      %28 = sbr.rel (0) target = $region29
    $region28: #{tpu_custom_call.1} parent=1 // pred_region
      _
    $region29: #{tpu_custom_call.1} parent=1 // pred_fallthru
      _
    // Predicated region
    $region30: #{tpu_custom_call.1} parent=1 // pred_check
      _
    $region31: #{tpu_custom_call.1} parent=1 // pred_check_branch
      %30 = sbr.rel (0) target = $region33
    $region32: #{tpu_custom_call.1} parent=1 // pred_region
      _
    $region33: #{tpu_custom_call.1} parent=1 // pred_fallthru
      _
    // Predicated region
    $region34: #{tpu_custom_call.1} parent=1 // pred_check
      _
    $region35: #{tpu_custom_call.1} parent=1 // pred_check_branch
      %32 = sbr.rel (0) target = $region37
    $region36: #{tpu_custom_call.1} parent=1 // pred_region
      _
    $region37: #{tpu_custom_call.1} parent=1 // pred_fallthru
      _
    %v34 = vld [vmem:[%s0] sm:$0xf]
    %v35 = vld [vmem:[%s1] sm:$0xff]
    %v36 = vld [vmem:[%s1 + $0x8] sm:$0xff]
    %v37 = vld [vmem:[%s1 + $0x10] sm:$0xff]
    %v38 = vld [vmem:[%s1 + $0x18] sm:$0xff]
    %v39 = vld [vmem:[%s1 + $0x20] sm:$0xff]
    %v40 = vld [vmem:[%s1 + $0x28] sm:$0xff]
    %v41 = vld [vmem:[%s1 + $0x30] sm:$0xff]
    %v42 = vld [vmem:[%s1 + $0x38] sm:$0xff]
    %v43 = vld [vmem:[%s1 + $0x40] sm:$0xff]
    %v44 = vld [vmem:[%s1 + $0x48] sm:$0xff]
    %v45 = vld [vmem:[%s1 + $0x50] sm:$0xff]
    %v46 = vld [vmem:[%s1 + $0x58] sm:$0xff]
    %v47 = vld [vmem:[%s2] sm:$0xf]
    %v49 = vlaneseq
    %v50 = vshrl.u32 %v49, 7
    %v51 = vsub.s32 0, %v50
    %v52 = vrot.slane %v47, %v51
    %v53 = vlaneseq
    %v54 = vshrl.u32 %v53, 7
    %v55 = vsub.s32 1, %v54
    %v56 = vrot.slane %v47, %v55
    %v57 = vlaneseq
    %v58 = vshrl.u32 %v57, 7
    %v59 = vsub.s32 2, %v58
    %v60 = vrot.slane %v47, %v59
    %v61 = vlaneseq
    %v62 = vshrl.u32 %v61, 7
    %v63 = vsub.s32 3, %v62
    %v64 = vrot.slane %v47, %v63
    %v81 = vunpack.c.l.b16 %v35
    %v82 = vunpack.c.h.b16 %v35
    %v83 = vunpack.c.l.b16 %v36
    %v84 = vunpack.c.h.b16 %v36
    %v85 = vunpack.c.l.b16 %v37
    %v86 = vunpack.c.h.b16 %v37
    %v87 = vunpack.c.l.b16 %v38
    %v88 = vunpack.c.h.b16 %v38
    %v89 = vunpack.c.l.b16 %v39
    %v90 = vunpack.c.h.b16 %v39
    %v91 = vunpack.c.l.b16 %v40
    %v92 = vunpack.c.h.b16 %v40
    %v93 = vunpack.c.l.b16 %v41
    %v94 = vunpack.c.h.b16 %v41
    %v95 = vunpack.c.l.b16 %v42
    %v96 = vunpack.c.h.b16 %v42
    %v97 = vunpack.c.l.b16 %v43
    %v98 = vunpack.c.h.b16 %v43
    %v99 = vunpack.c.l.b16 %v44
    %v100 = vunpack.c.h.b16 %v44
    %v101 = vunpack.c.l.b16 %v45
    %v102 = vunpack.c.h.b16 %v45
    %v103 = vunpack.c.l.b16 %v46
    %v104 = vunpack.c.h.b16 %v46
    %v105 = vpack.c.b16 %v85, %v81
    %v106 = vpack.c.b16 %v86, %v82
    %v107 = vpack.c.b16 %v87, %v83
    %v108 = vpack.c.b16 %v88, %v84
    %v109 = vpack.c.b16 %v93, %v89
    %v110 = vpack.c.b16 %v94, %v90
    %v111 = vpack.c.b16 %v95, %v91
    %v112 = vpack.c.b16 %v96, %v92
    %v113 = vpack.c.b16 %v101, %v97
    %v114 = vpack.c.b16 %v102, %v98
    %v115 = vpack.c.b16 %v103, %v99
    %v116 = vpack.c.b16 %v104, %v100
    %vm129 = vcmask 392192
    %v131 = vsel %vm129, %v34, 0
    %133 = vmatprep.subr.bf16.mxu0 0
    %134 = vmatpush1.bf16.msra.mxu0 0
    %135 = vmatprep.subr.bf16.mxu0 0
    %136 = vmatpush1.bf16.msra.mxu0 0
    %137 = vmatprep.subr.bf16.mxu0 0
    %138 = vmatpush1.bf16.msra.mxu0 0
    %139 = vmatprep.subr.bf16.mxu0 0
    %140 = vmatpush1.bf16.msra.mxu0 0
    %141 = vmatprep.subr.bf16.mxu0 0
    %142 = vmatpush1.bf16.msra.mxu0 0
    %143 = vmatprep.subr.bf16.mxu0 %v114
    %144 = vmatpush1.bf16.msra.mxu0 %v113
    %145 = vmatprep.subr.bf16.mxu0 %v110
    %146 = vmatpush1.bf16.msra.mxu0 %v109
    %147 = vmatprep.subr.bf16.mxu0 %v106
    %148 = vmatpush1.bf16.msra.mxu0 %v105
    %149 = vmatprep.subr.bf16.mxu0 0
    %150 = vmatpush2.bf16.msra.mxu0 0
    %151 = vmatprep.subr.bf16.mxu0 0
    %152 = vmatpush2.bf16.msra.mxu0 0
    %153 = vmatprep.subr.bf16.mxu0 0
    %154 = vmatpush2.bf16.msra.mxu0 0
    %155 = vmatprep.subr.bf16.mxu0 0
    %156 = vmatpush2.bf16.msra.mxu0 0
    %157 = vmatprep.subr.bf16.mxu0 0
    %158 = vmatpush2.bf16.msra.mxu0 0
    %159 = vmatprep.subr.bf16.mxu0 0
    %160 = vmatpush2.bf16.msra.mxu0 0
    %161 = vmatprep.subr.bf16.mxu0 0
    %162 = vmatpush2.bf16.msra.mxu0 0
    %163 = vmatprep.subr.bf16.mxu0 0
    %164 = vmatpush2.bf16.msra.mxu0 0
    %165 = vmatprep.mubr.bf16.mxu0 0
    %166 = vmatmul.mubr.bf16.gmra.mxu0 %v131
    %v167 = vpop.f32.mrf.mxu0
    %v168 = vadd.f32 %v52, %v167
    %v169 = vpop.f32.mrf.mxu0
    %v170 = vadd.f32 %v56, %v169
    %v171 = vpop.f32.mrf.mxu0
    %v172 = vpop.f32.mrf.mxu0
    %173 = vdwg.mxu0
    %174 = vmatprep.subr.bf16.mxu0 0
    %175 = vmatpush1.bf16.msra.mxu0 0
    %176 = vmatprep.subr.bf16.mxu0 0
    %177 = vmatpush1.bf16.msra.mxu0 0
    %178 = vmatprep.subr.bf16.mxu0 0
    %179 = vmatpush1.bf16.msra.mxu0 0
    %180 = vmatprep.subr.bf16.mxu0 0
    %181 = vmatpush1.bf16.msra.mxu0 0
    %182 = vmatprep.subr.bf16.mxu0 0
    %183 = vmatpush1.bf16.msra.mxu0 0
    %184 = vmatprep.subr.bf16.mxu0 %v116
    %185 = vmatpush1.bf16.msra.mxu0 %v115
    %186 = vmatprep.subr.bf16.mxu0 %v112
    %187 = vmatpush1.bf16.msra.mxu0 %v111
    %188 = vmatprep.subr.bf16.mxu0 %v108
    %189 = vmatpush1.bf16.msra.mxu0 %v107
    %190 = vmatprep.subr.bf16.mxu0 0
    %191 = vmatpush2.bf16.msra.mxu0 0
    %192 = vmatprep.subr.bf16.mxu0 0
    %193 = vmatpush2.bf16.msra.mxu0 0
    %194 = vmatprep.subr.bf16.mxu0 0
    %195 = vmatpush2.bf16.msra.mxu0 0
    %196 = vmatprep.subr.bf16.mxu0 0
    %197 = vmatpush2.bf16.msra.mxu0 0
    %198 = vmatprep.subr.bf16.mxu0 0
    %199 = vmatpush2.bf16.msra.mxu0 0
    %200 = vmatprep.subr.bf16.mxu0 0
    %201 = vmatpush2.bf16.msra.mxu0 0
    %202 = vmatprep.subr.bf16.mxu0 0
    %203 = vmatpush2.bf16.msra.mxu0 0
    %204 = vmatprep.subr.bf16.mxu0 0
    %205 = vmatpush2.bf16.msra.mxu0 0
    %206 = vmatprep.mubr.bf16.mxu0 0
    %207 = vmatmul.mubr.bf16.gmra.mxu0 %v131
    %v208 = vpop.f32.mrf.mxu0
    %v209 = vadd.f32 %v60, %v208
    %v210 = vpop.f32.mrf.mxu0
    %v211 = vadd.f32 %v64, %v210
    %v212 = vpop.f32.mrf.mxu0
    %v213 = vpop.f32.mrf.mxu0
    %214 = vdwg.mxu0
    %v215 = vmax.f32 %v168, 0.0
    %v216 = vmax.f32 %v170, 0.0
    %v217 = vmax.f32 %v209, 0.0
    %v218 = vmax.f32 %v211, 0.0
    %v219 = vpack.c.bf16 %v215, %v215
    %v220 = vpack.c.bf16 %v216, %v216
    %v221 = vpack.c.bf16 %v217, %v217
    %v222 = vpack.c.bf16 %v218, %v218
    %v223 = vld [vmem:[%s3] sm:$0xff]
    %v224 = vld [vmem:[%s3 + $0x8] sm:$0xff]
    %v225 = vld [vmem:[%s3 + $0x10] sm:$0xff]
    %v226 = vld [vmem:[%s3 + $0x18] sm:$0xff]
    %v227 = vld [vmem:[%s3 + $0x20] sm:$0xff]
    %v228 = vld [vmem:[%s3 + $0x28] sm:$0xff]
    %v229 = vld [vmem:[%s3 + $0x30] sm:$0xff]
    %v230 = vld [vmem:[%s3 + $0x38] sm:$0xff]
    %v231 = vld [vmem:[%s3 + $0x40] sm:$0xff]
    %v232 = vld [vmem:[%s3 + $0x48] sm:$0xff]
    %v233 = vld [vmem:[%s3 + $0x50] sm:$0xff]
    %v234 = vld [vmem:[%s3 + $0x58] sm:$0xff]
    %v235 = vld [vmem:[%s3 + $0x60] sm:$0xff]
    %v236 = vld [vmem:[%s3 + $0x68] sm:$0xff]
    %v237 = vld [vmem:[%s3 + $0x70] sm:$0xff]
    %v238 = vld [vmem:[%s3 + $0x78] sm:$0xff]
    %v239 = vld [vmem:[%s3 + $0x80] sm:$0xff]
    %v240 = vld [vmem:[%s3 + $0x88] sm:$0xff]
    %v241 = vld [vmem:[%s3 + $0x90] sm:$0xff]
    %v242 = vld [vmem:[%s3 + $0x98] sm:$0xff]
    %v243 = vld [vmem:[%s3 + $0xa0] sm:$0xff]
    %v244 = vld [vmem:[%s3 + $0xa8] sm:$0xff]
    %v245 = vld [vmem:[%s3 + $0xb0] sm:$0xff]
    %v246 = vld [vmem:[%s3 + $0xb8] sm:$0xff]
    %v247 = vld [vmem:[%s3 + $0xc0] sm:$0xff]
    %v248 = vld [vmem:[%s3 + $0xc8] sm:$0xff]
    %v249 = vld [vmem:[%s3 + $0xd0] sm:$0xff]
    %v250 = vld [vmem:[%s3 + $0xd8] sm:$0xff]
    %v251 = vld [vmem:[%s3 + $0xe0] sm:$0xff]
    %v252 = vld [vmem:[%s3 + $0xe8] sm:$0xff]
    %v253 = vld [vmem:[%s3 + $0xf0] sm:$0xff]
    %v254 = vld [vmem:[%s3 + $0xf8] sm:$0xff]
    %v255 = vld [vmem:[%s3 + $0x100] sm:$0xff]
    %v256 = vld [vmem:[%s3 + $0x108] sm:$0xff]
    %v257 = vld [vmem:[%s3 + $0x110] sm:$0xff]
    %v258 = vld [vmem:[%s3 + $0x118] sm:$0xff]
    %v259 = vld [vmem:[%s3 + $0x120] sm:$0xff]
    %v260 = vld [vmem:[%s3 + $0x128] sm:$0xff]
    %v261 = vld [vmem:[%s3 + $0x130] sm:$0xff]
    %v262 = vld [vmem:[%s3 + $0x138] sm:$0xff]
    %v263 = vld [vmem:[%s3 + $0x140] sm:$0xff]
    %v264 = vld [vmem:[%s3 + $0x148] sm:$0xff]
    %v265 = vld [vmem:[%s3 + $0x150] sm:$0xff]
    %v266 = vld [vmem:[%s3 + $0x158] sm:$0xff]
    %v267 = vld [vmem:[%s3 + $0x160] sm:$0xff]
    %v268 = vld [vmem:[%s3 + $0x168] sm:$0xff]
    %v269 = vld [vmem:[%s3 + $0x170] sm:$0xff]
    %v270 = vld [vmem:[%s3 + $0x178] sm:$0xff]
    %v271 = vld [vmem:[%s3 + $0x180] sm:$0xff]
    %v272 = vld [vmem:[%s3 + $0x188] sm:$0xff]
    %v273 = vld [vmem:[%s3 + $0x190] sm:$0xff]
    %v274 = vld [vmem:[%s3 + $0x198] sm:$0xff]
    %v275 = vld [vmem:[%s3 + $0x1a0] sm:$0xff]
    %v276 = vld [vmem:[%s3 + $0x1a8] sm:$0xff]
    %v277 = vld [vmem:[%s3 + $0x1b0] sm:$0xff]
    %v278 = vld [vmem:[%s3 + $0x1b8] sm:$0xff]
    %v279 = vld [vmem:[%s3 + $0x1c0] sm:$0xff]
    %v280 = vld [vmem:[%s3 + $0x1c8] sm:$0xff]
    %v281 = vld [vmem:[%s3 + $0x1d0] sm:$0xff]
    %v282 = vld [vmem:[%s3 + $0x1d8] sm:$0xff]
    %v283 = vld [vmem:[%s3 + $0x1e0] sm:$0xff]
    %v284 = vld [vmem:[%s3 + $0x1e8] sm:$0xff]
    %v285 = vld [vmem:[%s3 + $0x1f0] sm:$0xff]
    %v286 = vld [vmem:[%s3 + $0x1f8] sm:$0xff]
    %v287 = vld [vmem:[%s3 + $0x200] sm:$0xff]
    %v288 = vld [vmem:[%s3 + $0x208] sm:$0xff]
    %v289 = vld [vmem:[%s3 + $0x210] sm:$0xff]
    %v290 = vld [vmem:[%s3 + $0x218] sm:$0xff]
    %v291 = vld [vmem:[%s3 + $0x220] sm:$0xff]
    %v292 = vld [vmem:[%s3 + $0x228] sm:$0xff]
    %v293 = vld [vmem:[%s3 + $0x230] sm:$0xff]
    %v294 = vld [vmem:[%s3 + $0x238] sm:$0xff]
    %v295 = vld [vmem:[%s3 + $0x240] sm:$0xff]
    %v296 = vld [vmem:[%s3 + $0x248] sm:$0xff]
    %v297 = vld [vmem:[%s3 + $0x250] sm:$0xff]
    %v298 = vld [vmem:[%s3 + $0x258] sm:$0xff]
    %v299 = vld [vmem:[%s3 + $0x260] sm:$0xff]
    %v300 = vld [vmem:[%s3 + $0x268] sm:$0xff]
    %v301 = vld [vmem:[%s3 + $0x270] sm:$0xff]
    %v302 = vld [vmem:[%s3 + $0x278] sm:$0xff]
    %v303 = vld [vmem:[%s3 + $0x280] sm:$0xff]
    %v304 = vld [vmem:[%s3 + $0x288] sm:$0xff]
    %v305 = vld [vmem:[%s3 + $0x290] sm:$0xff]
    %v306 = vld [vmem:[%s3 + $0x298] sm:$0xff]
    %v307 = vld [vmem:[%s3 + $0x2a0] sm:$0xff]
    %v308 = vld [vmem:[%s3 + $0x2a8] sm:$0xff]
    %v309 = vld [vmem:[%s3 + $0x2b0] sm:$0xff]
    %v310 = vld [vmem:[%s3 + $0x2b8] sm:$0xff]
    %v311 = vld [vmem:[%s3 + $0x2c0] sm:$0xff]
    %v312 = vld [vmem:[%s3 + $0x2c8] sm:$0xff]
    %v313 = vld [vmem:[%s3 + $0x2d0] sm:$0xff]
    %v314 = vld [vmem:[%s3 + $0x2d8] sm:$0xff]
    %v315 = vld [vmem:[%s3 + $0x2e0] sm:$0xff]
    %v316 = vld [vmem:[%s3 + $0x2e8] sm:$0xff]
    %v317 = vld [vmem:[%s3 + $0x2f0] sm:$0xff]
    %v318 = vld [vmem:[%s3 + $0x2f8] sm:$0xff]
    %v319 = vld [vmem:[%s3 + $0x300] sm:$0xff]
    %v320 = vld [vmem:[%s3 + $0x308] sm:$0xff]
    %v321 = vld [vmem:[%s3 + $0x310] sm:$0xff]
    %v322 = vld [vmem:[%s3 + $0x318] sm:$0xff]
    %v323 = vld [vmem:[%s3 + $0x320] sm:$0xff]
    %v324 = vld [vmem:[%s3 + $0x328] sm:$0xff]
    %v325 = vld [vmem:[%s3 + $0x330] sm:$0xff]
    %v326 = vld [vmem:[%s3 + $0x338] sm:$0xff]
    %v327 = vld [vmem:[%s3 + $0x340] sm:$0xff]
    %v328 = vld [vmem:[%s3 + $0x348] sm:$0xff]
    %v329 = vld [vmem:[%s3 + $0x350] sm:$0xff]
    %v330 = vld [vmem:[%s3 + $0x358] sm:$0xff]
    %v331 = vld [vmem:[%s3 + $0x360] sm:$0xff]
    %v332 = vld [vmem:[%s3 + $0x368] sm:$0xff]
    %v333 = vld [vmem:[%s3 + $0x370] sm:$0xff]
    %v334 = vld [vmem:[%s3 + $0x378] sm:$0xff]
    %v335 = vld [vmem:[%s3 + $0x380] sm:$0xff]
    %v336 = vld [vmem:[%s3 + $0x388] sm:$0xff]
    %v337 = vld [vmem:[%s3 + $0x390] sm:$0xff]
    %v338 = vld [vmem:[%s3 + $0x398] sm:$0xff]
    %v339 = vld [vmem:[%s3 + $0x3a0] sm:$0xff]
    %v340 = vld [vmem:[%s3 + $0x3a8] sm:$0xff]
    %v341 = vld [vmem:[%s3 + $0x3b0] sm:$0xff]
    %v342 = vld [vmem:[%s3 + $0x3b8] sm:$0xff]
    %v343 = vld [vmem:[%s3 + $0x3c0] sm:$0xff]
    %v344 = vld [vmem:[%s3 + $0x3c8] sm:$0xff]
    %v345 = vld [vmem:[%s3 + $0x3d0] sm:$0xff]
    %v346 = vld [vmem:[%s3 + $0x3d8] sm:$0xff]
    %v347 = vld [vmem:[%s3 + $0x3e0] sm:$0x33]
    %v348 = vld [vmem:[%s3 + $0x3e8] sm:$0x33]
    %v349 = vld [vmem:[%s4] sm:$0xf]
    %v351 = vlaneseq
    %v352 = vshrl.u32 %v351, 7
    %v353 = vsub.s32 0, %v352
    %v354 = vrot.slane %v349, %v353
    %v355 = vlaneseq
    %v356 = vshrl.u32 %v355, 7
    %v357 = vsub.s32 1, %v356
    %v358 = vrot.slane %v349, %v357
    %v359 = vlaneseq
    %v360 = vshrl.u32 %v359, 7
    %v361 = vsub.s32 2, %v360
    %v362 = vrot.slane %v349, %v361
    %v363 = vlaneseq
    %v364 = vshrl.u32 %v363, 7
    %v365 = vsub.s32 3, %v364
    %v366 = vrot.slane %v349, %v365
    %v497 = vunpack.c.l.b16 %v223
    %v498 = vunpack.c.h.b16 %v223
    %v499 = vunpack.c.l.b16 %v224
    %v500 = vunpack.c.h.b16 %v224
    %v501 = vunpack.c.l.b16 %v225
    %v502 = vunpack.c.h.b16 %v225
    %v503 = vunpack.c.l.b16 %v226
    %v504 = vunpack.c.h.b16 %v226
    %v505 = vunpack.c.l.b16 %v227
    %v506 = vunpack.c.h.b16 %v227
    %v507 = vunpack.c.l.b16 %v228
    %v508 = vunpack.c.h.b16 %v228
    %v509 = vunpack.c.l.b16 %v229
    %v510 = vunpack.c.h.b16 %v229
    %v511 = vunpack.c.l.b16 %v230
    %v512 = vunpack.c.h.b16 %v230
    %v513 = vunpack.c.l.b16 %v231
    %v514 = vunpack.c.h.b16 %v231
    %v515 = vunpack.c.l.b16 %v232
    %v516 = vunpack.c.h.b16 %v232
    %v517 = vunpack.c.l.b16 %v233
    %v518 = vunpack.c.h.b16 %v233
    %v519 = vunpack.c.l.b16 %v234
    %v520 = vunpack.c.h.b16 %v234
    %v521 = vunpack.c.l.b16 %v235
    %v522 = vunpack.c.h.b16 %v235
    %v523 = vunpack.c.l.b16 %v236
    %v524 = vunpack.c.h.b16 %v236
    %v525 = vunpack.c.l.b16 %v237
    %v526 = vunpack.c.h.b16 %v237
    %v527 = vunpack.c.l.b16 %v238
    %v528 = vunpack.c.h.b16 %v238
    %v529 = vunpack.c.l.b16 %v239
    %v530 = vunpack.c.h.b16 %v239
    %v531 = vunpack.c.l.b16 %v240
    %v532 = vunpack.c.h.b16 %v240
    %v533 = vunpack.c.l.b16 %v241
    %v534 = vunpack.c.h.b16 %v241
    %v535 = vunpack.c.l.b16 %v242
    %v536 = vunpack.c.h.b16 %v242
    %v537 = vunpack.c.l.b16 %v243
    %v538 = vunpack.c.h.b16 %v243
    %v539 = vunpack.c.l.b16 %v244
    %v540 = vunpack.c.h.b16 %v244
    %v541 = vunpack.c.l.b16 %v245
    %v542 = vunpack.c.h.b16 %v245
    %v543 = vunpack.c.l.b16 %v246
    %v544 = vunpack.c.h.b16 %v246
    %v545 = vunpack.c.l.b16 %v247
    %v546 = vunpack.c.h.b16 %v247
    %v547 = vunpack.c.l.b16 %v248
    %v548 = vunpack.c.h.b16 %v248
    %v549 = vunpack.c.l.b16 %v249
    %v550 = vunpack.c.h.b16 %v249
    %v551 = vunpack.c.l.b16 %v250
    %v552 = vunpack.c.h.b16 %v250
    %v553 = vunpack.c.l.b16 %v251
    %v554 = vunpack.c.h.b16 %v251
    %v555 = vunpack.c.l.b16 %v252
    %v556 = vunpack.c.h.b16 %v252
    %v557 = vunpack.c.l.b16 %v253
    %v558 = vunpack.c.h.b16 %v253
    %v559 = vunpack.c.l.b16 %v254
    %v560 = vunpack.c.h.b16 %v254
    %v561 = vunpack.c.l.b16 %v255
    %v562 = vunpack.c.h.b16 %v255
    %v563 = vunpack.c.l.b16 %v256
    %v564 = vunpack.c.h.b16 %v256
    %v565 = vunpack.c.l.b16 %v257
    %v566 = vunpack.c.h.b16 %v257
    %v567 = vunpack.c.l.b16 %v258
    %v568 = vunpack.c.h.b16 %v258
    %v569 = vunpack.c.l.b16 %v259
    %v570 = vunpack.c.h.b16 %v259
    %v571 = vunpack.c.l.b16 %v260
    %v572 = vunpack.c.h.b16 %v260
    %v573 = vunpack.c.l.b16 %v261
    %v574 = vunpack.c.h.b16 %v261
    %v575 = vunpack.c.l.b16 %v262
    %v576 = vunpack.c.h.b16 %v262
    %v577 = vunpack.c.l.b16 %v263
    %v578 = vunpack.c.h.b16 %v263
    %v579 = vunpack.c.l.b16 %v264
    %v580 = vunpack.c.h.b16 %v264
    %v581 = vunpack.c.l.b16 %v265
    %v582 = vunpack.c.h.b16 %v265
    %v583 = vunpack.c.l.b16 %v266
    %v584 = vunpack.c.h.b16 %v266
    %v585 = vunpack.c.l.b16 %v267
    %v586 = vunpack.c.h.b16 %v267
    %v587 = vunpack.c.l.b16 %v268
    %v588 = vunpack.c.h.b16 %v268
    %v589 = vunpack.c.l.b16 %v269
    %v590 = vunpack.c.h.b16 %v269
    %v591 = vunpack.c.l.b16 %v270
    %v592 = vunpack.c.h.b16 %v270
    %v593 = vunpack.c.l.b16 %v271
    %v594 = vunpack.c.h.b16 %v271
    %v595 = vunpack.c.l.b16 %v272
    %v596 = vunpack.c.h.b16 %v272
    %v597 = vunpack.c.l.b16 %v273
    %v598 = vunpack.c.h.b16 %v273
    %v599 = vunpack.c.l.b16 %v274
    %v600 = vunpack.c.h.b16 %v274
    %v601 = vunpack.c.l.b16 %v275
    %v602 = vunpack.c.h.b16 %v275
    %v603 = vunpack.c.l.b16 %v276
    %v604 = vunpack.c.h.b16 %v276
    %v605 = vunpack.c.l.b16 %v277
    %v606 = vunpack.c.h.b16 %v277
    %v607 = vunpack.c.l.b16 %v278
    %v608 = vunpack.c.h.b16 %v278
    %v609 = vunpack.c.l.b16 %v279
    %v610 = vunpack.c.h.b16 %v279
    %v611 = vunpack.c.l.b16 %v280
    %v612 = vunpack.c.h.b16 %v280
    %v613 = vunpack.c.l.b16 %v281
    %v614 = vunpack.c.h.b16 %v281
    %v615 = vunpack.c.l.b16 %v282
    %v616 = vunpack.c.h.b16 %v282
    %v617 = vunpack.c.l.b16 %v283
    %v618 = vunpack.c.h.b16 %v283
    %v619 = vunpack.c.l.b16 %v284
    %v620 = vunpack.c.h.b16 %v284
    %v621 = vunpack.c.l.b16 %v285
    %v622 = vunpack.c.h.b16 %v285
    %v623 = vunpack.c.l.b16 %v286
    %v624 = vunpack.c.h.b16 %v286
    %v625 = vunpack.c.l.b16 %v287
    %v626 = vunpack.c.h.b16 %v287
    %v627 = vunpack.c.l.b16 %v288
    %v628 = vunpack.c.h.b16 %v288
    %v629 = vunpack.c.l.b16 %v289
    %v630 = vunpack.c.h.b16 %v289
    %v631 = vunpack.c.l.b16 %v290
    %v632 = vunpack.c.h.b16 %v290
    %v633 = vunpack.c.l.b16 %v291
    %v634 = vunpack.c.h.b16 %v291
    %v635 = vunpack.c.l.b16 %v292
    %v636 = vunpack.c.h.b16 %v292
    %v637 = vunpack.c.l.b16 %v293
    %v638 = vunpack.c.h.b16 %v293
    %v639 = vunpack.c.l.b16 %v294
    %v640 = vunpack.c.h.b16 %v294
    %v641 = vunpack.c.l.b16 %v295
    %v642 = vunpack.c.h.b16 %v295
    %v643 = vunpack.c.l.b16 %v296
    %v644 = vunpack.c.h.b16 %v296
    %v645 = vunpack.c.l.b16 %v297
    %v646 = vunpack.c.h.b16 %v297
    %v647 = vunpack.c.l.b16 %v298
    %v648 = vunpack.c.h.b16 %v298
    %v649 = vunpack.c.l.b16 %v299
    %v650 = vunpack.c.h.b16 %v299
    %v651 = vunpack.c.l.b16 %v300
    %v652 = vunpack.c.h.b16 %v300
    %v653 = vunpack.c.l.b16 %v301
    %v654 = vunpack.c.h.b16 %v301
    %v655 = vunpack.c.l.b16 %v302
    %v656 = vunpack.c.h.b16 %v302
    %v657 = vunpack.c.l.b16 %v303
    %v658 = vunpack.c.h.b16 %v303
    %v659 = vunpack.c.l.b16 %v304
    %v660 = vunpack.c.h.b16 %v304
    %v661 = vunpack.c.l.b16 %v305
    %v662 = vunpack.c.h.b16 %v305
    %v663 = vunpack.c.l.b16 %v306
    %v664 = vunpack.c.h.b16 %v306
    %v665 = vunpack.c.l.b16 %v307
    %v666 = vunpack.c.h.b16 %v307
    %v667 = vunpack.c.l.b16 %v308
    %v668 = vunpack.c.h.b16 %v308
    %v669 = vunpack.c.l.b16 %v309
    %v670 = vunpack.c.h.b16 %v309
    %v671 = vunpack.c.l.b16 %v310
    %v672 = vunpack.c.h.b16 %v310
    %v673 = vunpack.c.l.b16 %v311
    %v674 = vunpack.c.h.b16 %v311
    %v675 = vunpack.c.l.b16 %v312
    %v676 = vunpack.c.h.b16 %v312
    %v677 = vunpack.c.l.b16 %v313
    %v678 = vunpack.c.h.b16 %v313
    %v679 = vunpack.c.l.b16 %v314
    %v680 = vunpack.c.h.b16 %v314
    %v681 = vunpack.c.l.b16 %v315
    %v682 = vunpack.c.h.b16 %v315
    %v683 = vunpack.c.l.b16 %v316
    %v684 = vunpack.c.h.b16 %v316
    %v685 = vunpack.c.l.b16 %v317
    %v686 = vunpack.c.h.b16 %v317
    %v687 = vunpack.c.l.b16 %v318
    %v688 = vunpack.c.h.b16 %v318
    %v689 = vunpack.c.l.b16 %v319
    %v690 = vunpack.c.h.b16 %v319
    %v691 = vunpack.c.l.b16 %v320
    %v692 = vunpack.c.h.b16 %v320
    %v693 = vunpack.c.l.b16 %v321
    %v694 = vunpack.c.h.b16 %v321
    %v695 = vunpack.c.l.b16 %v322
    %v696 = vunpack.c.h.b16 %v322
    %v697 = vunpack.c.l.b16 %v323
    %v698 = vunpack.c.h.b16 %v323
    %v699 = vunpack.c.l.b16 %v324
    %v700 = vunpack.c.h.b16 %v324
    %v701 = vunpack.c.l.b16 %v325
    %v702 = vunpack.c.h.b16 %v325
    %v703 = vunpack.c.l.b16 %v326
    %v704 = vunpack.c.h.b16 %v326
    %v705 = vunpack.c.l.b16 %v327
    %v706 = vunpack.c.h.b16 %v327
    %v707 = vunpack.c.l.b16 %v328
    %v708 = vunpack.c.h.b16 %v328
    %v709 = vunpack.c.l.b16 %v329
    %v710 = vunpack.c.h.b16 %v329
    %v711 = vunpack.c.l.b16 %v330
    %v712 = vunpack.c.h.b16 %v330
    %v713 = vunpack.c.l.b16 %v331
    %v714 = vunpack.c.h.b16 %v331
    %v715 = vunpack.c.l.b16 %v332
    %v716 = vunpack.c.h.b16 %v332
    %v717 = vunpack.c.l.b16 %v333
    %v718 = vunpack.c.h.b16 %v333
    %v719 = vunpack.c.l.b16 %v334
    %v720 = vunpack.c.h.b16 %v334
    %v721 = vunpack.c.l.b16 %v335
    %v722 = vunpack.c.h.b16 %v335
    %v723 = vunpack.c.l.b16 %v336
    %v724 = vunpack.c.h.b16 %v336
    %v725 = vunpack.c.l.b16 %v337
    %v726 = vunpack.c.h.b16 %v337
    %v727 = vunpack.c.l.b16 %v338
    %v728 = vunpack.c.h.b16 %v338
    %v729 = vunpack.c.l.b16 %v339
    %v730 = vunpack.c.h.b16 %v339
    %v731 = vunpack.c.l.b16 %v340
    %v732 = vunpack.c.h.b16 %v340
    %v733 = vunpack.c.l.b16 %v341
    %v734 = vunpack.c.h.b16 %v341
    %v735 = vunpack.c.l.b16 %v342
    %v736 = vunpack.c.h.b16 %v342
    %v737 = vunpack.c.l.b16 %v343
    %v738 = vunpack.c.h.b16 %v343
    %v739 = vunpack.c.l.b16 %v344
    %v740 = vunpack.c.h.b16 %v344
    %v741 = vunpack.c.l.b16 %v345
    %v742 = vunpack.c.h.b16 %v345
    %v743 = vunpack.c.l.b16 %v346
    %v744 = vunpack.c.h.b16 %v346
    %v745 = vunpack.c.l.b16 %v347
    %v746 = vunpack.c.h.b16 %v347
    %v747 = vunpack.c.l.b16 %v348
    %v748 = vunpack.c.h.b16 %v348
    %v749 = vpack.c.b16 %v501, %v497
    %v750 = vpack.c.b16 %v502, %v498
    %v751 = vpack.c.b16 %v503, %v499
    %v752 = vpack.c.b16 %v504, %v500
    %v753 = vpack.c.b16 %v509, %v505
    %v754 = vpack.c.b16 %v510, %v506
    %v755 = vpack.c.b16 %v511, %v507
    %v756 = vpack.c.b16 %v512, %v508
    %v757 = vpack.c.b16 %v517, %v513
    %v758 = vpack.c.b16 %v518, %v514
    %v759 = vpack.c.b16 %v519, %v515
    %v760 = vpack.c.b16 %v520, %v516
    %v761 = vpack.c.b16 %v525, %v521
    %v762 = vpack.c.b16 %v526, %v522
    %v763 = vpack.c.b16 %v527, %v523
    %v764 = vpack.c.b16 %v528, %v524
    %v765 = vpack.c.b16 %v533, %v529
    %v766 = vpack.c.b16 %v534, %v530
    %v767 = vpack.c.b16 %v535, %v531
    %v768 = vpack.c.b16 %v536, %v532
    %v769 = vpack.c.b16 %v541, %v537
    %v770 = vpack.c.b16 %v542, %v538
    %v771 = vpack.c.b16 %v543, %v539
    %v772 = vpack.c.b16 %v544, %v540
    %v773 = vpack.c.b16 %v549, %v545
    %v774 = vpack.c.b16 %v550, %v546
    %v775 = vpack.c.b16 %v551, %v547
    %v776 = vpack.c.b16 %v552, %v548
    %v777 = vpack.c.b16 %v557, %v553
    %v778 = vpack.c.b16 %v558, %v554
    %v779 = vpack.c.b16 %v559, %v555
    %v780 = vpack.c.b16 %v560, %v556
    %v781 = vpack.c.b16 %v565, %v561
    %v782 = vpack.c.b16 %v566, %v562
    %v783 = vpack.c.b16 %v567, %v563
    %v784 = vpack.c.b16 %v568, %v564
    %v785 = vpack.c.b16 %v573, %v569
    %v786 = vpack.c.b16 %v574, %v570
    %v787 = vpack.c.b16 %v575, %v571
    %v788 = vpack.c.b16 %v576, %v572
    %v789 = vpack.c.b16 %v581, %v577
    %v790 = vpack.c.b16 %v582, %v578
    %v791 = vpack.c.b16 %v583, %v579
    %v792 = vpack.c.b16 %v584, %v580
    %v793 = vpack.c.b16 %v589, %v585
    %v794 = vpack.c.b16 %v590, %v586
    %v795 = vpack.c.b16 %v591, %v587
    %v796 = vpack.c.b16 %v592, %v588
    %v797 = vpack.c.b16 %v597, %v593
    %v798 = vpack.c.b16 %v598, %v594
    %v799 = vpack.c.b16 %v599, %v595
    %v800 = vpack.c.b16 %v600, %v596
    %v801 = vpack.c.b16 %v605, %v601
    %v802 = vpack.c.b16 %v606, %v602
    %v803 = vpack.c.b16 %v607, %v603
    %v804 = vpack.c.b16 %v608, %v604
    %v805 = vpack.c.b16 %v613, %v609
    %v806 = vpack.c.b16 %v614, %v610
    %v807 = vpack.c.b16 %v615, %v611
    %v808 = vpack.c.b16 %v616, %v612
    %v809 = vpack.c.b16 %v621, %v617
    %v810 = vpack.c.b16 %v622, %v618
    %v811 = vpack.c.b16 %v623, %v619
    %v812 = vpack.c.b16 %v624, %v620
    %v813 = vpack.c.b16 %v629, %v625
    %v814 = vpack.c.b16 %v630, %v626
    %v815 = vpack.c.b16 %v631, %v627
    %v816 = vpack.c.b16 %v632, %v628
    %v817 = vpack.c.b16 %v637, %v633
    %v818 = vpack.c.b16 %v638, %v634
    %v819 = vpack.c.b16 %v639, %v635
    %v820 = vpack.c.b16 %v640, %v636
    %v821 = vpack.c.b16 %v645, %v641
    %v822 = vpack.c.b16 %v646, %v642
    %v823 = vpack.c.b16 %v647, %v643
    %v824 = vpack.c.b16 %v648, %v644
    %v825 = vpack.c.b16 %v653, %v649
    %v826 = vpack.c.b16 %v654, %v650
    %v827 = vpack.c.b16 %v655, %v651
    %v828 = vpack.c.b16 %v656, %v652
    %v829 = vpack.c.b16 %v661, %v657
    %v830 = vpack.c.b16 %v662, %v658
    %v831 = vpack.c.b16 %v663, %v659
    %v832 = vpack.c.b16 %v664, %v660
    %v833 = vpack.c.b16 %v669, %v665
    %v834 = vpack.c.b16 %v670, %v666
    %v835 = vpack.c.b16 %v671, %v667
    %v836 = vpack.c.b16 %v672, %v668
    %v837 = vpack.c.b16 %v677, %v673
    %v838 = vpack.c.b16 %v678, %v674
    %v839 = vpack.c.b16 %v679, %v675
    %v840 = vpack.c.b16 %v680, %v676
    %v841 = vpack.c.b16 %v685, %v681
    %v842 = vpack.c.b16 %v686, %v682
    %v843 = vpack.c.b16 %v687, %v683
    %v844 = vpack.c.b16 %v688, %v684
    %v845 = vpack.c.b16 %v693, %v689
    %v846 = vpack.c.b16 %v694, %v690
    %v847 = vpack.c.b16 %v695, %v691
    %v848 = vpack.c.b16 %v696, %v692
    %v849 = vpack.c.b16 %v701, %v697
    %v850 = vpack.c.b16 %v702, %v698
    %v851 = vpack.c.b16 %v703, %v699
    %v852 = vpack.c.b16 %v704, %v700
    %v853 = vpack.c.b16 %v709, %v705
    %v854 = vpack.c.b16 %v710, %v706
    %v855 = vpack.c.b16 %v711, %v707
    %v856 = vpack.c.b16 %v712, %v708
    %v857 = vpack.c.b16 %v717, %v713
    %v858 = vpack.c.b16 %v718, %v714
    %v859 = vpack.c.b16 %v719, %v715
    %v860 = vpack.c.b16 %v720, %v716
    %v861 = vpack.c.b16 %v725, %v721
    %v862 = vpack.c.b16 %v726, %v722
    %v863 = vpack.c.b16 %v727, %v723
    %v864 = vpack.c.b16 %v728, %v724
    %v865 = vpack.c.b16 %v733, %v729
    %v866 = vpack.c.b16 %v734, %v730
    %v867 = vpack.c.b16 %v735, %v731
    %v868 = vpack.c.b16 %v736, %v732
    %v869 = vpack.c.b16 %v741, %v737
    %v870 = vpack.c.b16 %v742, %v738
    %v871 = vpack.c.b16 %v743, %v739
    %v872 = vpack.c.b16 %v744, %v740
    %v873 = vpack.c.b16 %v745, %v745
    %v874 = vpack.c.b16 %v746, %v746
    %v875 = vpack.c.b16 %v747, %v747
    %v876 = vpack.c.b16 %v748, %v748
    %vm1001 = vcmask 949248
    %v1003 = vsel %vm1001, %v222, 0
    %vm1005 = vcmask 1041408
    %v1007 = vsel %vm1005, %v873, 0
    %v1010 = vsel %vm1005, %v874, 0
    %v1013 = vsel %vm1005, %v875, 0
    %v1016 = vsel %vm1005, %v876, 0
    %1018 = vmatprep.subr.bf16.mxu0 %v778
    %1019 = vmatpush1.bf16.msra.mxu0 %v777
    %1020 = vmatprep.subr.bf16.mxu0 %v774
    %1021 = vmatpush1.bf16.msra.mxu0 %v773
    %1022 = vmatprep.subr.bf16.mxu0 %v770
    %1023 = vmatpush1.bf16.msra.mxu0 %v769
    %1024 = vmatprep.subr.bf16.mxu0 %v766
    %1025 = vmatpush1.bf16.msra.mxu0 %v765
    %1026 = vmatprep.subr.bf16.mxu0 %v762
    %1027 = vmatpush1.bf16.msra.mxu0 %v761
    %1028 = vmatprep.subr.bf16.mxu0 %v758
    %1029 = vmatpush1.bf16.msra.mxu0 %v757
    %1030 = vmatprep.subr.bf16.mxu0 %v754
    %1031 = vmatpush1.bf16.msra.mxu0 %v753
    %1032 = vmatprep.subr.bf16.mxu0 %v750
    %1033 = vmatpush1.bf16.msra.mxu0 %v749
    %1034 = vmatprep.subr.bf16.mxu0 %v810
    %1035 = vmatpush2.bf16.msra.mxu0 %v809
    %1036 = vmatprep.subr.bf16.mxu0 %v806
    %1037 = vmatpush2.bf16.msra.mxu0 %v805
    %1038 = vmatprep.subr.bf16.mxu0 %v802
    %1039 = vmatpush2.bf16.msra.mxu0 %v801
    %1040 = vmatprep.subr.bf16.mxu0 %v798
    %1041 = vmatpush2.bf16.msra.mxu0 %v797
    %1042 = vmatprep.subr.bf16.mxu0 %v794
    %1043 = vmatpush2.bf16.msra.mxu0 %v793
    %1044 = vmatprep.subr.bf16.mxu0 %v790
    %1045 = vmatpush2.bf16.msra.mxu0 %v789
    %1046 = vmatprep.subr.bf16.mxu0 %v786
    %1047 = vmatpush2.bf16.msra.mxu0 %v785
    %1048 = vmatprep.subr.bf16.mxu0 %v782
    %1049 = vmatpush2.bf16.msra.mxu0 %v781
    %1050 = vmatprep.mubr.bf16.mxu0 %v220
    %1051 = vmatmul.mubr.bf16.gmra.mxu0 %v219
    %v1052 = vpop.f32.mrf.mxu0
    %v1053 = vadd.f32 %v354, %v1052
    %v1054 = vpop.f32.mrf.mxu0
    %v1055 = vadd.f32 %v358, %v1054
    %v1056 = vpop.f32.mrf.mxu0
    %v1057 = vpop.f32.mrf.mxu0
    %1058 = vdwg.mxu0
    %1059 = vmatprep.subr.bf16.mxu0 %v842
    %1060 = vmatpush1.bf16.msra.mxu0 %v841
    %1061 = vmatprep.subr.bf16.mxu0 %v838
    %1062 = vmatpush1.bf16.msra.mxu0 %v837
    %1063 = vmatprep.subr.bf16.mxu0 %v834
    %1064 = vmatpush1.bf16.msra.mxu0 %v833
    %1065 = vmatprep.subr.bf16.mxu0 %v830
    %1066 = vmatpush1.bf16.msra.mxu0 %v829
    %1067 = vmatprep.subr.bf16.mxu0 %v826
    %1068 = vmatpush1.bf16.msra.mxu0 %v825
    %1069 = vmatprep.subr.bf16.mxu0 %v822
    %1070 = vmatpush1.bf16.msra.mxu0 %v821
    %1071 = vmatprep.subr.bf16.mxu0 %v818
    %1072 = vmatpush1.bf16.msra.mxu0 %v817
    %1073 = vmatprep.subr.bf16.mxu0 %v814
    %1074 = vmatpush1.bf16.msra.mxu0 %v813
    %1075 = vmatprep.subr.bf16.mxu0 %v1010
    %1076 = vmatpush2.bf16.msra.mxu0 %v1007
    %1077 = vmatprep.subr.bf16.mxu0 %v870
    %1078 = vmatpush2.bf16.msra.mxu0 %v869
    %1079 = vmatprep.subr.bf16.mxu0 %v866
    %1080 = vmatpush2.bf16.msra.mxu0 %v865
    %1081 = vmatprep.subr.bf16.mxu0 %v862
    %1082 = vmatpush2.bf16.msra.mxu0 %v861
    %1083 = vmatprep.subr.bf16.mxu0 %v858
    %1084 = vmatpush2.bf16.msra.mxu0 %v857
    %1085 = vmatprep.subr.bf16.mxu0 %v854
    %1086 = vmatpush2.bf16.msra.mxu0 %v853
    %1087 = vmatprep.subr.bf16.mxu0 %v850
    %1088 = vmatpush2.bf16.msra.mxu0 %v849
    %1089 = vmatprep.subr.bf16.mxu0 %v846
    %1090 = vmatpush2.bf16.msra.mxu0 %v845
    %1091 = vmatprep.mubr.bf16.mxu0 %v1003
    %1092 = vmatmul.mubr.bf16.gmra.mxu0 %v221
    %v1093 = vpop.f32.mrf.mxu0
    %v1094 = vadd.f32 %v1053, %v1093
    %v1095 = vpop.f32.mrf.mxu0
    %v1096 = vadd.f32 %v1055, %v1095
    %v1097 = vpop.f32.mrf.mxu0
    %v1098 = vpop.f32.mrf.mxu0
    %1099 = vdwg.mxu0
    %1100 = vmatprep.subr.bf16.mxu0 %v780
    %1101 = vmatpush1.bf16.msra.mxu0 %v779
    %1102 = vmatprep.subr.bf16.mxu0 %v776
    %1103 = vmatpush1.bf16.msra.mxu0 %v775
    %1104 = vmatprep.subr.bf16.mxu0 %v772
    %1105 = vmatpush1.bf16.msra.mxu0 %v771
    %1106 = vmatprep.subr.bf16.mxu0 %v768
    %1107 = vmatpush1.bf16.msra.mxu0 %v767
    %1108 = vmatprep.subr.bf16.mxu0 %v764
    %1109 = vmatpush1.bf16.msra.mxu0 %v763
    %1110 = vmatprep.subr.bf16.mxu0 %v760
    %1111 = vmatpush1.bf16.msra.mxu0 %v759
    %1112 = vmatprep.subr.bf16.mxu0 %v756
    %1113 = vmatpush1.bf16.msra.mxu0 %v755
    %1114 = vmatprep.subr.bf16.mxu0 %v752
    %1115 = vmatpush1.bf16.msra.mxu0 %v751
    %1116 = vmatprep.subr.bf16.mxu0 %v812
    %1117 = vmatpush2.bf16.msra.mxu0 %v811
    %1118 = vmatprep.subr.bf16.mxu0 %v808
    %1119 = vmatpush2.bf16.msra.mxu0 %v807
    %1120 = vmatprep.subr.bf16.mxu0 %v804
    %1121 = vmatpush2.bf16.msra.mxu0 %v803
    %1122 = vmatprep.subr.bf16.mxu0 %v800
    %1123 = vmatpush2.bf16.msra.mxu0 %v799
    %1124 = vmatprep.subr.bf16.mxu0 %v796
    %1125 = vmatpush2.bf16.msra.mxu0 %v795
    %1126 = vmatprep.subr.bf16.mxu0 %v792
    %1127 = vmatpush2.bf16.msra.mxu0 %v791
    %1128 = vmatprep.subr.bf16.mxu0 %v788
    %1129 = vmatpush2.bf16.msra.mxu0 %v787
    %1130 = vmatprep.subr.bf16.mxu0 %v784
    %1131 = vmatpush2.bf16.msra.mxu0 %v783
    %1132 = vmatprep.mubr.bf16.mxu0 %v220
    %1133 = vmatmul.mubr.bf16.gmra.mxu0 %v219
    %v1134 = vpop.f32.mrf.mxu0
    %v1135 = vadd.f32 %v362, %v1134
    %v1136 = vpop.f32.mrf.mxu0
    %v1137 = vadd.f32 %v366, %v1136
    %v1138 = vpop.f32.mrf.mxu0
    %v1139 = vpop.f32.mrf.mxu0
    %1140 = vdwg.mxu0
    %1141 = vmatprep.subr.bf16.mxu0 %v844
    %1142 = vmatpush1.bf16.msra.mxu0 %v843
    %1143 = vmatprep.subr.bf16.mxu0 %v840
    %1144 = vmatpush1.bf16.msra.mxu0 %v839
    %1145 = vmatprep.subr.bf16.mxu0 %v836
    %1146 = vmatpush1.bf16.msra.mxu0 %v835
    %1147 = vmatprep.subr.bf16.mxu0 %v832
    %1148 = vmatpush1.bf16.msra.mxu0 %v831
    %1149 = vmatprep.subr.bf16.mxu0 %v828
    %1150 = vmatpush1.bf16.msra.mxu0 %v827
    %1151 = vmatprep.subr.bf16.mxu0 %v824
    %1152 = vmatpush1.bf16.msra.mxu0 %v823
    %1153 = vmatprep.subr.bf16.mxu0 %v820
    %1154 = vmatpush1.bf16.msra.mxu0 %v819
    %1155 = vmatprep.subr.bf16.mxu0 %v816
    %1156 = vmatpush1.bf16.msra.mxu0 %v815
    %1157 = vmatprep.subr.bf16.mxu0 %v1016
    %1158 = vmatpush2.bf16.msra.mxu0 %v1013
    %1159 = vmatprep.subr.bf16.mxu0 %v872
    %1160 = vmatpush2.bf16.msra.mxu0 %v871
    %1161 = vmatprep.subr.bf16.mxu0 %v868
    %1162 = vmatpush2.bf16.msra.mxu0 %v867
    %1163 = vmatprep.subr.bf16.mxu0 %v864
    %1164 = vmatpush2.bf16.msra.mxu0 %v863
    %1165 = vmatprep.subr.bf16.mxu0 %v860
    %1166 = vmatpush2.bf16.msra.mxu0 %v859
    %1167 = vmatprep.subr.bf16.mxu0 %v856
    %1168 = vmatpush2.bf16.msra.mxu0 %v855
    %1169 = vmatprep.subr.bf16.mxu0 %v852
    %1170 = vmatpush2.bf16.msra.mxu0 %v851
    %1171 = vmatprep.subr.bf16.mxu0 %v848
    %1172 = vmatpush2.bf16.msra.mxu0 %v847
    %1173 = vmatprep.mubr.bf16.mxu0 %v1003
    %1174 = vmatmul.mubr.bf16.gmra.mxu0 %v221
    %v1175 = vpop.f32.mrf.mxu0
    %v1176 = vadd.f32 %v1135, %v1175
    %v1177 = vpop.f32.mrf.mxu0
    %v1178 = vadd.f32 %v1137, %v1177
    %v1179 = vpop.f32.mrf.mxu0
    %v1180 = vpop.f32.mrf.mxu0
    %1181 = vdwg.mxu0
    %v1182 = vmax.f32 %v1094, 0.0
    %v1183 = vmax.f32 %v1096, 0.0
    %v1184 = vmax.f32 %v1176, 0.0
    %v1185 = vmax.f32 %v1178, 0.0
    %v1186 = vpack.c.bf16 %v1182, %v1182
    %v1187 = vpack.c.bf16 %v1183, %v1183
    %v1188 = vpack.c.bf16 %v1184, %v1184
    %v1189 = vpack.c.bf16 %v1185, %v1185
    %v1190 = vld [vmem:[%s5] sm:$0xff]
    %v1191 = vld [vmem:[%s5 + $0x8] sm:$0xff]
    %v1192 = vld [vmem:[%s5 + $0x10] sm:$0xff]
    %v1193 = vld [vmem:[%s5 + $0x18] sm:$0xff]
    %v1194 = vld [vmem:[%s5 + $0x20] sm:$0xff]
    %v1195 = vld [vmem:[%s5 + $0x28] sm:$0xff]
    %v1196 = vld [vmem:[%s5 + $0x30] sm:$0xff]
    %v1197 = vld [vmem:[%s5 + $0x38] sm:$0xff]
    %v1198 = vld [vmem:[%s5 + $0x40] sm:$0xff]
    %v1199 = vld [vmem:[%s5 + $0x48] sm:$0xff]
    %v1200 = vld [vmem:[%s5 + $0x50] sm:$0xff]
    %v1201 = vld [vmem:[%s5 + $0x58] sm:$0xff]
    %v1202 = vld [vmem:[%s5 + $0x60] sm:$0xff]
    %v1203 = vld [vmem:[%s5 + $0x68] sm:$0xff]
    %v1204 = vld [vmem:[%s5 + $0x70] sm:$0xff]
    %v1205 = vld [vmem:[%s5 + $0x78] sm:$0xff]
    %v1206 = vld [vmem:[%s5 + $0x80] sm:$0xff]
    %v1207 = vld [vmem:[%s5 + $0x88] sm:$0xff]
    %v1208 = vld [vmem:[%s5 + $0x90] sm:$0xff]
    %v1209 = vld [vmem:[%s5 + $0x98] sm:$0xff]
    %v1210 = vld [vmem:[%s5 + $0xa0] sm:$0xff]
    %v1211 = vld [vmem:[%s5 + $0xa8] sm:$0xff]
    %v1212 = vld [vmem:[%s5 + $0xb0] sm:$0xff]
    %v1213 = vld [vmem:[%s5 + $0xb8] sm:$0xff]
    %v1214 = vld [vmem:[%s5 + $0xc0] sm:$0xff]
    %v1215 = vld [vmem:[%s5 + $0xc8] sm:$0xff]
    %v1216 = vld [vmem:[%s5 + $0xd0] sm:$0xff]
    %v1217 = vld [vmem:[%s5 + $0xd8] sm:$0xff]
    %v1218 = vld [vmem:[%s5 + $0xe0] sm:$0xff]
    %v1219 = vld [vmem:[%s5 + $0xe8] sm:$0xff]
    %v1220 = vld [vmem:[%s5 + $0xf0] sm:$0xff]
    %v1221 = vld [vmem:[%s5 + $0xf8] sm:$0xff]
    %v1222 = vld [vmem:[%s5 + $0x100] sm:$0xff]
    %v1223 = vld [vmem:[%s5 + $0x108] sm:$0xff]
    %v1224 = vld [vmem:[%s5 + $0x110] sm:$0xff]
    %v1225 = vld [vmem:[%s5 + $0x118] sm:$0xff]
    %v1226 = vld [vmem:[%s5 + $0x120] sm:$0xff]
    %v1227 = vld [vmem:[%s5 + $0x128] sm:$0xff]
    %v1228 = vld [vmem:[%s5 + $0x130] sm:$0xff]
    %v1229 = vld [vmem:[%s5 + $0x138] sm:$0xff]
    %v1230 = vld [vmem:[%s5 + $0x140] sm:$0xff]
    %v1231 = vld [vmem:[%s5 + $0x148] sm:$0xff]
    %v1232 = vld [vmem:[%s5 + $0x150] sm:$0xff]
    %v1233 = vld [vmem:[%s5 + $0x158] sm:$0xff]
    %v1234 = vld [vmem:[%s5 + $0x160] sm:$0xff]
    %v1235 = vld [vmem:[%s5 + $0x168] sm:$0xff]
    %v1236 = vld [vmem:[%s5 + $0x170] sm:$0xff]
    %v1237 = vld [vmem:[%s5 + $0x178] sm:$0xff]
    %v1238 = vld [vmem:[%s5 + $0x180] sm:$0xff]
    %v1239 = vld [vmem:[%s5 + $0x188] sm:$0xff]
    %v1240 = vld [vmem:[%s5 + $0x190] sm:$0xff]
    %v1241 = vld [vmem:[%s5 + $0x198] sm:$0xff]
    %v1242 = vld [vmem:[%s5 + $0x1a0] sm:$0xff]
    %v1243 = vld [vmem:[%s5 + $0x1a8] sm:$0xff]
    %v1244 = vld [vmem:[%s5 + $0x1b0] sm:$0xff]
    %v1245 = vld [vmem:[%s5 + $0x1b8] sm:$0xff]
    %v1246 = vld [vmem:[%s5 + $0x1c0] sm:$0xff]
    %v1247 = vld [vmem:[%s5 + $0x1c8] sm:$0xff]
    %v1248 = vld [vmem:[%s5 + $0x1d0] sm:$0xff]
    %v1249 = vld [vmem:[%s5 + $0x1d8] sm:$0xff]
    %v1250 = vld [vmem:[%s5 + $0x1e0] sm:$0xff]
    %v1251 = vld [vmem:[%s5 + $0x1e8] sm:$0xff]
    %v1252 = vld [vmem:[%s5 + $0x1f0] sm:$0xff]
    %v1253 = vld [vmem:[%s5 + $0x1f8] sm:$0xff]
    %v1254 = vld [vmem:[%s5 + $0x200] sm:$0xff]
    %v1255 = vld [vmem:[%s5 + $0x208] sm:$0xff]
    %v1256 = vld [vmem:[%s5 + $0x210] sm:$0xff]
    %v1257 = vld [vmem:[%s5 + $0x218] sm:$0xff]
    %v1258 = vld [vmem:[%s5 + $0x220] sm:$0xff]
    %v1259 = vld [vmem:[%s5 + $0x228] sm:$0xff]
    %v1260 = vld [vmem:[%s5 + $0x230] sm:$0xff]
    %v1261 = vld [vmem:[%s5 + $0x238] sm:$0xff]
    %v1262 = vld [vmem:[%s5 + $0x240] sm:$0xff]
    %v1263 = vld [vmem:[%s5 + $0x248] sm:$0xff]
    %v1264 = vld [vmem:[%s5 + $0x250] sm:$0xff]
    %v1265 = vld [vmem:[%s5 + $0x258] sm:$0xff]
    %v1266 = vld [vmem:[%s5 + $0x260] sm:$0xff]
    %v1267 = vld [vmem:[%s5 + $0x268] sm:$0xff]
    %v1268 = vld [vmem:[%s5 + $0x270] sm:$0xff]
    %v1269 = vld [vmem:[%s5 + $0x278] sm:$0xff]
    %v1270 = vld [vmem:[%s5 + $0x280] sm:$0xff]
    %v1271 = vld [vmem:[%s5 + $0x288] sm:$0xff]
    %v1272 = vld [vmem:[%s5 + $0x290] sm:$0xff]
    %v1273 = vld [vmem:[%s5 + $0x298] sm:$0xff]
    %v1274 = vld [vmem:[%s5 + $0x2a0] sm:$0xff]
    %v1275 = vld [vmem:[%s5 + $0x2a8] sm:$0xff]
    %v1276 = vld [vmem:[%s5 + $0x2b0] sm:$0xff]
    %v1277 = vld [vmem:[%s5 + $0x2b8] sm:$0xff]
    %v1278 = vld [vmem:[%s5 + $0x2c0] sm:$0xff]
    %v1279 = vld [vmem:[%s5 + $0x2c8] sm:$0xff]
    %v1280 = vld [vmem:[%s5 + $0x2d0] sm:$0xff]
    %v1281 = vld [vmem:[%s5 + $0x2d8] sm:$0xff]
    %v1282 = vld [vmem:[%s5 + $0x2e0] sm:$0xff]
    %v1283 = vld [vmem:[%s5 + $0x2e8] sm:$0xff]
    %v1284 = vld [vmem:[%s5 + $0x2f0] sm:$0xff]
    %v1285 = vld [vmem:[%s5 + $0x2f8] sm:$0xff]
    %v1286 = vld [vmem:[%s5 + $0x300] sm:$0xff]
    %v1287 = vld [vmem:[%s5 + $0x308] sm:$0xff]
    %v1288 = vld [vmem:[%s5 + $0x310] sm:$0xff]
    %v1289 = vld [vmem:[%s5 + $0x318] sm:$0xff]
    %v1290 = vld [vmem:[%s5 + $0x320] sm:$0xff]
    %v1291 = vld [vmem:[%s5 + $0x328] sm:$0xff]
    %v1292 = vld [vmem:[%s5 + $0x330] sm:$0xff]
    %v1293 = vld [vmem:[%s5 + $0x338] sm:$0xff]
    %v1294 = vld [vmem:[%s5 + $0x340] sm:$0xff]
    %v1295 = vld [vmem:[%s5 + $0x348] sm:$0xff]
    %v1296 = vld [vmem:[%s5 + $0x350] sm:$0xff]
    %v1297 = vld [vmem:[%s5 + $0x358] sm:$0xff]
    %v1298 = vld [vmem:[%s5 + $0x360] sm:$0xff]
    %v1299 = vld [vmem:[%s5 + $0x368] sm:$0xff]
    %v1300 = vld [vmem:[%s5 + $0x370] sm:$0xff]
    %v1301 = vld [vmem:[%s5 + $0x378] sm:$0xff]
    %v1302 = vld [vmem:[%s5 + $0x380] sm:$0xff]
    %v1303 = vld [vmem:[%s5 + $0x388] sm:$0xff]
    %v1304 = vld [vmem:[%s5 + $0x390] sm:$0xff]
    %v1305 = vld [vmem:[%s5 + $0x398] sm:$0xff]
    %v1306 = vld [vmem:[%s5 + $0x3a0] sm:$0xff]
    %v1307 = vld [vmem:[%s5 + $0x3a8] sm:$0xff]
    %v1308 = vld [vmem:[%s5 + $0x3b0] sm:$0xff]
    %v1309 = vld [vmem:[%s5 + $0x3b8] sm:$0xff]
    %v1310 = vld [vmem:[%s5 + $0x3c0] sm:$0xff]
    %v1311 = vld [vmem:[%s5 + $0x3c8] sm:$0xff]
    %v1312 = vld [vmem:[%s5 + $0x3d0] sm:$0xff]
    %v1313 = vld [vmem:[%s5 + $0x3d8] sm:$0xff]
    %v1314 = vld [vmem:[%s5 + $0x3e0] sm:$0xff]
    %v1315 = vld [vmem:[%s5 + $0x3e8] sm:$0xff]
    %v1316 = vld [vmem:[%s5 + $0x3f0] sm:$0xff]
    %v1317 = vld [vmem:[%s5 + $0x3f8] sm:$0xff]
    %v1318 = vld [vmem:[%s5 + $0x400] sm:$0xff]
    %v1319 = vld [vmem:[%s5 + $0x408] sm:$0xff]
    %v1320 = vld [vmem:[%s5 + $0x410] sm:$0xff]
    %v1321 = vld [vmem:[%s5 + $0x418] sm:$0xff]
    %v1322 = vld [vmem:[%s5 + $0x420] sm:$0xff]
    %v1323 = vld [vmem:[%s5 + $0x428] sm:$0xff]
    %v1324 = vld [vmem:[%s5 + $0x430] sm:$0xff]
    %v1325 = vld [vmem:[%s5 + $0x438] sm:$0xff]
    %v1326 = vld [vmem:[%s5 + $0x440] sm:$0xff]
    %v1327 = vld [vmem:[%s5 + $0x448] sm:$0xff]
    %v1328 = vld [vmem:[%s5 + $0x450] sm:$0xff]
    %v1329 = vld [vmem:[%s5 + $0x458] sm:$0xff]
    %v1330 = vld [vmem:[%s5 + $0x460] sm:$0xff]
    %v1331 = vld [vmem:[%s5 + $0x468] sm:$0xff]
    %v1332 = vld [vmem:[%s5 + $0x470] sm:$0xff]
    %v1333 = vld [vmem:[%s5 + $0x478] sm:$0xff]
    %v1334 = vld [vmem:[%s5 + $0x480] sm:$0xff]
    %v1335 = vld [vmem:[%s5 + $0x488] sm:$0xff]
    %v1336 = vld [vmem:[%s5 + $0x490] sm:$0xff]
    %v1337 = vld [vmem:[%s5 + $0x498] sm:$0xff]
    %v1338 = vld [vmem:[%s5 + $0x4a0] sm:$0xff]
    %v1339 = vld [vmem:[%s5 + $0x4a8] sm:$0xff]
    %v1340 = vld [vmem:[%s5 + $0x4b0] sm:$0xff]
    %v1341 = vld [vmem:[%s5 + $0x4b8] sm:$0xff]
    %v1342 = vld [vmem:[%s5 + $0x4c0] sm:$0xff]
    %v1343 = vld [vmem:[%s5 + $0x4c8] sm:$0xff]
    %v1344 = vld [vmem:[%s5 + $0x4d0] sm:$0xff]
    %v1345 = vld [vmem:[%s5 + $0x4d8] sm:$0xff]
    %v1346 = vld [vmem:[%s5 + $0x4e0] sm:$0xff]
    %v1347 = vld [vmem:[%s5 + $0x4e8] sm:$0xff]
    %v1348 = vld [vmem:[%s5 + $0x4f0] sm:$0xff]
    %v1349 = vld [vmem:[%s5 + $0x4f8] sm:$0xff]
    %v1350 = vld [vmem:[%s5 + $0x500] sm:$0xff]
    %v1351 = vld [vmem:[%s5 + $0x508] sm:$0xff]
    %v1352 = vld [vmem:[%s5 + $0x510] sm:$0xff]
    %v1353 = vld [vmem:[%s5 + $0x518] sm:$0xff]
    %v1354 = vld [vmem:[%s5 + $0x520] sm:$0xff]
    %v1355 = vld [vmem:[%s5 + $0x528] sm:$0xff]
    %v1356 = vld [vmem:[%s5 + $0x530] sm:$0xff]
    %v1357 = vld [vmem:[%s5 + $0x538] sm:$0xff]
    %v1358 = vld [vmem:[%s5 + $0x540] sm:$0xff]
    %v1359 = vld [vmem:[%s5 + $0x548] sm:$0xff]
    %v1360 = vld [vmem:[%s5 + $0x550] sm:$0xff]
    %v1361 = vld [vmem:[%s5 + $0x558] sm:$0xff]
    %v1362 = vld [vmem:[%s5 + $0x560] sm:$0xff]
    %v1363 = vld [vmem:[%s5 + $0x568] sm:$0xff]
    %v1364 = vld [vmem:[%s5 + $0x570] sm:$0xff]
    %v1365 = vld [vmem:[%s5 + $0x578] sm:$0xff]
    %v1366 = vld [vmem:[%s5 + $0x580] sm:$0xff]
    %v1367 = vld [vmem:[%s5 + $0x588] sm:$0xff]
    %v1368 = vld [vmem:[%s5 + $0x590] sm:$0xff]
    %v1369 = vld [vmem:[%s5 + $0x598] sm:$0xff]
    %v1370 = vld [vmem:[%s5 + $0x5a0] sm:$0xff]
    %v1371 = vld [vmem:[%s5 + $0x5a8] sm:$0xff]
    %v1372 = vld [vmem:[%s5 + $0x5b0] sm:$0xff]
    %v1373 = vld [vmem:[%s5 + $0x5b8] sm:$0xff]
    %v1374 = vld [vmem:[%s5 + $0x5c0] sm:$0xff]
    %v1375 = vld [vmem:[%s5 + $0x5c8] sm:$0xff]
    %v1376 = vld [vmem:[%s5 + $0x5d0] sm:$0xff]
    %v1377 = vld [vmem:[%s5 + $0x5d8] sm:$0xff]
    %v1378 = vld [vmem:[%s5 + $0x5e0] sm:$0xff]
    %v1379 = vld [vmem:[%s5 + $0x5e8] sm:$0xff]
    %v1380 = vld [vmem:[%s5 + $0x5f0] sm:$0xff]
    %v1381 = vld [vmem:[%s5 + $0x5f8] sm:$0xff]
    %v1382 = vld [vmem:[%s5 + $0x600] sm:$0xff]
    %v1383 = vld [vmem:[%s5 + $0x608] sm:$0xff]
    %v1384 = vld [vmem:[%s5 + $0x610] sm:$0xff]
    %v1385 = vld [vmem:[%s5 + $0x618] sm:$0xff]
    %v1386 = vld [vmem:[%s5 + $0x620] sm:$0xff]
    %v1387 = vld [vmem:[%s5 + $0x628] sm:$0xff]
    %v1388 = vld [vmem:[%s5 + $0x630] sm:$0xff]
    %v1389 = vld [vmem:[%s5 + $0x638] sm:$0xff]
    %v1390 = vld [vmem:[%s5 + $0x640] sm:$0xff]
    %v1391 = vld [vmem:[%s5 + $0x648] sm:$0xff]
    %v1392 = vld [vmem:[%s5 + $0x650] sm:$0xff]
    %v1393 = vld [vmem:[%s5 + $0x658] sm:$0xff]
    %v1394 = vld [vmem:[%s5 + $0x660] sm:$0xff]
    %v1395 = vld [vmem:[%s5 + $0x668] sm:$0xff]
    %v1396 = vld [vmem:[%s5 + $0x670] sm:$0xff]
    %v1397 = vld [vmem:[%s5 + $0x678] sm:$0xff]
    %v1398 = vld [vmem:[%s5 + $0x680] sm:$0xff]
    %v1399 = vld [vmem:[%s5 + $0x688] sm:$0xff]
    %v1400 = vld [vmem:[%s5 + $0x690] sm:$0xff]
    %v1401 = vld [vmem:[%s5 + $0x698] sm:$0xff]
    %v1402 = vld [vmem:[%s5 + $0x6a0] sm:$0xff]
    %v1403 = vld [vmem:[%s5 + $0x6a8] sm:$0xff]
    %v1404 = vld [vmem:[%s5 + $0x6b0] sm:$0xff]
    %v1405 = vld [vmem:[%s5 + $0x6b8] sm:$0xff]
    %v1406 = vld [vmem:[%s5 + $0x6c0] sm:$0xff]
    %v1407 = vld [vmem:[%s5 + $0x6c8] sm:$0xff]
    %v1408 = vld [vmem:[%s5 + $0x6d0] sm:$0xff]
    %v1409 = vld [vmem:[%s5 + $0x6d8] sm:$0xff]
    %v1410 = vld [vmem:[%s5 + $0x6e0] sm:$0xff]
    %v1411 = vld [vmem:[%s5 + $0x6e8] sm:$0xff]
    %v1412 = vld [vmem:[%s5 + $0x6f0] sm:$0xff]
    %v1413 = vld [vmem:[%s5 + $0x6f8] sm:$0xff]
    %v1414 = vld [vmem:[%s5 + $0x700] sm:$0xff]
    %v1415 = vld [vmem:[%s5 + $0x708] sm:$0xff]
    %v1416 = vld [vmem:[%s5 + $0x710] sm:$0xff]
    %v1417 = vld [vmem:[%s5 + $0x718] sm:$0xff]
    %v1418 = vld [vmem:[%s5 + $0x720] sm:$0xff]
    %v1419 = vld [vmem:[%s5 + $0x728] sm:$0xff]
    %v1420 = vld [vmem:[%s5 + $0x730] sm:$0xff]
    %v1421 = vld [vmem:[%s5 + $0x738] sm:$0xff]
    %v1422 = vld [vmem:[%s5 + $0x740] sm:$0xff]
    %v1423 = vld [vmem:[%s5 + $0x748] sm:$0xff]
    %v1424 = vld [vmem:[%s5 + $0x750] sm:$0xff]
    %v1425 = vld [vmem:[%s5 + $0x758] sm:$0xff]
    %v1426 = vld [vmem:[%s5 + $0x760] sm:$0xff]
    %v1427 = vld [vmem:[%s5 + $0x768] sm:$0xff]
    %v1428 = vld [vmem:[%s5 + $0x770] sm:$0xff]
    %v1429 = vld [vmem:[%s5 + $0x778] sm:$0xff]
    %v1430 = vld [vmem:[%s5 + $0x780] sm:$0xff]
    %v1431 = vld [vmem:[%s5 + $0x788] sm:$0xff]
    %v1432 = vld [vmem:[%s5 + $0x790] sm:$0xff]
    %v1433 = vld [vmem:[%s5 + $0x798] sm:$0xff]
    %v1434 = vld [vmem:[%s5 + $0x7a0] sm:$0xff]
    %v1435 = vld [vmem:[%s5 + $0x7a8] sm:$0xff]
    %v1436 = vld [vmem:[%s5 + $0x7b0] sm:$0xff]
    %v1437 = vld [vmem:[%s5 + $0x7b8] sm:$0xff]
    %v1438 = vld [vmem:[%s5 + $0x7c0] sm:$0xff]
    %v1439 = vld [vmem:[%s5 + $0x7c8] sm:$0xff]
    %v1440 = vld [vmem:[%s5 + $0x7d0] sm:$0xff]
    %v1441 = vld [vmem:[%s5 + $0x7d8] sm:$0xff]
    %v1442 = vld [vmem:[%s5 + $0x7e0] sm:$0xff]
    %v1443 = vld [vmem:[%s5 + $0x7e8] sm:$0xff]
    %v1444 = vld [vmem:[%s5 + $0x7f0] sm:$0xff]
    %v1445 = vld [vmem:[%s5 + $0x7f8] sm:$0xff]
    %v1446 = vld [vmem:[%s5 + $0x800] sm:$0xff]
    %v1447 = vld [vmem:[%s5 + $0x808] sm:$0xff]
    %v1448 = vld [vmem:[%s5 + $0x810] sm:$0xff]
    %v1449 = vld [vmem:[%s5 + $0x818] sm:$0xff]
    %v1450 = vld [vmem:[%s5 + $0x820] sm:$0xff]
    %v1451 = vld [vmem:[%s5 + $0x828] sm:$0xff]
    %v1452 = vld [vmem:[%s5 + $0x830] sm:$0xff]
    %v1453 = vld [vmem:[%s5 + $0x838] sm:$0xff]
    %v1454 = vld [vmem:[%s5 + $0x840] sm:$0xff]
    %v1455 = vld [vmem:[%s5 + $0x848] sm:$0xff]
    %v1456 = vld [vmem:[%s5 + $0x850] sm:$0xff]
    %v1457 = vld [vmem:[%s5 + $0x858] sm:$0xff]
    %v1458 = vld [vmem:[%s5 + $0x860] sm:$0xff]
    %v1459 = vld [vmem:[%s5 + $0x868] sm:$0xff]
    %v1460 = vld [vmem:[%s5 + $0x870] sm:$0xff]
    %v1461 = vld [vmem:[%s5 + $0x878] sm:$0xff]
    %v1462 = vld [vmem:[%s5 + $0x880] sm:$0xff]
    %v1463 = vld [vmem:[%s5 + $0x888] sm:$0xff]
    %v1464 = vld [vmem:[%s5 + $0x890] sm:$0xff]
    %v1465 = vld [vmem:[%s5 + $0x898] sm:$0xff]
    %v1466 = vld [vmem:[%s5 + $0x8a0] sm:$0xff]
    %v1467 = vld [vmem:[%s5 + $0x8a8] sm:$0xff]
    %v1468 = vld [vmem:[%s5 + $0x8b0] sm:$0xff]
    %v1469 = vld [vmem:[%s5 + $0x8b8] sm:$0xff]
    %v1470 = vld [vmem:[%s5 + $0x8c0] sm:$0xff]
    %v1471 = vld [vmem:[%s5 + $0x8c8] sm:$0xff]
    %v1472 = vld [vmem:[%s5 + $0x8d0] sm:$0xff]
    %v1473 = vld [vmem:[%s5 + $0x8d8] sm:$0xff]
    %v1474 = vld [vmem:[%s5 + $0x8e0] sm:$0xff]
    %v1475 = vld [vmem:[%s5 + $0x8e8] sm:$0xff]
    %v1476 = vld [vmem:[%s5 + $0x8f0] sm:$0xff]
    %v1477 = vld [vmem:[%s5 + $0x8f8] sm:$0xff]
    %v1478 = vld [vmem:[%s5 + $0x900] sm:$0xff]
    %v1479 = vld [vmem:[%s5 + $0x908] sm:$0xff]
    %v1480 = vld [vmem:[%s5 + $0x910] sm:$0xff]
    %v1481 = vld [vmem:[%s5 + $0x918] sm:$0xff]
    %v1482 = vld [vmem:[%s5 + $0x920] sm:$0xff]
    %v1483 = vld [vmem:[%s5 + $0x928] sm:$0xff]
    %v1484 = vld [vmem:[%s5 + $0x930] sm:$0xff]
    %v1485 = vld [vmem:[%s5 + $0x938] sm:$0xff]
    %v1486 = vld [vmem:[%s5 + $0x940] sm:$0xff]
    %v1487 = vld [vmem:[%s5 + $0x948] sm:$0xff]
    %v1488 = vld [vmem:[%s5 + $0x950] sm:$0xff]
    %v1489 = vld [vmem:[%s5 + $0x958] sm:$0xff]
    %v1490 = vld [vmem:[%s5 + $0x960] sm:$0xff]
    %v1491 = vld [vmem:[%s5 + $0x968] sm:$0xff]
    %v1492 = vld [vmem:[%s5 + $0x970] sm:$0xff]
    %v1493 = vld [vmem:[%s5 + $0x978] sm:$0xff]
    %v1494 = vld [vmem:[%s5 + $0x980] sm:$0xff]
    %v1495 = vld [vmem:[%s5 + $0x988] sm:$0xff]
    %v1496 = vld [vmem:[%s5 + $0x990] sm:$0xff]
    %v1497 = vld [vmem:[%s5 + $0x998] sm:$0xff]
    %v1498 = vld [vmem:[%s5 + $0x9a0] sm:$0xff]
    %v1499 = vld [vmem:[%s5 + $0x9a8] sm:$0xff]
    %v1500 = vld [vmem:[%s5 + $0x9b0] sm:$0xff]
    %v1501 = vld [vmem:[%s5 + $0x9b8] sm:$0xff]
    %v1502 = vld [vmem:[%s5 + $0x9c0] sm:$0xff]
    %v1503 = vld [vmem:[%s5 + $0x9c8] sm:$0xff]
    %v1504 = vld [vmem:[%s5 + $0x9d0] sm:$0xff]
    %v1505 = vld [vmem:[%s5 + $0x9d8] sm:$0xff]
    %v1506 = vld [vmem:[%s5 + $0x9e0] sm:$0xff]
    %v1507 = vld [vmem:[%s5 + $0x9e8] sm:$0xff]
    %v1508 = vld [vmem:[%s5 + $0x9f0] sm:$0xff]
    %v1509 = vld [vmem:[%s5 + $0x9f8] sm:$0xff]
    %v1510 = vld [vmem:[%s5 + $0xa00] sm:$0xff]
    %v1511 = vld [vmem:[%s5 + $0xa08] sm:$0xff]
    %v1512 = vld [vmem:[%s5 + $0xa10] sm:$0xff]
    %v1513 = vld [vmem:[%s5 + $0xa18] sm:$0xff]
    %v1514 = vld [vmem:[%s5 + $0xa20] sm:$0xff]
    %v1515 = vld [vmem:[%s5 + $0xa28] sm:$0xff]
    %v1516 = vld [vmem:[%s5 + $0xa30] sm:$0xff]
    %v1517 = vld [vmem:[%s5 + $0xa38] sm:$0xff]
    %v1518 = vld [vmem:[%s5 + $0xa40] sm:$0xff]
    %v1519 = vld [vmem:[%s5 + $0xa48] sm:$0xff]
    %v1520 = vld [vmem:[%s5 + $0xa50] sm:$0xff]
    %v1521 = vld [vmem:[%s5 + $0xa58] sm:$0xff]
    %v1522 = vld [vmem:[%s5 + $0xa60] sm:$0xff]
    %v1523 = vld [vmem:[%s5 + $0xa68] sm:$0xff]
    %v1524 = vld [vmem:[%s5 + $0xa70] sm:$0xff]
    %v1525 = vld [vmem:[%s5 + $0xa78] sm:$0xff]
    %v1526 = vld [vmem:[%s5 + $0xa80] sm:$0xff]
    %v1527 = vld [vmem:[%s5 + $0xa88] sm:$0xff]
    %v1528 = vld [vmem:[%s5 + $0xa90] sm:$0xff]
    %v1529 = vld [vmem:[%s5 + $0xa98] sm:$0xff]
    %v1530 = vld [vmem:[%s5 + $0xaa0] sm:$0xff]
    %v1531 = vld [vmem:[%s5 + $0xaa8] sm:$0xff]
    %v1532 = vld [vmem:[%s5 + $0xab0] sm:$0xff]
    %v1533 = vld [vmem:[%s5 + $0xab8] sm:$0xff]
    %v1534 = vld [vmem:[%s5 + $0xac0] sm:$0xff]
    %v1535 = vld [vmem:[%s5 + $0xac8] sm:$0xff]
    %v1536 = vld [vmem:[%s5 + $0xad0] sm:$0xff]
    %v1537 = vld [vmem:[%s5 + $0xad8] sm:$0xff]
    %v1538 = vld [vmem:[%s5 + $0xae0] sm:$0xff]
    %v1539 = vld [vmem:[%s5 + $0xae8] sm:$0xff]
    %v1540 = vld [vmem:[%s5 + $0xaf0] sm:$0xff]
    %v1541 = vld [vmem:[%s5 + $0xaf8] sm:$0xff]
    %v1542 = vld [vmem:[%s5 + $0xb00] sm:$0xff]
    %v1543 = vld [vmem:[%s5 + $0xb08] sm:$0xff]
    %v1544 = vld [vmem:[%s5 + $0xb10] sm:$0xff]
    %v1545 = vld [vmem:[%s5 + $0xb18] sm:$0xff]
    %v1546 = vld [vmem:[%s5 + $0xb20] sm:$0xff]
    %v1547 = vld [vmem:[%s5 + $0xb28] sm:$0xff]
    %v1548 = vld [vmem:[%s5 + $0xb30] sm:$0xff]
    %v1549 = vld [vmem:[%s5 + $0xb38] sm:$0xff]
    %v1550 = vld [vmem:[%s5 + $0xb40] sm:$0xff]
    %v1551 = vld [vmem:[%s5 + $0xb48] sm:$0xff]
    %v1552 = vld [vmem:[%s5 + $0xb50] sm:$0xff]
    %v1553 = vld [vmem:[%s5 + $0xb58] sm:$0xff]
    %v1554 = vld [vmem:[%s5 + $0xb60] sm:$0xff]
    %v1555 = vld [vmem:[%s5 + $0xb68] sm:$0xff]
    %v1556 = vld [vmem:[%s5 + $0xb70] sm:$0xff]
    %v1557 = vld [vmem:[%s5 + $0xb78] sm:$0xff]
    %v1558 = vld [vmem:[%s5 + $0xb80] sm:$0xff]
    %v1559 = vld [vmem:[%s5 + $0xb88] sm:$0xff]
    %v1560 = vld [vmem:[%s5 + $0xb90] sm:$0xff]
    %v1561 = vld [vmem:[%s5 + $0xb98] sm:$0xff]
    %v1562 = vld [vmem:[%s5 + $0xba0] sm:$0xff]
    %v1563 = vld [vmem:[%s5 + $0xba8] sm:$0xff]
    %v1564 = vld [vmem:[%s5 + $0xbb0] sm:$0xff]
    %v1565 = vld [vmem:[%s5 + $0xbb8] sm:$0xff]
    %v1566 = vld [vmem:[%s5 + $0xbc0] sm:$0xff]
    %v1567 = vld [vmem:[%s5 + $0xbc8] sm:$0xff]
    %v1568 = vld [vmem:[%s5 + $0xbd0] sm:$0xff]
    %v1569 = vld [vmem:[%s5 + $0xbd8] sm:$0xff]
    %v1570 = vld [vmem:[%s5 + $0xbe0] sm:$0xff]
    %v1571 = vld [vmem:[%s5 + $0xbe8] sm:$0xff]
    %v1572 = vld [vmem:[%s5 + $0xbf0] sm:$0xff]
    %v1573 = vld [vmem:[%s5 + $0xbf8] sm:$0xff]
    %v1574 = vld [vmem:[%s5 + $0xc00] sm:$0xff]
    %v1575 = vld [vmem:[%s5 + $0xc08] sm:$0xff]
    %v1576 = vld [vmem:[%s5 + $0xc10] sm:$0xff]
    %v1577 = vld [vmem:[%s5 + $0xc18] sm:$0xff]
    %v1578 = vld [vmem:[%s5 + $0xc20] sm:$0xff]
    %v1579 = vld [vmem:[%s5 + $0xc28] sm:$0xff]
    %v1580 = vld [vmem:[%s5 + $0xc30] sm:$0xff]
    %v1581 = vld [vmem:[%s5 + $0xc38] sm:$0xff]
    %v1582 = vld [vmem:[%s5 + $0xc40] sm:$0xff]
    %v1583 = vld [vmem:[%s5 + $0xc48] sm:$0xff]
    %v1584 = vld [vmem:[%s5 + $0xc50] sm:$0xff]
    %v1585 = vld [vmem:[%s5 + $0xc58] sm:$0xff]
    %v1586 = vld [vmem:[%s5 + $0xc60] sm:$0xff]
    %v1587 = vld [vmem:[%s5 + $0xc68] sm:$0xff]
    %v1588 = vld [vmem:[%s5 + $0xc70] sm:$0xff]
    %v1589 = vld [vmem:[%s5 + $0xc78] sm:$0xff]
    %v1590 = vld [vmem:[%s5 + $0xc80] sm:$0xff]
    %v1591 = vld [vmem:[%s5 + $0xc88] sm:$0xff]
    %v1592 = vld [vmem:[%s5 + $0xc90] sm:$0xff]
    %v1593 = vld [vmem:[%s5 + $0xc98] sm:$0xff]
    %v1594 = vld [vmem:[%s5 + $0xca0] sm:$0xff]
    %v1595 = vld [vmem:[%s5 + $0xca8] sm:$0xff]
    %v1596 = vld [vmem:[%s5 + $0xcb0] sm:$0xff]
    %v1597 = vld [vmem:[%s5 + $0xcb8] sm:$0xff]
    %v1598 = vld [vmem:[%s5 + $0xcc0] sm:$0xff]
    %v1599 = vld [vmem:[%s5 + $0xcc8] sm:$0xff]
    %v1600 = vld [vmem:[%s5 + $0xcd0] sm:$0xff]
    %v1601 = vld [vmem:[%s5 + $0xcd8] sm:$0xff]
    %v1602 = vld [vmem:[%s5 + $0xce0] sm:$0xff]
    %v1603 = vld [vmem:[%s5 + $0xce8] sm:$0xff]
    %v1604 = vld [vmem:[%s5 + $0xcf0] sm:$0xff]
    %v1605 = vld [vmem:[%s5 + $0xcf8] sm:$0xff]
    %v1606 = vld [vmem:[%s5 + $0xd00] sm:$0xff]
    %v1607 = vld [vmem:[%s5 + $0xd08] sm:$0xff]
    %v1608 = vld [vmem:[%s5 + $0xd10] sm:$0xff]
    %v1609 = vld [vmem:[%s5 + $0xd18] sm:$0xff]
    %v1610 = vld [vmem:[%s5 + $0xd20] sm:$0xff]
    %v1611 = vld [vmem:[%s5 + $0xd28] sm:$0xff]
    %v1612 = vld [vmem:[%s5 + $0xd30] sm:$0xff]
    %v1613 = vld [vmem:[%s5 + $0xd38] sm:$0xff]
    %v1614 = vld [vmem:[%s5 + $0xd40] sm:$0xff]
    %v1615 = vld [vmem:[%s5 + $0xd48] sm:$0xff]
    %v1616 = vld [vmem:[%s5 + $0xd50] sm:$0xff]
    %v1617 = vld [vmem:[%s5 + $0xd58] sm:$0xff]
    %v1618 = vld [vmem:[%s5 + $0xd60] sm:$0xff]
    %v1619 = vld [vmem:[%s5 + $0xd68] sm:$0xff]
    %v1620 = vld [vmem:[%s5 + $0xd70] sm:$0xff]
    %v1621 = vld [vmem:[%s5 + $0xd78] sm:$0xff]
    %v1622 = vld [vmem:[%s5 + $0xd80] sm:$0xff]
    %v1623 = vld [vmem:[%s5 + $0xd88] sm:$0xff]
    %v1624 = vld [vmem:[%s5 + $0xd90] sm:$0xff]
    %v1625 = vld [vmem:[%s5 + $0xd98] sm:$0xff]
    %v1626 = vld [vmem:[%s5 + $0xda0] sm:$0xff]
    %v1627 = vld [vmem:[%s5 + $0xda8] sm:$0xff]
    %v1628 = vld [vmem:[%s5 + $0xdb0] sm:$0xff]
    %v1629 = vld [vmem:[%s5 + $0xdb8] sm:$0xff]
    %v1630 = vld [vmem:[%s5 + $0xdc0] sm:$0xff]
    %v1631 = vld [vmem:[%s5 + $0xdc8] sm:$0xff]
    %v1632 = vld [vmem:[%s5 + $0xdd0] sm:$0xff]
    %v1633 = vld [vmem:[%s5 + $0xdd8] sm:$0xff]
    %v1634 = vld [vmem:[%s5 + $0xde0] sm:$0xff]
    %v1635 = vld [vmem:[%s5 + $0xde8] sm:$0xff]
    %v1636 = vld [vmem:[%s5 + $0xdf0] sm:$0xff]
    %v1637 = vld [vmem:[%s5 + $0xdf8] sm:$0xff]
    %v1638 = vld [vmem:[%s5 + $0xe00] sm:$0xff]
    %v1639 = vld [vmem:[%s5 + $0xe08] sm:$0xff]
    %v1640 = vld [vmem:[%s5 + $0xe10] sm:$0xff]
    %v1641 = vld [vmem:[%s5 + $0xe18] sm:$0xff]
    %v1642 = vld [vmem:[%s5 + $0xe20] sm:$0xff]
    %v1643 = vld [vmem:[%s5 + $0xe28] sm:$0xff]
    %v1644 = vld [vmem:[%s5 + $0xe30] sm:$0xff]
    %v1645 = vld [vmem:[%s5 + $0xe38] sm:$0xff]
    %v1646 = vld [vmem:[%s5 + $0xe40] sm:$0xff]
    %v1647 = vld [vmem:[%s5 + $0xe48] sm:$0xff]
    %v1648 = vld [vmem:[%s5 + $0xe50] sm:$0xff]
    %v1649 = vld [vmem:[%s5 + $0xe58] sm:$0xff]
    %v1650 = vld [vmem:[%s5 + $0xe60] sm:$0xff]
    %v1651 = vld [vmem:[%s5 + $0xe68] sm:$0xff]
    %v1652 = vld [vmem:[%s5 + $0xe70] sm:$0xff]
    %v1653 = vld [vmem:[%s5 + $0xe78] sm:$0xff]
    %v1654 = vld [vmem:[%s5 + $0xe80] sm:$0xff]
    %v1655 = vld [vmem:[%s5 + $0xe88] sm:$0xff]
    %v1656 = vld [vmem:[%s5 + $0xe90] sm:$0xff]
    %v1657 = vld [vmem:[%s5 + $0xe98] sm:$0xff]
    %v1658 = vld [vmem:[%s5 + $0xea0] sm:$0xff]
    %v1659 = vld [vmem:[%s5 + $0xea8] sm:$0xff]
    %v1660 = vld [vmem:[%s5 + $0xeb0] sm:$0xff]
    %v1661 = vld [vmem:[%s5 + $0xeb8] sm:$0xff]
    %v1662 = vld [vmem:[%s5 + $0xec0] sm:$0xff]
    %v1663 = vld [vmem:[%s5 + $0xec8] sm:$0xff]
    %v1664 = vld [vmem:[%s5 + $0xed0] sm:$0xff]
    %v1665 = vld [vmem:[%s5 + $0xed8] sm:$0xff]
    %v1666 = vld [vmem:[%s5 + $0xee0] sm:$0xff]
    %v1667 = vld [vmem:[%s5 + $0xee8] sm:$0xff]
    %v1668 = vld [vmem:[%s5 + $0xef0] sm:$0xff]
    %v1669 = vld [vmem:[%s5 + $0xef8] sm:$0xff]
    %v1670 = vld [vmem:[%s5 + $0xf00] sm:$0xff]
    %v1671 = vld [vmem:[%s5 + $0xf08] sm:$0xff]
    %v1672 = vld [vmem:[%s5 + $0xf10] sm:$0xff]
    %v1673 = vld [vmem:[%s5 + $0xf18] sm:$0xff]
    %v1674 = vld [vmem:[%s5 + $0xf20] sm:$0xff]
    %v1675 = vld [vmem:[%s5 + $0xf28] sm:$0xff]
    %v1676 = vld [vmem:[%s5 + $0xf30] sm:$0xff]
    %v1677 = vld [vmem:[%s5 + $0xf38] sm:$0xff]
    %v1678 = vld [vmem:[%s5 + $0xf40] sm:$0xff]
    %v1679 = vld [vmem:[%s5 + $0xf48] sm:$0xff]
    %v1680 = vld [vmem:[%s5 + $0xf50] sm:$0xff]
    %v1681 = vld [vmem:[%s5 + $0xf58] sm:$0xff]
    %v1682 = vld [vmem:[%s5 + $0xf60] sm:$0xff]
    %v1683 = vld [vmem:[%s5 + $0xf68] sm:$0xff]
    %v1684 = vld [vmem:[%s5 + $0xf70] sm:$0xff]
    %v1685 = vld [vmem:[%s5 + $0xf78] sm:$0xff]
    %v1686 = vld [vmem:[%s5 + $0xf80] sm:$0x33]
    %v1687 = vld [vmem:[%s5 + $0xf88] sm:$0x33]
    %v1688 = vld [vmem:[%s5 + $0xf90] sm:$0x33]
    %v1689 = vld [vmem:[%s5 + $0xf98] sm:$0x33]
    %v1690 = vld [vmem:[%s5 + $0xfa0] sm:$0x33]
    %v1691 = vld [vmem:[%s5 + $0xfa8] sm:$0x33]
    %v1692 = vld [vmem:[%s5 + $0xfb0] sm:$0x33]
    %v1693 = vld [vmem:[%s5 + $0xfb8] sm:$0x33]
    %v1694 = vld [vmem:[%s6] sm:$0xff]
    %v1695 = vld [vmem:[%s6 + $0x8] sm:$0xff]
    %v1698 = vlaneseq
    %v1699 = vshrl.u32 %v1698, 7
    %v1700 = vsub.s32 0, %v1699
    %v1701 = vrot.slane %v1694, %v1700
    %v1702 = vlaneseq
    %v1703 = vshrl.u32 %v1702, 7
    %v1704 = vsub.s32 1, %v1703
    %v1705 = vrot.slane %v1694, %v1704
    %v1706 = vlaneseq
    %v1707 = vshrl.u32 %v1706, 7
    %v1708 = vsub.s32 2, %v1707
    %v1709 = vrot.slane %v1694, %v1708
    %v1710 = vlaneseq
    %v1711 = vshrl.u32 %v1710, 7
    %v1712 = vsub.s32 3, %v1711
    %v1713 = vrot.slane %v1694, %v1712
    %v1714 = vlaneseq
    %v1715 = vshrl.u32 %v1714, 7
    %v1716 = vsub.s32 4, %v1715
    %v1717 = vrot.slane %v1694, %v1716
    %v1718 = vlaneseq
    %v1719 = vshrl.u32 %v1718, 7
    %v1720 = vsub.s32 5, %v1719
    %v1721 = vrot.slane %v1694, %v1720
    %v1722 = vlaneseq
    %v1723 = vshrl.u32 %v1722, 7
    %v1724 = vsub.s32 6, %v1723
    %v1725 = vrot.slane %v1694, %v1724
    %v1726 = vlaneseq
    %v1727 = vshrl.u32 %v1726, 7
    %v1728 = vsub.s32 7, %v1727
    %v1729 = vrot.slane %v1694, %v1728
    %v1730 = vlaneseq
    %v1731 = vshrl.u32 %v1730, 7
    %v1732 = vsub.s32 0, %v1731
    %v1733 = vrot.slane %v1695, %v1732
    %v1734 = vlaneseq
    %v1735 = vshrl.u32 %v1734, 7
    %v1736 = vsub.s32 1, %v1735
    %v1737 = vrot.slane %v1695, %v1736
    %v1738 = vlaneseq
    %v1739 = vshrl.u32 %v1738, 7
    %v1740 = vsub.s32 2, %v1739
    %v1741 = vrot.slane %v1695, %v1740
    %v1742 = vlaneseq
    %v1743 = vshrl.u32 %v1742, 7
    %v1744 = vsub.s32 3, %v1743
    %v1745 = vrot.slane %v1695, %v1744
    %v1746 = vlaneseq
    %v1747 = vshrl.u32 %v1746, 7
    %v1748 = vsub.s32 4, %v1747
    %v1749 = vrot.slane %v1695, %v1748
    %v1750 = vlaneseq
    %v1751 = vshrl.u32 %v1750, 7
    %v1752 = vsub.s32 5, %v1751
    %v1753 = vrot.slane %v1695, %v1752
    %v1754 = vlaneseq
    %v1755 = vshrl.u32 %v1754, 7
    %v1756 = vsub.s32 6, %v1755
    %v1757 = vrot.slane %v1695, %v1756
    %v1758 = vlaneseq
    %v1759 = vshrl.u32 %v1758, 7
    %v1760 = vsub.s32 7, %v1759
    %v1761 = vrot.slane %v1695, %v1760
    %v2282 = vunpack.c.l.b16 %v1190
    %v2283 = vunpack.c.h.b16 %v1190
    %v2284 = vunpack.c.l.b16 %v1191
    %v2285 = vunpack.c.h.b16 %v1191
    %v2286 = vunpack.c.l.b16 %v1192
    %v2287 = vunpack.c.h.b16 %v1192
    %v2288 = vunpack.c.l.b16 %v1193
    %v2289 = vunpack.c.h.b16 %v1193
    %v2290 = vunpack.c.l.b16 %v1194
    %v2291 = vunpack.c.h.b16 %v1194
    %v2292 = vunpack.c.l.b16 %v1195
    %v2293 = vunpack.c.h.b16 %v1195
    %v2294 = vunpack.c.l.b16 %v1196
    %v2295 = vunpack.c.h.b16 %v1196
    %v2296 = vunpack.c.l.b16 %v1197
    %v2297 = vunpack.c.h.b16 %v1197
    %v2298 = vunpack.c.l.b16 %v1198
    %v2299 = vunpack.c.h.b16 %v1198
    %v2300 = vunpack.c.l.b16 %v1199
    %v2301 = vunpack.c.h.b16 %v1199
    %v2302 = vunpack.c.l.b16 %v1200
    %v2303 = vunpack.c.h.b16 %v1200
    %v2304 = vunpack.c.l.b16 %v1201
    %v2305 = vunpack.c.h.b16 %v1201
    %v2306 = vunpack.c.l.b16 %v1202
    %v2307 = vunpack.c.h.b16 %v1202
    %v2308 = vunpack.c.l.b16 %v1203
    %v2309 = vunpack.c.h.b16 %v1203
    %v2310 = vunpack.c.l.b16 %v1204
    %v2311 = vunpack.c.h.b16 %v1204
    %v2312 = vunpack.c.l.b16 %v1205
    %v2313 = vunpack.c.h.b16 %v1205
    %v2314 = vunpack.c.l.b16 %v1206
    %v2315 = vunpack.c.h.b16 %v1206
    %v2316 = vunpack.c.l.b16 %v1207
    %v2317 = vunpack.c.h.b16 %v1207
    %v2318 = vunpack.c.l.b16 %v1208
    %v2319 = vunpack.c.h.b16 %v1208
    %v2320 = vunpack.c.l.b16 %v1209
    %v2321 = vunpack.c.h.b16 %v1209
    %v2322 = vunpack.c.l.b16 %v1210
    %v2323 = vunpack.c.h.b16 %v1210
    %v2324 = vunpack.c.l.b16 %v1211
    %v2325 = vunpack.c.h.b16 %v1211
    %v2326 = vunpack.c.l.b16 %v1212
    %v2327 = vunpack.c.h.b16 %v1212
    %v2328 = vunpack.c.l.b16 %v1213
    %v2329 = vunpack.c.h.b16 %v1213
    %v2330 = vunpack.c.l.b16 %v1214
    %v2331 = vunpack.c.h.b16 %v1214
    %v2332 = vunpack.c.l.b16 %v1215
    %v2333 = vunpack.c.h.b16 %v1215
    %v2334 = vunpack.c.l.b16 %v1216
    %v2335 = vunpack.c.h.b16 %v1216
    %v2336 = vunpack.c.l.b16 %v1217
    %v2337 = vunpack.c.h.b16 %v1217
    %v2338 = vunpack.c.l.b16 %v1218
    %v2339 = vunpack.c.h.b16 %v1218
    %v2340 = vunpack.c.l.b16 %v1219
    %v2341 = vunpack.c.h.b16 %v1219
    %v2342 = vunpack.c.l.b16 %v1220
    %v2343 = vunpack.c.h.b16 %v1220
    %v2344 = vunpack.c.l.b16 %v1221
    %v2345 = vunpack.c.h.b16 %v1221
    %v2346 = vunpack.c.l.b16 %v1222
    %v2347 = vunpack.c.h.b16 %v1222
    %v2348 = vunpack.c.l.b16 %v1223
    %v2349 = vunpack.c.h.b16 %v1223
    %v2350 = vunpack.c.l.b16 %v1224
    %v2351 = vunpack.c.h.b16 %v1224
    %v2352 = vunpack.c.l.b16 %v1225
    %v2353 = vunpack.c.h.b16 %v1225
    %v2354 = vunpack.c.l.b16 %v1226
    %v2355 = vunpack.c.h.b16 %v1226
    %v2356 = vunpack.c.l.b16 %v1227
    %v2357 = vunpack.c.h.b16 %v1227
    %v2358 = vunpack.c.l.b16 %v1228
    %v2359 = vunpack.c.h.b16 %v1228
    %v2360 = vunpack.c.l.b16 %v1229
    %v2361 = vunpack.c.h.b16 %v1229
    %v2362 = vunpack.c.l.b16 %v1230
    %v2363 = vunpack.c.h.b16 %v1230
    %v2364 = vunpack.c.l.b16 %v1231
    %v2365 = vunpack.c.h.b16 %v1231
    %v2366 = vunpack.c.l.b16 %v1232
    %v2367 = vunpack.c.h.b16 %v1232
    %v2368 = vunpack.c.l.b16 %v1233
    %v2369 = vunpack.c.h.b16 %v1233
    %v2370 = vunpack.c.l.b16 %v1234
    %v2371 = vunpack.c.h.b16 %v1234
    %v2372 = vunpack.c.l.b16 %v1235
    %v2373 = vunpack.c.h.b16 %v1235
    %v2374 = vunpack.c.l.b16 %v1236
    %v2375 = vunpack.c.h.b16 %v1236
    %v2376 = vunpack.c.l.b16 %v1237
    %v2377 = vunpack.c.h.b16 %v1237
    %v2378 = vunpack.c.l.b16 %v1238
    %v2379 = vunpack.c.h.b16 %v1238
    %v2380 = vunpack.c.l.b16 %v1239
    %v2381 = vunpack.c.h.b16 %v1239
    %v2382 = vunpack.c.l.b16 %v1240
    %v2383 = vunpack.c.h.b16 %v1240
    %v2384 = vunpack.c.l.b16 %v1241
    %v2385 = vunpack.c.h.b16 %v1241
    %v2386 = vunpack.c.l.b16 %v1242
    %v2387 = vunpack.c.h.b16 %v1242
    %v2388 = vunpack.c.l.b16 %v1243
    %v2389 = vunpack.c.h.b16 %v1243
    %v2390 = vunpack.c.l.b16 %v1244
    %v2391 = vunpack.c.h.b16 %v1244
    %v2392 = vunpack.c.l.b16 %v1245
    %v2393 = vunpack.c.h.b16 %v1245
    %v2394 = vunpack.c.l.b16 %v1246
    %v2395 = vunpack.c.h.b16 %v1246
    %v2396 = vunpack.c.l.b16 %v1247
    %v2397 = vunpack.c.h.b16 %v1247
    %v2398 = vunpack.c.l.b16 %v1248
    %v2399 = vunpack.c.h.b16 %v1248
    %v2400 = vunpack.c.l.b16 %v1249
    %v2401 = vunpack.c.h.b16 %v1249
    %v2402 = vunpack.c.l.b16 %v1250
    %v2403 = vunpack.c.h.b16 %v1250
    %v2404 = vunpack.c.l.b16 %v1251
    %v2405 = vunpack.c.h.b16 %v1251
    %v2406 = vunpack.c.l.b16 %v1252
    %v2407 = vunpack.c.h.b16 %v1252
    %v2408 = vunpack.c.l.b16 %v1253
    %v2409 = vunpack.c.h.b16 %v1253
    %v2410 = vunpack.c.l.b16 %v1254
    %v2411 = vunpack.c.h.b16 %v1254
    %v2412 = vunpack.c.l.b16 %v1255
    %v2413 = vunpack.c.h.b16 %v1255
    %v2414 = vunpack.c.l.b16 %v1256
    %v2415 = vunpack.c.h.b16 %v1256
    %v2416 = vunpack.c.l.b16 %v1257
    %v2417 = vunpack.c.h.b16 %v1257
    %v2418 = vunpack.c.l.b16 %v1258
    %v2419 = vunpack.c.h.b16 %v1258
    %v2420 = vunpack.c.l.b16 %v1259
    %v2421 = vunpack.c.h.b16 %v1259
    %v2422 = vunpack.c.l.b16 %v1260
    %v2423 = vunpack.c.h.b16 %v1260
    %v2424 = vunpack.c.l.b16 %v1261
    %v2425 = vunpack.c.h.b16 %v1261
    %v2426 = vunpack.c.l.b16 %v1262
    %v2427 = vunpack.c.h.b16 %v1262
    %v2428 = vunpack.c.l.b16 %v1263
    %v2429 = vunpack.c.h.b16 %v1263
    %v2430 = vunpack.c.l.b16 %v1264
    %v2431 = vunpack.c.h.b16 %v1264
    %v2432 = vunpack.c.l.b16 %v1265
    %v2433 = vunpack.c.h.b16 %v1265
    %v2434 = vunpack.c.l.b16 %v1266
    %v2435 = vunpack.c.h.b16 %v1266
    %v2436 = vunpack.c.l.b16 %v1267
    %v2437 = vunpack.c.h.b16 %v1267
    %v2438 = vunpack.c.l.b16 %v1268
    %v2439 = vunpack.c.h.b16 %v1268
    %v2440 = vunpack.c.l.b16 %v1269
    %v2441 = vunpack.c.h.b16 %v1269
    %v2442 = vunpack.c.l.b16 %v1270
    %v2443 = vunpack.c.h.b16 %v1270
    %v2444 = vunpack.c.l.b16 %v1271
    %v2445 = vunpack.c.h.b16 %v1271
    %v2446 = vunpack.c.l.b16 %v1272
    %v2447 = vunpack.c.h.b16 %v1272
    %v2448 = vunpack.c.l.b16 %v1273
    %v2449 = vunpack.c.h.b16 %v1273
    %v2450 = vunpack.c.l.b16 %v1274
    %v2451 = vunpack.c.h.b16 %v1274
    %v2452 = vunpack.c.l.b16 %v1275
    %v2453 = vunpack.c.h.b16 %v1275
    %v2454 = vunpack.c.l.b16 %v1276
    %v2455 = vunpack.c.h.b16 %v1276
    %v2456 = vunpack.c.l.b16 %v1277
    %v2457 = vunpack.c.h.b16 %v1277
    %v2458 = vunpack.c.l.b16 %v1278
    %v2459 = vunpack.c.h.b16 %v1278
    %v2460 = vunpack.c.l.b16 %v1279
    %v2461 = vunpack.c.h.b16 %v1279
    %v2462 = vunpack.c.l.b16 %v1280
    %v2463 = vunpack.c.h.b16 %v1280
    %v2464 = vunpack.c.l.b16 %v1281
    %v2465 = vunpack.c.h.b16 %v1281
    %v2466 = vunpack.c.l.b16 %v1282
    %v2467 = vunpack.c.h.b16 %v1282
    %v2468 = vunpack.c.l.b16 %v1283
    %v2469 = vunpack.c.h.b16 %v1283
    %v2470 = vunpack.c.l.b16 %v1284
    %v2471 = vunpack.c.h.b16 %v1284
    %v2472 = vunpack.c.l.b16 %v1285
    %v2473 = vunpack.c.h.b16 %v1285
    %v2474 = vunpack.c.l.b16 %v1286
    %v2475 = vunpack.c.h.b16 %v1286
    %v2476 = vunpack.c.l.b16 %v1287
    %v2477 = vunpack.c.h.b16 %v1287
    %v2478 = vunpack.c.l.b16 %v1288
    %v2479 = vunpack.c.h.b16 %v1288
    %v2480 = vunpack.c.l.b16 %v1289
    %v2481 = vunpack.c.h.b16 %v1289
    %v2482 = vunpack.c.l.b16 %v1290
    %v2483 = vunpack.c.h.b16 %v1290
    %v2484 = vunpack.c.l.b16 %v1291
    %v2485 = vunpack.c.h.b16 %v1291
    %v2486 = vunpack.c.l.b16 %v1292
    %v2487 = vunpack.c.h.b16 %v1292
    %v2488 = vunpack.c.l.b16 %v1293
    %v2489 = vunpack.c.h.b16 %v1293
    %v2490 = vunpack.c.l.b16 %v1294
    %v2491 = vunpack.c.h.b16 %v1294
    %v2492 = vunpack.c.l.b16 %v1295
    %v2493 = vunpack.c.h.b16 %v1295
    %v2494 = vunpack.c.l.b16 %v1296
    %v2495 = vunpack.c.h.b16 %v1296
    %v2496 = vunpack.c.l.b16 %v1297
    %v2497 = vunpack.c.h.b16 %v1297
    %v2498 = vunpack.c.l.b16 %v1298
    %v2499 = vunpack.c.h.b16 %v1298
    %v2500 = vunpack.c.l.b16 %v1299
    %v2501 = vunpack.c.h.b16 %v1299
    %v2502 = vunpack.c.l.b16 %v1300
    %v2503 = vunpack.c.h.b16 %v1300
    %v2504 = vunpack.c.l.b16 %v1301
    %v2505 = vunpack.c.h.b16 %v1301
    %v2506 = vunpack.c.l.b16 %v1302
    %v2507 = vunpack.c.h.b16 %v1302
    %v2508 = vunpack.c.l.b16 %v1303
    %v2509 = vunpack.c.h.b16 %v1303
    %v2510 = vunpack.c.l.b16 %v1304
    %v2511 = vunpack.c.h.b16 %v1304
    %v2512 = vunpack.c.l.b16 %v1305
    %v2513 = vunpack.c.h.b16 %v1305
    %v2514 = vunpack.c.l.b16 %v1306
    %v2515 = vunpack.c.h.b16 %v1306
    %v2516 = vunpack.c.l.b16 %v1307
    %v2517 = vunpack.c.h.b16 %v1307
    %v2518 = vunpack.c.l.b16 %v1308
    %v2519 = vunpack.c.h.b16 %v1308
    %v2520 = vunpack.c.l.b16 %v1309
    %v2521 = vunpack.c.h.b16 %v1309
    %v2522 = vunpack.c.l.b16 %v1310
    %v2523 = vunpack.c.h.b16 %v1310
    %v2524 = vunpack.c.l.b16 %v1311
    %v2525 = vunpack.c.h.b16 %v1311
    %v2526 = vunpack.c.l.b16 %v1312
    %v2527 = vunpack.c.h.b16 %v1312
    %v2528 = vunpack.c.l.b16 %v1313
    %v2529 = vunpack.c.h.b16 %v1313
    %v2530 = vunpack.c.l.b16 %v1314
    %v2531 = vunpack.c.h.b16 %v1314
    %v2532 = vunpack.c.l.b16 %v1315
    %v2533 = vunpack.c.h.b16 %v1315
    %v2534 = vunpack.c.l.b16 %v1316
    %v2535 = vunpack.c.h.b16 %v1316
    %v2536 = vunpack.c.l.b16 %v1317
    %v2537 = vunpack.c.h.b16 %v1317
    %v2538 = vunpack.c.l.b16 %v1318
    %v2539 = vunpack.c.h.b16 %v1318
    %v2540 = vunpack.c.l.b16 %v1319
    %v2541 = vunpack.c.h.b16 %v1319
    %v2542 = vunpack.c.l.b16 %v1320
    %v2543 = vunpack.c.h.b16 %v1320
    %v2544 = vunpack.c.l.b16 %v1321
    %v2545 = vunpack.c.h.b16 %v1321
    %v2546 = vunpack.c.l.b16 %v1322
    %v2547 = vunpack.c.h.b16 %v1322
    %v2548 = vunpack.c.l.b16 %v1323
    %v2549 = vunpack.c.h.b16 %v1323
    %v2550 = vunpack.c.l.b16 %v1324
    %v2551 = vunpack.c.h.b16 %v1324
    %v2552 = vunpack.c.l.b16 %v1325
    %v2553 = vunpack.c.h.b16 %v1325
    %v2554 = vunpack.c.l.b16 %v1326
    %v2555 = vunpack.c.h.b16 %v1326
    %v2556 = vunpack.c.l.b16 %v1327
    %v2557 = vunpack.c.h.b16 %v1327
    %v2558 = vunpack.c.l.b16 %v1328
    %v2559 = vunpack.c.h.b16 %v1328
    %v2560 = vunpack.c.l.b16 %v1329
    %v2561 = vunpack.c.h.b16 %v1329
    %v2562 = vunpack.c.l.b16 %v1330
    %v2563 = vunpack.c.h.b16 %v1330
    %v2564 = vunpack.c.l.b16 %v1331
    %v2565 = vunpack.c.h.b16 %v1331
    %v2566 = vunpack.c.l.b16 %v1332
    %v2567 = vunpack.c.h.b16 %v1332
    %v2568 = vunpack.c.l.b16 %v1333
    %v2569 = vunpack.c.h.b16 %v1333
    %v2570 = vunpack.c.l.b16 %v1334
    %v2571 = vunpack.c.h.b16 %v1334
    %v2572 = vunpack.c.l.b16 %v1335
    %v2573 = vunpack.c.h.b16 %v1335
    %v2574 = vunpack.c.l.b16 %v1336
    %v2575 = vunpack.c.h.b16 %v1336
    %v2576 = vunpack.c.l.b16 %v1337
    %v2577 = vunpack.c.h.b16 %v1337
    %v2578 = vunpack.c.l.b16 %v1338
    %v2579 = vunpack.c.h.b16 %v1338
    %v2580 = vunpack.c.l.b16 %v1339
    %v2581 = vunpack.c.h.b16 %v1339
    %v2582 = vunpack.c.l.b16 %v1340
    %v2583 = vunpack.c.h.b16 %v1340
    %v2584 = vunpack.c.l.b16 %v1341
    %v2585 = vunpack.c.h.b16 %v1341
    %v2586 = vunpack.c.l.b16 %v1342
    %v2587 = vunpack.c.h.b16 %v1342
    %v2588 = vunpack.c.l.b16 %v1343
    %v2589 = vunpack.c.h.b16 %v1343
    %v2590 = vunpack.c.l.b16 %v1344
    %v2591 = vunpack.c.h.b16 %v1344
    %v2592 = vunpack.c.l.b16 %v1345
    %v2593 = vunpack.c.h.b16 %v1345
    %v2594 = vunpack.c.l.b16 %v1346
    %v2595 = vunpack.c.h.b16 %v1346
    %v2596 = vunpack.c.l.b16 %v1347
    %v2597 = vunpack.c.h.b16 %v1347
    %v2598 = vunpack.c.l.b16 %v1348
    %v2599 = vunpack.c.h.b16 %v1348
    %v2600 = vunpack.c.l.b16 %v1349
    %v2601 = vunpack.c.h.b16 %v1349
    %v2602 = vunpack.c.l.b16 %v1350
    %v2603 = vunpack.c.h.b16 %v1350
    %v2604 = vunpack.c.l.b16 %v1351
    %v2605 = vunpack.c.h.b16 %v1351
    %v2606 = vunpack.c.l.b16 %v1352
    %v2607 = vunpack.c.h.b16 %v1352
    %v2608 = vunpack.c.l.b16 %v1353
    %v2609 = vunpack.c.h.b16 %v1353
    %v2610 = vunpack.c.l.b16 %v1354
    %v2611 = vunpack.c.h.b16 %v1354
    %v2612 = vunpack.c.l.b16 %v1355
    %v2613 = vunpack.c.h.b16 %v1355
    %v2614 = vunpack.c.l.b16 %v1356
    %v2615 = vunpack.c.h.b16 %v1356
    %v2616 = vunpack.c.l.b16 %v1357
    %v2617 = vunpack.c.h.b16 %v1357
    %v2618 = vunpack.c.l.b16 %v1358
    %v2619 = vunpack.c.h.b16 %v1358
    %v2620 = vunpack.c.l.b16 %v1359
    %v2621 = vunpack.c.h.b16 %v1359
    %v2622 = vunpack.c.l.b16 %v1360
    %v2623 = vunpack.c.h.b16 %v1360
    %v2624 = vunpack.c.l.b16 %v1361
    %v2625 = vunpack.c.h.b16 %v1361
    %v2626 = vunpack.c.l.b16 %v1362
    %v2627 = vunpack.c.h.b16 %v1362
    %v2628 = vunpack.c.l.b16 %v1363
    %v2629 = vunpack.c.h.b16 %v1363
    %v2630 = vunpack.c.l.b16 %v1364
    %v2631 = vunpack.c.h.b16 %v1364
    %v2632 = vunpack.c.l.b16 %v1365
    %v2633 = vunpack.c.h.b16 %v1365
    %v2634 = vunpack.c.l.b16 %v1366
    %v2635 = vunpack.c.h.b16 %v1366
    %v2636 = vunpack.c.l.b16 %v1367
    %v2637 = vunpack.c.h.b16 %v1367
    %v2638 = vunpack.c.l.b16 %v1368
    %v2639 = vunpack.c.h.b16 %v1368
    %v2640 = vunpack.c.l.b16 %v1369
    %v2641 = vunpack.c.h.b16 %v1369
    %v2642 = vunpack.c.l.b16 %v1370
    %v2643 = vunpack.c.h.b16 %v1370
    %v2644 = vunpack.c.l.b16 %v1371
    %v2645 = vunpack.c.h.b16 %v1371
    %v2646 = vunpack.c.l.b16 %v1372
    %v2647 = vunpack.c.h.b16 %v1372
    %v2648 = vunpack.c.l.b16 %v1373
    %v2649 = vunpack.c.h.b16 %v1373
    %v2650 = vunpack.c.l.b16 %v1374
    %v2651 = vunpack.c.h.b16 %v1374
    %v2652 = vunpack.c.l.b16 %v1375
    %v2653 = vunpack.c.h.b16 %v1375
    %v2654 = vunpack.c.l.b16 %v1376
    %v2655 = vunpack.c.h.b16 %v1376
    %v2656 = vunpack.c.l.b16 %v1377
    %v2657 = vunpack.c.h.b16 %v1377
    %v2658 = vunpack.c.l.b16 %v1378
    %v2659 = vunpack.c.h.b16 %v1378
    %v2660 = vunpack.c.l.b16 %v1379
    %v2661 = vunpack.c.h.b16 %v1379
    %v2662 = vunpack.c.l.b16 %v1380
    %v2663 = vunpack.c.h.b16 %v1380
    %v2664 = vunpack.c.l.b16 %v1381
    %v2665 = vunpack.c.h.b16 %v1381
    %v2666 = vunpack.c.l.b16 %v1382
    %v2667 = vunpack.c.h.b16 %v1382
    %v2668 = vunpack.c.l.b16 %v1383
    %v2669 = vunpack.c.h.b16 %v1383
    %v2670 = vunpack.c.l.b16 %v1384
    %v2671 = vunpack.c.h.b16 %v1384
    %v2672 = vunpack.c.l.b16 %v1385
    %v2673 = vunpack.c.h.b16 %v1385
    %v2674 = vunpack.c.l.b16 %v1386
    %v2675 = vunpack.c.h.b16 %v1386
    %v2676 = vunpack.c.l.b16 %v1387
    %v2677 = vunpack.c.h.b16 %v1387
    %v2678 = vunpack.c.l.b16 %v1388
    %v2679 = vunpack.c.h.b16 %v1388
    %v2680 = vunpack.c.l.b16 %v1389
    %v2681 = vunpack.c.h.b16 %v1389
    %v2682 = vunpack.c.l.b16 %v1390
    %v2683 = vunpack.c.h.b16 %v1390
    %v2684 = vunpack.c.l.b16 %v1391
    %v2685 = vunpack.c.h.b16 %v1391
    %v2686 = vunpack.c.l.b16 %v1392
    %v2687 = vunpack.c.h.b16 %v1392
    %v2688 = vunpack.c.l.b16 %v1393
    %v2689 = vunpack.c.h.b16 %v1393
    %v2690 = vunpack.c.l.b16 %v1394
    %v2691 = vunpack.c.h.b16 %v1394
    %v2692 = vunpack.c.l.b16 %v1395
    %v2693 = vunpack.c.h.b16 %v1395
    %v2694 = vunpack.c.l.b16 %v1396
    %v2695 = vunpack.c.h.b16 %v1396
    %v2696 = vunpack.c.l.b16 %v1397
    %v2697 = vunpack.c.h.b16 %v1397
    %v2698 = vunpack.c.l.b16 %v1398
    %v2699 = vunpack.c.h.b16 %v1398
    %v2700 = vunpack.c.l.b16 %v1399
    %v2701 = vunpack.c.h.b16 %v1399
    %v2702 = vunpack.c.l.b16 %v1400
    %v2703 = vunpack.c.h.b16 %v1400
    %v2704 = vunpack.c.l.b16 %v1401
    %v2705 = vunpack.c.h.b16 %v1401
    %v2706 = vunpack.c.l.b16 %v1402
    %v2707 = vunpack.c.h.b16 %v1402
    %v2708 = vunpack.c.l.b16 %v1403
    %v2709 = vunpack.c.h.b16 %v1403
    %v2710 = vunpack.c.l.b16 %v1404
    %v2711 = vunpack.c.h.b16 %v1404
    %v2712 = vunpack.c.l.b16 %v1405
    %v2713 = vunpack.c.h.b16 %v1405
    %v2714 = vunpack.c.l.b16 %v1406
    %v2715 = vunpack.c.h.b16 %v1406
    %v2716 = vunpack.c.l.b16 %v1407
    %v2717 = vunpack.c.h.b16 %v1407
    %v2718 = vunpack.c.l.b16 %v1408
    %v2719 = vunpack.c.h.b16 %v1408
    %v2720 = vunpack.c.l.b16 %v1409
    %v2721 = vunpack.c.h.b16 %v1409
    %v2722 = vunpack.c.l.b16 %v1410
    %v2723 = vunpack.c.h.b16 %v1410
    %v2724 = vunpack.c.l.b16 %v1411
    %v2725 = vunpack.c.h.b16 %v1411
    %v2726 = vunpack.c.l.b16 %v1412
    %v2727 = vunpack.c.h.b16 %v1412
    %v2728 = vunpack.c.l.b16 %v1413
    %v2729 = vunpack.c.h.b16 %v1413
    %v2730 = vunpack.c.l.b16 %v1414
    %v2731 = vunpack.c.h.b16 %v1414
    %v2732 = vunpack.c.l.b16 %v1415
    %v2733 = vunpack.c.h.b16 %v1415
    %v2734 = vunpack.c.l.b16 %v1416
    %v2735 = vunpack.c.h.b16 %v1416
    %v2736 = vunpack.c.l.b16 %v1417
    %v2737 = vunpack.c.h.b16 %v1417
    %v2738 = vunpack.c.l.b16 %v1418
    %v2739 = vunpack.c.h.b16 %v1418
    %v2740 = vunpack.c.l.b16 %v1419
    %v2741 = vunpack.c.h.b16 %v1419
    %v2742 = vunpack.c.l.b16 %v1420
    %v2743 = vunpack.c.h.b16 %v1420
    %v2744 = vunpack.c.l.b16 %v1421
    %v2745 = vunpack.c.h.b16 %v1421
    %v2746 = vunpack.c.l.b16 %v1422
    %v2747 = vunpack.c.h.b16 %v1422
    %v2748 = vunpack.c.l.b16 %v1423
    %v2749 = vunpack.c.h.b16 %v1423
    %v2750 = vunpack.c.l.b16 %v1424
    %v2751 = vunpack.c.h.b16 %v1424
    %v2752 = vunpack.c.l.b16 %v1425
    %v2753 = vunpack.c.h.b16 %v1425
    %v2754 = vunpack.c.l.b16 %v1426
    %v2755 = vunpack.c.h.b16 %v1426
    %v2756 = vunpack.c.l.b16 %v1427
    %v2757 = vunpack.c.h.b16 %v1427
    %v2758 = vunpack.c.l.b16 %v1428
    %v2759 = vunpack.c.h.b16 %v1428
    %v2760 = vunpack.c.l.b16 %v1429
    %v2761 = vunpack.c.h.b16 %v1429
    %v2762 = vunpack.c.l.b16 %v1430
    %v2763 = vunpack.c.h.b16 %v1430
    %v2764 = vunpack.c.l.b16 %v1431
    %v2765 = vunpack.c.h.b16 %v1431
    %v2766 = vunpack.c.l.b16 %v1432
    %v2767 = vunpack.c.h.b16 %v1432
    %v2768 = vunpack.c.l.b16 %v1433
    %v2769 = vunpack.c.h.b16 %v1433
    %v2770 = vunpack.c.l.b16 %v1434
    %v2771 = vunpack.c.h.b16 %v1434
    %v2772 = vunpack.c.l.b16 %v1435
    %v2773 = vunpack.c.h.b16 %v1435
    %v2774 = vunpack.c.l.b16 %v1436
    %v2775 = vunpack.c.h.b16 %v1436
    %v2776 = vunpack.c.l.b16 %v1437
    %v2777 = vunpack.c.h.b16 %v1437
    %v2778 = vunpack.c.l.b16 %v1438
    %v2779 = vunpack.c.h.b16 %v1438
    %v2780 = vunpack.c.l.b16 %v1439
    %v2781 = vunpack.c.h.b16 %v1439
    %v2782 = vunpack.c.l.b16 %v1440
    %v2783 = vunpack.c.h.b16 %v1440
    %v2784 = vunpack.c.l.b16 %v1441
    %v2785 = vunpack.c.h.b16 %v1441
    %v2786 = vunpack.c.l.b16 %v1442
    %v2787 = vunpack.c.h.b16 %v1442
    %v2788 = vunpack.c.l.b16 %v1443
    %v2789 = vunpack.c.h.b16 %v1443
    %v2790 = vunpack.c.l.b16 %v1444
    %v2791 = vunpack.c.h.b16 %v1444
    %v2792 = vunpack.c.l.b16 %v1445
    %v2793 = vunpack.c.h.b16 %v1445
    %v2794 = vunpack.c.l.b16 %v1446
    %v2795 = vunpack.c.h.b16 %v1446
    %v2796 = vunpack.c.l.b16 %v1447
    %v2797 = vunpack.c.h.b16 %v1447
    %v2798 = vunpack.c.l.b16 %v1448
    %v2799 = vunpack.c.h.b16 %v1448
    %v2800 = vunpack.c.l.b16 %v1449
    %v2801 = vunpack.c.h.b16 %v1449
    %v2802 = vunpack.c.l.b16 %v1450
    %v2803 = vunpack.c.h.b16 %v1450
    %v2804 = vunpack.c.l.b16 %v1451
    %v2805 = vunpack.c.h.b16 %v1451
    %v2806 = vunpack.c.l.b16 %v1452
    %v2807 = vunpack.c.h.b16 %v1452
    %v2808 = vunpack.c.l.b16 %v1453
    %v2809 = vunpack.c.h.b16 %v1453
    %v2810 = vunpack.c.l.b16 %v1454
    %v2811 = vunpack.c.h.b16 %v1454
    %v2812 = vunpack.c.l.b16 %v1455
    %v2813 = vunpack.c.h.b16 %v1455
    %v2814 = vunpack.c.l.b16 %v1456
    %v2815 = vunpack.c.h.b16 %v1456
    %v2816 = vunpack.c.l.b16 %v1457
    %v2817 = vunpack.c.h.b16 %v1457
    %v2818 = vunpack.c.l.b16 %v1458
    %v2819 = vunpack.c.h.b16 %v1458
    %v2820 = vunpack.c.l.b16 %v1459
    %v2821 = vunpack.c.h.b16 %v1459
    %v2822 = vunpack.c.l.b16 %v1460
    %v2823 = vunpack.c.h.b16 %v1460
    %v2824 = vunpack.c.l.b16 %v1461
    %v2825 = vunpack.c.h.b16 %v1461
    %v2826 = vunpack.c.l.b16 %v1462
    %v2827 = vunpack.c.h.b16 %v1462
    %v2828 = vunpack.c.l.b16 %v1463
    %v2829 = vunpack.c.h.b16 %v1463
    %v2830 = vunpack.c.l.b16 %v1464
    %v2831 = vunpack.c.h.b16 %v1464
    %v2832 = vunpack.c.l.b16 %v1465
    %v2833 = vunpack.c.h.b16 %v1465
    %v2834 = vunpack.c.l.b16 %v1466
    %v2835 = vunpack.c.h.b16 %v1466
    %v2836 = vunpack.c.l.b16 %v1467
    %v2837 = vunpack.c.h.b16 %v1467
    %v2838 = vunpack.c.l.b16 %v1468
    %v2839 = vunpack.c.h.b16 %v1468
    %v2840 = vunpack.c.l.b16 %v1469
    %v2841 = vunpack.c.h.b16 %v1469
    %v2842 = vunpack.c.l.b16 %v1470
    %v2843 = vunpack.c.h.b16 %v1470
    %v2844 = vunpack.c.l.b16 %v1471
    %v2845 = vunpack.c.h.b16 %v1471
    %v2846 = vunpack.c.l.b16 %v1472
    %v2847 = vunpack.c.h.b16 %v1472
    %v2848 = vunpack.c.l.b16 %v1473
    %v2849 = vunpack.c.h.b16 %v1473
    %v2850 = vunpack.c.l.b16 %v1474
    %v2851 = vunpack.c.h.b16 %v1474
    %v2852 = vunpack.c.l.b16 %v1475
    %v2853 = vunpack.c.h.b16 %v1475
    %v2854 = vunpack.c.l.b16 %v1476
    %v2855 = vunpack.c.h.b16 %v1476
    %v2856 = vunpack.c.l.b16 %v1477
    %v2857 = vunpack.c.h.b16 %v1477
    %v2858 = vunpack.c.l.b16 %v1478
    %v2859 = vunpack.c.h.b16 %v1478
    %v2860 = vunpack.c.l.b16 %v1479
    %v2861 = vunpack.c.h.b16 %v1479
    %v2862 = vunpack.c.l.b16 %v1480
    %v2863 = vunpack.c.h.b16 %v1480
    %v2864 = vunpack.c.l.b16 %v1481
    %v2865 = vunpack.c.h.b16 %v1481
    %v2866 = vunpack.c.l.b16 %v1482
    %v2867 = vunpack.c.h.b16 %v1482
    %v2868 = vunpack.c.l.b16 %v1483
    %v2869 = vunpack.c.h.b16 %v1483
    %v2870 = vunpack.c.l.b16 %v1484
    %v2871 = vunpack.c.h.b16 %v1484
    %v2872 = vunpack.c.l.b16 %v1485
    %v2873 = vunpack.c.h.b16 %v1485
    %v2874 = vunpack.c.l.b16 %v1486
    %v2875 = vunpack.c.h.b16 %v1486
    %v2876 = vunpack.c.l.b16 %v1487
    %v2877 = vunpack.c.h.b16 %v1487
    %v2878 = vunpack.c.l.b16 %v1488
    %v2879 = vunpack.c.h.b16 %v1488
    %v2880 = vunpack.c.l.b16 %v1489
    %v2881 = vunpack.c.h.b16 %v1489
    %v2882 = vunpack.c.l.b16 %v1490
    %v2883 = vunpack.c.h.b16 %v1490
    %v2884 = vunpack.c.l.b16 %v1491
    %v2885 = vunpack.c.h.b16 %v1491
    %v2886 = vunpack.c.l.b16 %v1492
    %v2887 = vunpack.c.h.b16 %v1492
    %v2888 = vunpack.c.l.b16 %v1493
    %v2889 = vunpack.c.h.b16 %v1493
    %v2890 = vunpack.c.l.b16 %v1494
    %v2891 = vunpack.c.h.b16 %v1494
    %v2892 = vunpack.c.l.b16 %v1495
    %v2893 = vunpack.c.h.b16 %v1495
    %v2894 = vunpack.c.l.b16 %v1496
    %v2895 = vunpack.c.h.b16 %v1496
    %v2896 = vunpack.c.l.b16 %v1497
    %v2897 = vunpack.c.h.b16 %v1497
    %v2898 = vunpack.c.l.b16 %v1498
    %v2899 = vunpack.c.h.b16 %v1498
    %v2900 = vunpack.c.l.b16 %v1499
    %v2901 = vunpack.c.h.b16 %v1499
    %v2902 = vunpack.c.l.b16 %v1500
    %v2903 = vunpack.c.h.b16 %v1500
    %v2904 = vunpack.c.l.b16 %v1501
    %v2905 = vunpack.c.h.b16 %v1501
    %v2906 = vunpack.c.l.b16 %v1502
    %v2907 = vunpack.c.h.b16 %v1502
    %v2908 = vunpack.c.l.b16 %v1503
    %v2909 = vunpack.c.h.b16 %v1503
    %v2910 = vunpack.c.l.b16 %v1504
    %v2911 = vunpack.c.h.b16 %v1504
    %v2912 = vunpack.c.l.b16 %v1505
    %v2913 = vunpack.c.h.b16 %v1505
    %v2914 = vunpack.c.l.b16 %v1506
    %v2915 = vunpack.c.h.b16 %v1506
    %v2916 = vunpack.c.l.b16 %v1507
    %v2917 = vunpack.c.h.b16 %v1507
    %v2918 = vunpack.c.l.b16 %v1508
    %v2919 = vunpack.c.h.b16 %v1508
    %v2920 = vunpack.c.l.b16 %v1509
    %v2921 = vunpack.c.h.b16 %v1509
    %v2922 = vunpack.c.l.b16 %v1510
    %v2923 = vunpack.c.h.b16 %v1510
    %v2924 = vunpack.c.l.b16 %v1511
    %v2925 = vunpack.c.h.b16 %v1511
    %v2926 = vunpack.c.l.b16 %v1512
    %v2927 = vunpack.c.h.b16 %v1512
    %v2928 = vunpack.c.l.b16 %v1513
    %v2929 = vunpack.c.h.b16 %v1513
    %v2930 = vunpack.c.l.b16 %v1514
    %v2931 = vunpack.c.h.b16 %v1514
    %v2932 = vunpack.c.l.b16 %v1515
    %v2933 = vunpack.c.h.b16 %v1515
    %v2934 = vunpack.c.l.b16 %v1516
    %v2935 = vunpack.c.h.b16 %v1516
    %v2936 = vunpack.c.l.b16 %v1517
    %v2937 = vunpack.c.h.b16 %v1517
    %v2938 = vunpack.c.l.b16 %v1518
    %v2939 = vunpack.c.h.b16 %v1518
    %v2940 = vunpack.c.l.b16 %v1519
    %v2941 = vunpack.c.h.b16 %v1519
    %v2942 = vunpack.c.l.b16 %v1520
    %v2943 = vunpack.c.h.b16 %v1520
    %v2944 = vunpack.c.l.b16 %v1521
    %v2945 = vunpack.c.h.b16 %v1521
    %v2946 = vunpack.c.l.b16 %v1522
    %v2947 = vunpack.c.h.b16 %v1522
    %v2948 = vunpack.c.l.b16 %v1523
    %v2949 = vunpack.c.h.b16 %v1523
    %v2950 = vunpack.c.l.b16 %v1524
    %v2951 = vunpack.c.h.b16 %v1524
    %v2952 = vunpack.c.l.b16 %v1525
    %v2953 = vunpack.c.h.b16 %v1525
    %v2954 = vunpack.c.l.b16 %v1526
    %v2955 = vunpack.c.h.b16 %v1526
    %v2956 = vunpack.c.l.b16 %v1527
    %v2957 = vunpack.c.h.b16 %v1527
    %v2958 = vunpack.c.l.b16 %v1528
    %v2959 = vunpack.c.h.b16 %v1528
    %v2960 = vunpack.c.l.b16 %v1529
    %v2961 = vunpack.c.h.b16 %v1529
    %v2962 = vunpack.c.l.b16 %v1530
    %v2963 = vunpack.c.h.b16 %v1530
    %v2964 = vunpack.c.l.b16 %v1531
    %v2965 = vunpack.c.h.b16 %v1531
    %v2966 = vunpack.c.l.b16 %v1532
    %v2967 = vunpack.c.h.b16 %v1532
    %v2968 = vunpack.c.l.b16 %v1533
    %v2969 = vunpack.c.h.b16 %v1533
    %v2970 = vunpack.c.l.b16 %v1534
    %v2971 = vunpack.c.h.b16 %v1534
    %v2972 = vunpack.c.l.b16 %v1535
    %v2973 = vunpack.c.h.b16 %v1535
    %v2974 = vunpack.c.l.b16 %v1536
    %v2975 = vunpack.c.h.b16 %v1536
    %v2976 = vunpack.c.l.b16 %v1537
    %v2977 = vunpack.c.h.b16 %v1537
    %v2978 = vunpack.c.l.b16 %v1538
    %v2979 = vunpack.c.h.b16 %v1538
    %v2980 = vunpack.c.l.b16 %v1539
    %v2981 = vunpack.c.h.b16 %v1539
    %v2982 = vunpack.c.l.b16 %v1540
    %v2983 = vunpack.c.h.b16 %v1540
    %v2984 = vunpack.c.l.b16 %v1541
    %v2985 = vunpack.c.h.b16 %v1541
    %v2986 = vunpack.c.l.b16 %v1542
    %v2987 = vunpack.c.h.b16 %v1542
    %v2988 = vunpack.c.l.b16 %v1543
    %v2989 = vunpack.c.h.b16 %v1543
    %v2990 = vunpack.c.l.b16 %v1544
    %v2991 = vunpack.c.h.b16 %v1544
    %v2992 = vunpack.c.l.b16 %v1545
    %v2993 = vunpack.c.h.b16 %v1545
    %v2994 = vunpack.c.l.b16 %v1546
    %v2995 = vunpack.c.h.b16 %v1546
    %v2996 = vunpack.c.l.b16 %v1547
    %v2997 = vunpack.c.h.b16 %v1547
    %v2998 = vunpack.c.l.b16 %v1548
    %v2999 = vunpack.c.h.b16 %v1548
    %v3000 = vunpack.c.l.b16 %v1549
    %v3001 = vunpack.c.h.b16 %v1549
    %v3002 = vunpack.c.l.b16 %v1550
    %v3003 = vunpack.c.h.b16 %v1550
    %v3004 = vunpack.c.l.b16 %v1551
    %v3005 = vunpack.c.h.b16 %v1551
    %v3006 = vunpack.c.l.b16 %v1552
    %v3007 = vunpack.c.h.b16 %v1552
    %v3008 = vunpack.c.l.b16 %v1553
    %v3009 = vunpack.c.h.b16 %v1553
    %v3010 = vunpack.c.l.b16 %v1554
    %v3011 = vunpack.c.h.b16 %v1554
    %v3012 = vunpack.c.l.b16 %v1555
    %v3013 = vunpack.c.h.b16 %v1555
    %v3014 = vunpack.c.l.b16 %v1556
    %v3015 = vunpack.c.h.b16 %v1556
    %v3016 = vunpack.c.l.b16 %v1557
    %v3017 = vunpack.c.h.b16 %v1557
    %v3018 = vunpack.c.l.b16 %v1558
    %v3019 = vunpack.c.h.b16 %v1558
    %v3020 = vunpack.c.l.b16 %v1559
    %v3021 = vunpack.c.h.b16 %v1559
    %v3022 = vunpack.c.l.b16 %v1560
    %v3023 = vunpack.c.h.b16 %v1560
    %v3024 = vunpack.c.l.b16 %v1561
    %v3025 = vunpack.c.h.b16 %v1561
    %v3026 = vunpack.c.l.b16 %v1562
    %v3027 = vunpack.c.h.b16 %v1562
    %v3028 = vunpack.c.l.b16 %v1563
    %v3029 = vunpack.c.h.b16 %v1563
    %v3030 = vunpack.c.l.b16 %v1564
    %v3031 = vunpack.c.h.b16 %v1564
    %v3032 = vunpack.c.l.b16 %v1565
    %v3033 = vunpack.c.h.b16 %v1565
    %v3034 = vunpack.c.l.b16 %v1566
    %v3035 = vunpack.c.h.b16 %v1566
    %v3036 = vunpack.c.l.b16 %v1567
    %v3037 = vunpack.c.h.b16 %v1567
    %v3038 = vunpack.c.l.b16 %v1568
    %v3039 = vunpack.c.h.b16 %v1568
    %v3040 = vunpack.c.l.b16 %v1569
    %v3041 = vunpack.c.h.b16 %v1569
    %v3042 = vunpack.c.l.b16 %v1570
    %v3043 = vunpack.c.h.b16 %v1570
    %v3044 = vunpack.c.l.b16 %v1571
    %v3045 = vunpack.c.h.b16 %v1571
    %v3046 = vunpack.c.l.b16 %v1572
    %v3047 = vunpack.c.h.b16 %v1572
    %v3048 = vunpack.c.l.b16 %v1573
    %v3049 = vunpack.c.h.b16 %v1573
    %v3050 = vunpack.c.l.b16 %v1574
    %v3051 = vunpack.c.h.b16 %v1574
    %v3052 = vunpack.c.l.b16 %v1575
    %v3053 = vunpack.c.h.b16 %v1575
    %v3054 = vunpack.c.l.b16 %v1576
    %v3055 = vunpack.c.h.b16 %v1576
    %v3056 = vunpack.c.l.b16 %v1577
    %v3057 = vunpack.c.h.b16 %v1577
    %v3058 = vunpack.c.l.b16 %v1578
    %v3059 = vunpack.c.h.b16 %v1578
    %v3060 = vunpack.c.l.b16 %v1579
    %v3061 = vunpack.c.h.b16 %v1579
    %v3062 = vunpack.c.l.b16 %v1580
    %v3063 = vunpack.c.h.b16 %v1580
    %v3064 = vunpack.c.l.b16 %v1581
    %v3065 = vunpack.c.h.b16 %v1581
    %v3066 = vunpack.c.l.b16 %v1582
    %v3067 = vunpack.c.h.b16 %v1582
    %v3068 = vunpack.c.l.b16 %v1583
    %v3069 = vunpack.c.h.b16 %v1583
    %v3070 = vunpack.c.l.b16 %v1584
    %v3071 = vunpack.c.h.b16 %v1584
    %v3072 = vunpack.c.l.b16 %v1585
    %v3073 = vunpack.c.h.b16 %v1585
    %v3074 = vunpack.c.l.b16 %v1586
    %v3075 = vunpack.c.h.b16 %v1586
    %v3076 = vunpack.c.l.b16 %v1587
    %v3077 = vunpack.c.h.b16 %v1587
    %v3078 = vunpack.c.l.b16 %v1588
    %v3079 = vunpack.c.h.b16 %v1588
    %v3080 = vunpack.c.l.b16 %v1589
    %v3081 = vunpack.c.h.b16 %v1589
    %v3082 = vunpack.c.l.b16 %v1590
    %v3083 = vunpack.c.h.b16 %v1590
    %v3084 = vunpack.c.l.b16 %v1591
    %v3085 = vunpack.c.h.b16 %v1591
    %v3086 = vunpack.c.l.b16 %v1592
    %v3087 = vunpack.c.h.b16 %v1592
    %v3088 = vunpack.c.l.b16 %v1593
    %v3089 = vunpack.c.h.b16 %v1593
    %v3090 = vunpack.c.l.b16 %v1594
    %v3091 = vunpack.c.h.b16 %v1594
    %v3092 = vunpack.c.l.b16 %v1595
    %v3093 = vunpack.c.h.b16 %v1595
    %v3094 = vunpack.c.l.b16 %v1596
    %v3095 = vunpack.c.h.b16 %v1596
    %v3096 = vunpack.c.l.b16 %v1597
    %v3097 = vunpack.c.h.b16 %v1597
    %v3098 = vunpack.c.l.b16 %v1598
    %v3099 = vunpack.c.h.b16 %v1598
    %v3100 = vunpack.c.l.b16 %v1599
    %v3101 = vunpack.c.h.b16 %v1599
    %v3102 = vunpack.c.l.b16 %v1600
    %v3103 = vunpack.c.h.b16 %v1600
    %v3104 = vunpack.c.l.b16 %v1601
    %v3105 = vunpack.c.h.b16 %v1601
    %v3106 = vunpack.c.l.b16 %v1602
    %v3107 = vunpack.c.h.b16 %v1602
    %v3108 = vunpack.c.l.b16 %v1603
    %v3109 = vunpack.c.h.b16 %v1603
    %v3110 = vunpack.c.l.b16 %v1604
    %v3111 = vunpack.c.h.b16 %v1604
    %v3112 = vunpack.c.l.b16 %v1605
    %v3113 = vunpack.c.h.b16 %v1605
    %v3114 = vunpack.c.l.b16 %v1606
    %v3115 = vunpack.c.h.b16 %v1606
    %v3116 = vunpack.c.l.b16 %v1607
    %v3117 = vunpack.c.h.b16 %v1607
    %v3118 = vunpack.c.l.b16 %v1608
    %v3119 = vunpack.c.h.b16 %v1608
    %v3120 = vunpack.c.l.b16 %v1609
    %v3121 = vunpack.c.h.b16 %v1609
    %v3122 = vunpack.c.l.b16 %v1610
    %v3123 = vunpack.c.h.b16 %v1610
    %v3124 = vunpack.c.l.b16 %v1611
    %v3125 = vunpack.c.h.b16 %v1611
    %v3126 = vunpack.c.l.b16 %v1612
    %v3127 = vunpack.c.h.b16 %v1612
    %v3128 = vunpack.c.l.b16 %v1613
    %v3129 = vunpack.c.h.b16 %v1613
    %v3130 = vunpack.c.l.b16 %v1614
    %v3131 = vunpack.c.h.b16 %v1614
    %v3132 = vunpack.c.l.b16 %v1615
    %v3133 = vunpack.c.h.b16 %v1615
    %v3134 = vunpack.c.l.b16 %v1616
    %v3135 = vunpack.c.h.b16 %v1616
    %v3136 = vunpack.c.l.b16 %v1617
    %v3137 = vunpack.c.h.b16 %v1617
    %v3138 = vunpack.c.l.b16 %v1618
    %v3139 = vunpack.c.h.b16 %v1618
    %v3140 = vunpack.c.l.b16 %v1619
    %v3141 = vunpack.c.h.b16 %v1619
    %v3142 = vunpack.c.l.b16 %v1620
    %v3143 = vunpack.c.h.b16 %v1620
    %v3144 = vunpack.c.l.b16 %v1621
    %v3145 = vunpack.c.h.b16 %v1621
    %v3146 = vunpack.c.l.b16 %v1622
    %v3147 = vunpack.c.h.b16 %v1622
    %v3148 = vunpack.c.l.b16 %v1623
    %v3149 = vunpack.c.h.b16 %v1623
    %v3150 = vunpack.c.l.b16 %v1624
    %v3151 = vunpack.c.h.b16 %v1624
    %v3152 = vunpack.c.l.b16 %v1625
    %v3153 = vunpack.c.h.b16 %v1625
    %v3154 = vunpack.c.l.b16 %v1626
    %v3155 = vunpack.c.h.b16 %v1626
    %v3156 = vunpack.c.l.b16 %v1627
    %v3157 = vunpack.c.h.b16 %v1627
    %v3158 = vunpack.c.l.b16 %v1628
    %v3159 = vunpack.c.h.b16 %v1628
    %v3160 = vunpack.c.l.b16 %v1629
    %v3161 = vunpack.c.h.b16 %v1629
    %v3162 = vunpack.c.l.b16 %v1630
    %v3163 = vunpack.c.h.b16 %v1630
    %v3164 = vunpack.c.l.b16 %v1631
    %v3165 = vunpack.c.h.b16 %v1631
    %v3166 = vunpack.c.l.b16 %v1632
    %v3167 = vunpack.c.h.b16 %v1632
    %v3168 = vunpack.c.l.b16 %v1633
    %v3169 = vunpack.c.h.b16 %v1633
    %v3170 = vunpack.c.l.b16 %v1634
    %v3171 = vunpack.c.h.b16 %v1634
    %v3172 = vunpack.c.l.b16 %v1635
    %v3173 = vunpack.c.h.b16 %v1635
    %v3174 = vunpack.c.l.b16 %v1636
    %v3175 = vunpack.c.h.b16 %v1636
    %v3176 = vunpack.c.l.b16 %v1637
    %v3177 = vunpack.c.h.b16 %v1637
    %v3178 = vunpack.c.l.b16 %v1638
    %v3179 = vunpack.c.h.b16 %v1638
    %v3180 = vunpack.c.l.b16 %v1639
    %v3181 = vunpack.c.h.b16 %v1639
    %v3182 = vunpack.c.l.b16 %v1640
    %v3183 = vunpack.c.h.b16 %v1640
    %v3184 = vunpack.c.l.b16 %v1641
    %v3185 = vunpack.c.h.b16 %v1641
    %v3186 = vunpack.c.l.b16 %v1642
    %v3187 = vunpack.c.h.b16 %v1642
    %v3188 = vunpack.c.l.b16 %v1643
    %v3189 = vunpack.c.h.b16 %v1643
    %v3190 = vunpack.c.l.b16 %v1644
    %v3191 = vunpack.c.h.b16 %v1644
    %v3192 = vunpack.c.l.b16 %v1645
    %v3193 = vunpack.c.h.b16 %v1645
    %v3194 = vunpack.c.l.b16 %v1646
    %v3195 = vunpack.c.h.b16 %v1646
    %v3196 = vunpack.c.l.b16 %v1647
    %v3197 = vunpack.c.h.b16 %v1647
    %v3198 = vunpack.c.l.b16 %v1648
    %v3199 = vunpack.c.h.b16 %v1648
    %v3200 = vunpack.c.l.b16 %v1649
    %v3201 = vunpack.c.h.b16 %v1649
    %v3202 = vunpack.c.l.b16 %v1650
    %v3203 = vunpack.c.h.b16 %v1650
    %v3204 = vunpack.c.l.b16 %v1651
    %v3205 = vunpack.c.h.b16 %v1651
    %v3206 = vunpack.c.l.b16 %v1652
    %v3207 = vunpack.c.h.b16 %v1652
    %v3208 = vunpack.c.l.b16 %v1653
    %v3209 = vunpack.c.h.b16 %v1653
    %v3210 = vunpack.c.l.b16 %v1654
    %v3211 = vunpack.c.h.b16 %v1654
    %v3212 = vunpack.c.l.b16 %v1655
    %v3213 = vunpack.c.h.b16 %v1655
    %v3214 = vunpack.c.l.b16 %v1656
    %v3215 = vunpack.c.h.b16 %v1656
    %v3216 = vunpack.c.l.b16 %v1657
    %v3217 = vunpack.c.h.b16 %v1657
    %v3218 = vunpack.c.l.b16 %v1658
    %v3219 = vunpack.c.h.b16 %v1658
    %v3220 = vunpack.c.l.b16 %v1659
    %v3221 = vunpack.c.h.b16 %v1659
    %v3222 = vunpack.c.l.b16 %v1660
    %v3223 = vunpack.c.h.b16 %v1660
    %v3224 = vunpack.c.l.b16 %v1661
    %v3225 = vunpack.c.h.b16 %v1661
    %v3226 = vunpack.c.l.b16 %v1662
    %v3227 = vunpack.c.h.b16 %v1662
    %v3228 = vunpack.c.l.b16 %v1663
    %v3229 = vunpack.c.h.b16 %v1663
    %v3230 = vunpack.c.l.b16 %v1664
    %v3231 = vunpack.c.h.b16 %v1664
    %v3232 = vunpack.c.l.b16 %v1665
    %v3233 = vunpack.c.h.b16 %v1665
    %v3234 = vunpack.c.l.b16 %v1666
    %v3235 = vunpack.c.h.b16 %v1666
    %v3236 = vunpack.c.l.b16 %v1667
    %v3237 = vunpack.c.h.b16 %v1667
    %v3238 = vunpack.c.l.b16 %v1668
    %v3239 = vunpack.c.h.b16 %v1668
    %v3240 = vunpack.c.l.b16 %v1669
    %v3241 = vunpack.c.h.b16 %v1669
    %v3242 = vunpack.c.l.b16 %v1670
    %v3243 = vunpack.c.h.b16 %v1670
    %v3244 = vunpack.c.l.b16 %v1671
    %v3245 = vunpack.c.h.b16 %v1671
    %v3246 = vunpack.c.l.b16 %v1672
    %v3247 = vunpack.c.h.b16 %v1672
    %v3248 = vunpack.c.l.b16 %v1673
    %v3249 = vunpack.c.h.b16 %v1673
    %v3250 = vunpack.c.l.b16 %v1674
    %v3251 = vunpack.c.h.b16 %v1674
    %v3252 = vunpack.c.l.b16 %v1675
    %v3253 = vunpack.c.h.b16 %v1675
    %v3254 = vunpack.c.l.b16 %v1676
    %v3255 = vunpack.c.h.b16 %v1676
    %v3256 = vunpack.c.l.b16 %v1677
    %v3257 = vunpack.c.h.b16 %v1677
    %v3258 = vunpack.c.l.b16 %v1678
    %v3259 = vunpack.c.h.b16 %v1678
    %v3260 = vunpack.c.l.b16 %v1679
    %v3261 = vunpack.c.h.b16 %v1679
    %v3262 = vunpack.c.l.b16 %v1680
    %v3263 = vunpack.c.h.b16 %v1680
    %v3264 = vunpack.c.l.b16 %v1681
    %v3265 = vunpack.c.h.b16 %v1681
    %v3266 = vunpack.c.l.b16 %v1682
    %v3267 = vunpack.c.h.b16 %v1682
    %v3268 = vunpack.c.l.b16 %v1683
    %v3269 = vunpack.c.h.b16 %v1683
    %v3270 = vunpack.c.l.b16 %v1684
    %v3271 = vunpack.c.h.b16 %v1684
    %v3272 = vunpack.c.l.b16 %v1685
    %v3273 = vunpack.c.h.b16 %v1685
    %v3274 = vunpack.c.l.b16 %v1686
    %v3275 = vunpack.c.h.b16 %v1686
    %v3276 = vunpack.c.l.b16 %v1687
    %v3277 = vunpack.c.h.b16 %v1687
    %v3278 = vunpack.c.l.b16 %v1688
    %v3279 = vunpack.c.h.b16 %v1688
    %v3280 = vunpack.c.l.b16 %v1689
    %v3281 = vunpack.c.h.b16 %v1689
    %v3282 = vunpack.c.l.b16 %v1690
    %v3283 = vunpack.c.h.b16 %v1690
    %v3284 = vunpack.c.l.b16 %v1691
    %v3285 = vunpack.c.h.b16 %v1691
    %v3286 = vunpack.c.l.b16 %v1692
    %v3287 = vunpack.c.h.b16 %v1692
    %v3288 = vunpack.c.l.b16 %v1693
    %v3289 = vunpack.c.h.b16 %v1693
    %v3290 = vpack.c.b16 %v2298, %v2282
    %v3291 = vpack.c.b16 %v2299, %v2283
    %v3292 = vpack.c.b16 %v2300, %v2284
    %v3293 = vpack.c.b16 %v2301, %v2285
    %v3294 = vpack.c.b16 %v2302, %v2286
    %v3295 = vpack.c.b16 %v2303, %v2287
    %v3296 = vpack.c.b16 %v2304, %v2288
    %v3297 = vpack.c.b16 %v2305, %v2289
    %v3298 = vpack.c.b16 %v2306, %v2290
    %v3299 = vpack.c.b16 %v2307, %v2291
    %v3300 = vpack.c.b16 %v2308, %v2292
    %v3301 = vpack.c.b16 %v2309, %v2293
    %v3302 = vpack.c.b16 %v2310, %v2294
    %v3303 = vpack.c.b16 %v2311, %v2295
    %v3304 = vpack.c.b16 %v2312, %v2296
    %v3305 = vpack.c.b16 %v2313, %v2297
    %v3306 = vpack.c.b16 %v2330, %v2314
    %v3307 = vpack.c.b16 %v2331, %v2315
    %v3308 = vpack.c.b16 %v2332, %v2316
    %v3309 = vpack.c.b16 %v2333, %v2317
    %v3310 = vpack.c.b16 %v2334, %v2318
    %v3311 = vpack.c.b16 %v2335, %v2319
    %v3312 = vpack.c.b16 %v2336, %v2320
    %v3313 = vpack.c.b16 %v2337, %v2321
    %v3314 = vpack.c.b16 %v2338, %v2322
    %v3315 = vpack.c.b16 %v2339, %v2323
    %v3316 = vpack.c.b16 %v2340, %v2324
    %v3317 = vpack.c.b16 %v2341, %v2325
    %v3318 = vpack.c.b16 %v2342, %v2326
    %v3319 = vpack.c.b16 %v2343, %v2327
    %v3320 = vpack.c.b16 %v2344, %v2328
    %v3321 = vpack.c.b16 %v2345, %v2329
    %v3322 = vpack.c.b16 %v2362, %v2346
    %v3323 = vpack.c.b16 %v2363, %v2347
    %v3324 = vpack.c.b16 %v2364, %v2348
    %v3325 = vpack.c.b16 %v2365, %v2349
    %v3326 = vpack.c.b16 %v2366, %v2350
    %v3327 = vpack.c.b16 %v2367, %v2351
    %v3328 = vpack.c.b16 %v2368, %v2352
    %v3329 = vpack.c.b16 %v2369, %v2353
    %v3330 = vpack.c.b16 %v2370, %v2354
    %v3331 = vpack.c.b16 %v2371, %v2355
    %v3332 = vpack.c.b16 %v2372, %v2356
    %v3333 = vpack.c.b16 %v2373, %v2357
    %v3334 = vpack.c.b16 %v2374, %v2358
    %v3335 = vpack.c.b16 %v2375, %v2359
    %v3336 = vpack.c.b16 %v2376, %v2360
    %v3337 = vpack.c.b16 %v2377, %v2361
    %v3338 = vpack.c.b16 %v2394, %v2378
    %v3339 = vpack.c.b16 %v2395, %v2379
    %v3340 = vpack.c.b16 %v2396, %v2380
    %v3341 = vpack.c.b16 %v2397, %v2381
    %v3342 = vpack.c.b16 %v2398, %v2382
    %v3343 = vpack.c.b16 %v2399, %v2383
    %v3344 = vpack.c.b16 %v2400, %v2384
    %v3345 = vpack.c.b16 %v2401, %v2385
    %v3346 = vpack.c.b16 %v2402, %v2386
    %v3347 = vpack.c.b16 %v2403, %v2387
    %v3348 = vpack.c.b16 %v2404, %v2388
    %v3349 = vpack.c.b16 %v2405, %v2389
    %v3350 = vpack.c.b16 %v2406, %v2390
    %v3351 = vpack.c.b16 %v2407, %v2391
    %v3352 = vpack.c.b16 %v2408, %v2392
    %v3353 = vpack.c.b16 %v2409, %v2393
    %v3354 = vpack.c.b16 %v2426, %v2410
    %v3355 = vpack.c.b16 %v2427, %v2411
    %v3356 = vpack.c.b16 %v2428, %v2412
    %v3357 = vpack.c.b16 %v2429, %v2413
    %v3358 = vpack.c.b16 %v2430, %v2414
    %v3359 = vpack.c.b16 %v2431, %v2415
    %v3360 = vpack.c.b16 %v2432, %v2416
    %v3361 = vpack.c.b16 %v2433, %v2417
    %v3362 = vpack.c.b16 %v2434, %v2418
    %v3363 = vpack.c.b16 %v2435, %v2419
    %v3364 = vpack.c.b16 %v2436, %v2420
    %v3365 = vpack.c.b16 %v2437, %v2421
    %v3366 = vpack.c.b16 %v2438, %v2422
    %v3367 = vpack.c.b16 %v2439, %v2423
    %v3368 = vpack.c.b16 %v2440, %v2424
    %v3369 = vpack.c.b16 %v2441, %v2425
    %v3370 = vpack.c.b16 %v2458, %v2442
    %v3371 = vpack.c.b16 %v2459, %v2443
    %v3372 = vpack.c.b16 %v2460, %v2444
    %v3373 = vpack.c.b16 %v2461, %v2445
    %v3374 = vpack.c.b16 %v2462, %v2446
    %v3375 = vpack.c.b16 %v2463, %v2447
    %v3376 = vpack.c.b16 %v2464, %v2448
    %v3377 = vpack.c.b16 %v2465, %v2449
    %v3378 = vpack.c.b16 %v2466, %v2450
    %v3379 = vpack.c.b16 %v2467, %v2451
    %v3380 = vpack.c.b16 %v2468, %v2452
    %v3381 = vpack.c.b16 %v2469, %v2453
    %v3382 = vpack.c.b16 %v2470, %v2454
    %v3383 = vpack.c.b16 %v2471, %v2455
    %v3384 = vpack.c.b16 %v2472, %v2456
    %v3385 = vpack.c.b16 %v2473, %v2457
    %v3386 = vpack.c.b16 %v2490, %v2474
    %v3387 = vpack.c.b16 %v2491, %v2475
    %v3388 = vpack.c.b16 %v2492, %v2476
    %v3389 = vpack.c.b16 %v2493, %v2477
    %v3390 = vpack.c.b16 %v2494, %v2478
    %v3391 = vpack.c.b16 %v2495, %v2479
    %v3392 = vpack.c.b16 %v2496, %v2480
    %v3393 = vpack.c.b16 %v2497, %v2481
    %v3394 = vpack.c.b16 %v2498, %v2482
    %v3395 = vpack.c.b16 %v2499, %v2483
    %v3396 = vpack.c.b16 %v2500, %v2484
    %v3397 = vpack.c.b16 %v2501, %v2485
    %v3398 = vpack.c.b16 %v2502, %v2486
    %v3399 = vpack.c.b16 %v2503, %v2487
    %v3400 = vpack.c.b16 %v2504, %v2488
    %v3401 = vpack.c.b16 %v2505, %v2489
    %v3402 = vpack.c.b16 %v2522, %v2506
    %v3403 = vpack.c.b16 %v2523, %v2507
    %v3404 = vpack.c.b16 %v2524, %v2508
    %v3405 = vpack.c.b16 %v2525, %v2509
    %v3406 = vpack.c.b16 %v2526, %v2510
    %v3407 = vpack.c.b16 %v2527, %v2511
    %v3408 = vpack.c.b16 %v2528, %v2512
    %v3409 = vpack.c.b16 %v2529, %v2513
    %v3410 = vpack.c.b16 %v2530, %v2514
    %v3411 = vpack.c.b16 %v2531, %v2515
    %v3412 = vpack.c.b16 %v2532, %v2516
    %v3413 = vpack.c.b16 %v2533, %v2517
    %v3414 = vpack.c.b16 %v2534, %v2518
    %v3415 = vpack.c.b16 %v2535, %v2519
    %v3416 = vpack.c.b16 %v2536, %v2520
    %v3417 = vpack.c.b16 %v2537, %v2521
    %v3418 = vpack.c.b16 %v2554, %v2538
    %v3419 = vpack.c.b16 %v2555, %v2539
    %v3420 = vpack.c.b16 %v2556, %v2540
    %v3421 = vpack.c.b16 %v2557, %v2541
    %v3422 = vpack.c.b16 %v2558, %v2542
    %v3423 = vpack.c.b16 %v2559, %v2543
    %v3424 = vpack.c.b16 %v2560, %v2544
    %v3425 = vpack.c.b16 %v2561, %v2545
    %v3426 = vpack.c.b16 %v2562, %v2546
    %v3427 = vpack.c.b16 %v2563, %v2547
    %v3428 = vpack.c.b16 %v2564, %v2548
    %v3429 = vpack.c.b16 %v2565, %v2549
    %v3430 = vpack.c.b16 %v2566, %v2550
    %v3431 = vpack.c.b16 %v2567, %v2551
    %v3432 = vpack.c.b16 %v2568, %v2552
    %v3433 = vpack.c.b16 %v2569, %v2553
    %v3434 = vpack.c.b16 %v2586, %v2570
    %v3435 = vpack.c.b16 %v2587, %v2571
    %v3436 = vpack.c.b16 %v2588, %v2572
    %v3437 = vpack.c.b16 %v2589, %v2573
    %v3438 = vpack.c.b16 %v2590, %v2574
    %v3439 = vpack.c.b16 %v2591, %v2575
    %v3440 = vpack.c.b16 %v2592, %v2576
    %v3441 = vpack.c.b16 %v2593, %v2577
    %v3442 = vpack.c.b16 %v2594, %v2578
    %v3443 = vpack.c.b16 %v2595, %v2579
    %v3444 = vpack.c.b16 %v2596, %v2580
    %v3445 = vpack.c.b16 %v2597, %v2581
    %v3446 = vpack.c.b16 %v2598, %v2582
    %v3447 = vpack.c.b16 %v2599, %v2583
    %v3448 = vpack.c.b16 %v2600, %v2584
    %v3449 = vpack.c.b16 %v2601, %v2585
    %v3450 = vpack.c.b16 %v2618, %v2602
    %v3451 = vpack.c.b16 %v2619, %v2603
    %v3452 = vpack.c.b16 %v2620, %v2604
    %v3453 = vpack.c.b16 %v2621, %v2605
    %v3454 = vpack.c.b16 %v2622, %v2606
    %v3455 = vpack.c.b16 %v2623, %v2607
    %v3456 = vpack.c.b16 %v2624, %v2608
    %v3457 = vpack.c.b16 %v2625, %v2609
    %v3458 = vpack.c.b16 %v2626, %v2610
    %v3459 = vpack.c.b16 %v2627, %v2611
    %v3460 = vpack.c.b16 %v2628, %v2612
    %v3461 = vpack.c.b16 %v2629, %v2613
    %v3462 = vpack.c.b16 %v2630, %v2614
    %v3463 = vpack.c.b16 %v2631, %v2615
    %v3464 = vpack.c.b16 %v2632, %v2616
    %v3465 = vpack.c.b16 %v2633, %v2617
    %v3466 = vpack.c.b16 %v2650, %v2634
    %v3467 = vpack.c.b16 %v2651, %v2635
    %v3468 = vpack.c.b16 %v2652, %v2636
    %v3469 = vpack.c.b16 %v2653, %v2637
    %v3470 = vpack.c.b16 %v2654, %v2638
    %v3471 = vpack.c.b16 %v2655, %v2639
    %v3472 = vpack.c.b16 %v2656, %v2640
    %v3473 = vpack.c.b16 %v2657, %v2641
    %v3474 = vpack.c.b16 %v2658, %v2642
    %v3475 = vpack.c.b16 %v2659, %v2643
    %v3476 = vpack.c.b16 %v2660, %v2644
    %v3477 = vpack.c.b16 %v2661, %v2645
    %v3478 = vpack.c.b16 %v2662, %v2646
    %v3479 = vpack.c.b16 %v2663, %v2647
    %v3480 = vpack.c.b16 %v2664, %v2648
    %v3481 = vpack.c.b16 %v2665, %v2649
    %v3482 = vpack.c.b16 %v2682, %v2666
    %v3483 = vpack.c.b16 %v2683, %v2667
    %v3484 = vpack.c.b16 %v2684, %v2668
    %v3485 = vpack.c.b16 %v2685, %v2669
    %v3486 = vpack.c.b16 %v2686, %v2670
    %v3487 = vpack.c.b16 %v2687, %v2671
    %v3488 = vpack.c.b16 %v2688, %v2672
    %v3489 = vpack.c.b16 %v2689, %v2673
    %v3490 = vpack.c.b16 %v2690, %v2674
    %v3491 = vpack.c.b16 %v2691, %v2675
    %v3492 = vpack.c.b16 %v2692, %v2676
    %v3493 = vpack.c.b16 %v2693, %v2677
    %v3494 = vpack.c.b16 %v2694, %v2678
    %v3495 = vpack.c.b16 %v2695, %v2679
    %v3496 = vpack.c.b16 %v2696, %v2680
    %v3497 = vpack.c.b16 %v2697, %v2681
    %v3498 = vpack.c.b16 %v2714, %v2698
    %v3499 = vpack.c.b16 %v2715, %v2699
    %v3500 = vpack.c.b16 %v2716, %v2700
    %v3501 = vpack.c.b16 %v2717, %v2701
    %v3502 = vpack.c.b16 %v2718, %v2702
    %v3503 = vpack.c.b16 %v2719, %v2703
    %v3504 = vpack.c.b16 %v2720, %v2704
    %v3505 = vpack.c.b16 %v2721, %v2705
    %v3506 = vpack.c.b16 %v2722, %v2706
    %v3507 = vpack.c.b16 %v2723, %v2707
    %v3508 = vpack.c.b16 %v2724, %v2708
    %v3509 = vpack.c.b16 %v2725, %v2709
    %v3510 = vpack.c.b16 %v2726, %v2710
    %v3511 = vpack.c.b16 %v2727, %v2711
    %v3512 = vpack.c.b16 %v2728, %v2712
    %v3513 = vpack.c.b16 %v2729, %v2713
    %v3514 = vpack.c.b16 %v2746, %v2730
    %v3515 = vpack.c.b16 %v2747, %v2731
    %v3516 = vpack.c.b16 %v2748, %v2732
    %v3517 = vpack.c.b16 %v2749, %v2733
    %v3518 = vpack.c.b16 %v2750, %v2734
    %v3519 = vpack.c.b16 %v2751, %v2735
    %v3520 = vpack.c.b16 %v2752, %v2736
    %v3521 = vpack.c.b16 %v2753, %v2737
    %v3522 = vpack.c.b16 %v2754, %v2738
    %v3523 = vpack.c.b16 %v2755, %v2739
    %v3524 = vpack.c.b16 %v2756, %v2740
    %v3525 = vpack.c.b16 %v2757, %v2741
    %v3526 = vpack.c.b16 %v2758, %v2742
    %v3527 = vpack.c.b16 %v2759, %v2743
    %v3528 = vpack.c.b16 %v2760, %v2744
    %v3529 = vpack.c.b16 %v2761, %v2745
    %v3530 = vpack.c.b16 %v2778, %v2762
    %v3531 = vpack.c.b16 %v2779, %v2763
    %v3532 = vpack.c.b16 %v2780, %v2764
    %v3533 = vpack.c.b16 %v2781, %v2765
    %v3534 = vpack.c.b16 %v2782, %v2766
    %v3535 = vpack.c.b16 %v2783, %v2767
    %v3536 = vpack.c.b16 %v2784, %v2768
    %v3537 = vpack.c.b16 %v2785, %v2769
    %v3538 = vpack.c.b16 %v2786, %v2770
    %v3539 = vpack.c.b16 %v2787, %v2771
    %v3540 = vpack.c.b16 %v2788, %v2772
    %v3541 = vpack.c.b16 %v2789, %v2773
    %v3542 = vpack.c.b16 %v2790, %v2774
    %v3543 = vpack.c.b16 %v2791, %v2775
    %v3544 = vpack.c.b16 %v2792, %v2776
    %v3545 = vpack.c.b16 %v2793, %v2777
    %v3546 = vpack.c.b16 %v2810, %v2794
    %v3547 = vpack.c.b16 %v2811, %v2795
    %v3548 = vpack.c.b16 %v2812, %v2796
    %v3549 = vpack.c.b16 %v2813, %v2797
    %v3550 = vpack.c.b16 %v2814, %v2798
    %v3551 = vpack.c.b16 %v2815, %v2799
    %v3552 = vpack.c.b16 %v2816, %v2800
    %v3553 = vpack.c.b16 %v2817, %v2801
    %v3554 = vpack.c.b16 %v2818, %v2802
    %v3555 = vpack.c.b16 %v2819, %v2803
    %v3556 = vpack.c.b16 %v2820, %v2804
    %v3557 = vpack.c.b16 %v2821, %v2805
    %v3558 = vpack.c.b16 %v2822, %v2806
    %v3559 = vpack.c.b16 %v2823, %v2807
    %v3560 = vpack.c.b16 %v2824, %v2808
    %v3561 = vpack.c.b16 %v2825, %v2809
    %v3562 = vpack.c.b16 %v2842, %v2826
    %v3563 = vpack.c.b16 %v2843, %v2827
    %v3564 = vpack.c.b16 %v2844, %v2828
    %v3565 = vpack.c.b16 %v2845, %v2829
    %v3566 = vpack.c.b16 %v2846, %v2830
    %v3567 = vpack.c.b16 %v2847, %v2831
    %v3568 = vpack.c.b16 %v2848, %v2832
    %v3569 = vpack.c.b16 %v2849, %v2833
    %v3570 = vpack.c.b16 %v2850, %v2834
    %v3571 = vpack.c.b16 %v2851, %v2835
    %v3572 = vpack.c.b16 %v2852, %v2836
    %v3573 = vpack.c.b16 %v2853, %v2837
    %v3574 = vpack.c.b16 %v2854, %v2838
    %v3575 = vpack.c.b16 %v2855, %v2839
    %v3576 = vpack.c.b16 %v2856, %v2840
    %v3577 = vpack.c.b16 %v2857, %v2841
    %v3578 = vpack.c.b16 %v2874, %v2858
    %v3579 = vpack.c.b16 %v2875, %v2859
    %v3580 = vpack.c.b16 %v2876, %v2860
    %v3581 = vpack.c.b16 %v2877, %v2861
    %v3582 = vpack.c.b16 %v2878, %v2862
    %v3583 = vpack.c.b16 %v2879, %v2863
    %v3584 = vpack.c.b16 %v2880, %v2864
    %v3585 = vpack.c.b16 %v2881, %v2865
    %v3586 = vpack.c.b16 %v2882, %v2866
    %v3587 = vpack.c.b16 %v2883, %v2867
    %v3588 = vpack.c.b16 %v2884, %v2868
    %v3589 = vpack.c.b16 %v2885, %v2869
    %v3590 = vpack.c.b16 %v2886, %v2870
    %v3591 = vpack.c.b16 %v2887, %v2871
    %v3592 = vpack.c.b16 %v2888, %v2872
    %v3593 = vpack.c.b16 %v2889, %v2873
    %v3594 = vpack.c.b16 %v2906, %v2890
    %v3595 = vpack.c.b16 %v2907, %v2891
    %v3596 = vpack.c.b16 %v2908, %v2892
    %v3597 = vpack.c.b16 %v2909, %v2893
    %v3598 = vpack.c.b16 %v2910, %v2894
    %v3599 = vpack.c.b16 %v2911, %v2895
    %v3600 = vpack.c.b16 %v2912, %v2896
    %v3601 = vpack.c.b16 %v2913, %v2897
    %v3602 = vpack.c.b16 %v2914, %v2898
    %v3603 = vpack.c.b16 %v2915, %v2899
    %v3604 = vpack.c.b16 %v2916, %v2900
    %v3605 = vpack.c.b16 %v2917, %v2901
    %v3606 = vpack.c.b16 %v2918, %v2902
    %v3607 = vpack.c.b16 %v2919, %v2903
    %v3608 = vpack.c.b16 %v2920, %v2904
    %v3609 = vpack.c.b16 %v2921, %v2905
    %v3610 = vpack.c.b16 %v2938, %v2922
    %v3611 = vpack.c.b16 %v2939, %v2923
    %v3612 = vpack.c.b16 %v2940, %v2924
    %v3613 = vpack.c.b16 %v2941, %v2925
    %v3614 = vpack.c.b16 %v2942, %v2926
    %v3615 = vpack.c.b16 %v2943, %v2927
    %v3616 = vpack.c.b16 %v2944, %v2928
    %v3617 = vpack.c.b16 %v2945, %v2929
    %v3618 = vpack.c.b16 %v2946, %v2930
    %v3619 = vpack.c.b16 %v2947, %v2931
    %v3620 = vpack.c.b16 %v2948, %v2932
    %v3621 = vpack.c.b16 %v2949, %v2933
    %v3622 = vpack.c.b16 %v2950, %v2934
    %v3623 = vpack.c.b16 %v2951, %v2935
    %v3624 = vpack.c.b16 %v2952, %v2936
    %v3625 = vpack.c.b16 %v2953, %v2937
    %v3626 = vpack.c.b16 %v2970, %v2954
    %v3627 = vpack.c.b16 %v2971, %v2955
    %v3628 = vpack.c.b16 %v2972, %v2956
    %v3629 = vpack.c.b16 %v2973, %v2957
    %v3630 = vpack.c.b16 %v2974, %v2958
    %v3631 = vpack.c.b16 %v2975, %v2959
    %v3632 = vpack.c.b16 %v2976, %v2960
    %v3633 = vpack.c.b16 %v2977, %v2961
    %v3634 = vpack.c.b16 %v2978, %v2962
    %v3635 = vpack.c.b16 %v2979, %v2963
    %v3636 = vpack.c.b16 %v2980, %v2964
    %v3637 = vpack.c.b16 %v2981, %v2965
    %v3638 = vpack.c.b16 %v2982, %v2966
    %v3639 = vpack.c.b16 %v2983, %v2967
    %v3640 = vpack.c.b16 %v2984, %v2968
    %v3641 = vpack.c.b16 %v2985, %v2969
    %v3642 = vpack.c.b16 %v3002, %v2986
    %v3643 = vpack.c.b16 %v3003, %v2987
    %v3644 = vpack.c.b16 %v3004, %v2988
    %v3645 = vpack.c.b16 %v3005, %v2989
    %v3646 = vpack.c.b16 %v3006, %v2990
    %v3647 = vpack.c.b16 %v3007, %v2991
    %v3648 = vpack.c.b16 %v3008, %v2992
    %v3649 = vpack.c.b16 %v3009, %v2993
    %v3650 = vpack.c.b16 %v3010, %v2994
    %v3651 = vpack.c.b16 %v3011, %v2995
    %v3652 = vpack.c.b16 %v3012, %v2996
    %v3653 = vpack.c.b16 %v3013, %v2997
    %v3654 = vpack.c.b16 %v3014, %v2998
    %v3655 = vpack.c.b16 %v3015, %v2999
    %v3656 = vpack.c.b16 %v3016, %v3000
    %v3657 = vpack.c.b16 %v3017, %v3001
    %v3658 = vpack.c.b16 %v3034, %v3018
    %v3659 = vpack.c.b16 %v3035, %v3019
    %v3660 = vpack.c.b16 %v3036, %v3020
    %v3661 = vpack.c.b16 %v3037, %v3021
    %v3662 = vpack.c.b16 %v3038, %v3022
    %v3663 = vpack.c.b16 %v3039, %v3023
    %v3664 = vpack.c.b16 %v3040, %v3024
    %v3665 = vpack.c.b16 %v3041, %v3025
    %v3666 = vpack.c.b16 %v3042, %v3026
    %v3667 = vpack.c.b16 %v3043, %v3027
    %v3668 = vpack.c.b16 %v3044, %v3028
    %v3669 = vpack.c.b16 %v3045, %v3029
    %v3670 = vpack.c.b16 %v3046, %v3030
    %v3671 = vpack.c.b16 %v3047, %v3031
    %v3672 = vpack.c.b16 %v3048, %v3032
    %v3673 = vpack.c.b16 %v3049, %v3033
    %v3674 = vpack.c.b16 %v3066, %v3050
    %v3675 = vpack.c.b16 %v3067, %v3051
    %v3676 = vpack.c.b16 %v3068, %v3052
    %v3677 = vpack.c.b16 %v3069, %v3053
    %v3678 = vpack.c.b16 %v3070, %v3054
    %v3679 = vpack.c.b16 %v3071, %v3055
    %v3680 = vpack.c.b16 %v3072, %v3056
    %v3681 = vpack.c.b16 %v3073, %v3057
    %v3682 = vpack.c.b16 %v3074, %v3058
    %v3683 = vpack.c.b16 %v3075, %v3059
    %v3684 = vpack.c.b16 %v3076, %v3060
    %v3685 = vpack.c.b16 %v3077, %v3061
    %v3686 = vpack.c.b16 %v3078, %v3062
    %v3687 = vpack.c.b16 %v3079, %v3063
    %v3688 = vpack.c.b16 %v3080, %v3064
    %v3689 = vpack.c.b16 %v3081, %v3065
    %v3690 = vpack.c.b16 %v3098, %v3082
    %v3691 = vpack.c.b16 %v3099, %v3083
    %v3692 = vpack.c.b16 %v3100, %v3084
    %v3693 = vpack.c.b16 %v3101, %v3085
    %v3694 = vpack.c.b16 %v3102, %v3086
    %v3695 = vpack.c.b16 %v3103, %v3087
    %v3696 = vpack.c.b16 %v3104, %v3088
    %v3697 = vpack.c.b16 %v3105, %v3089
    %v3698 = vpack.c.b16 %v3106, %v3090
    %v3699 = vpack.c.b16 %v3107, %v3091
    %v3700 = vpack.c.b16 %v3108, %v3092
    %v3701 = vpack.c.b16 %v3109, %v3093
    %v3702 = vpack.c.b16 %v3110, %v3094
    %v3703 = vpack.c.b16 %v3111, %v3095
    %v3704 = vpack.c.b16 %v3112, %v3096
    %v3705 = vpack.c.b16 %v3113, %v3097
    %v3706 = vpack.c.b16 %v3130, %v3114
    %v3707 = vpack.c.b16 %v3131, %v3115
    %v3708 = vpack.c.b16 %v3132, %v3116
    %v3709 = vpack.c.b16 %v3133, %v3117
    %v3710 = vpack.c.b16 %v3134, %v3118
    %v3711 = vpack.c.b16 %v3135, %v3119
    %v3712 = vpack.c.b16 %v3136, %v3120
    %v3713 = vpack.c.b16 %v3137, %v3121
    %v3714 = vpack.c.b16 %v3138, %v3122
    %v3715 = vpack.c.b16 %v3139, %v3123
    %v3716 = vpack.c.b16 %v3140, %v3124
    %v3717 = vpack.c.b16 %v3141, %v3125
    %v3718 = vpack.c.b16 %v3142, %v3126
    %v3719 = vpack.c.b16 %v3143, %v3127
    %v3720 = vpack.c.b16 %v3144, %v3128
    %v3721 = vpack.c.b16 %v3145, %v3129
    %v3722 = vpack.c.b16 %v3162, %v3146
    %v3723 = vpack.c.b16 %v3163, %v3147
    %v3724 = vpack.c.b16 %v3164, %v3148
    %v3725 = vpack.c.b16 %v3165, %v3149
    %v3726 = vpack.c.b16 %v3166, %v3150
    %v3727 = vpack.c.b16 %v3167, %v3151
    %v3728 = vpack.c.b16 %v3168, %v3152
    %v3729 = vpack.c.b16 %v3169, %v3153
    %v3730 = vpack.c.b16 %v3170, %v3154
    %v3731 = vpack.c.b16 %v3171, %v3155
    %v3732 = vpack.c.b16 %v3172, %v3156
    %v3733 = vpack.c.b16 %v3173, %v3157
    %v3734 = vpack.c.b16 %v3174, %v3158
    %v3735 = vpack.c.b16 %v3175, %v3159
    %v3736 = vpack.c.b16 %v3176, %v3160
    %v3737 = vpack.c.b16 %v3177, %v3161
    %v3738 = vpack.c.b16 %v3194, %v3178
    %v3739 = vpack.c.b16 %v3195, %v3179
    %v3740 = vpack.c.b16 %v3196, %v3180
    %v3741 = vpack.c.b16 %v3197, %v3181
    %v3742 = vpack.c.b16 %v3198, %v3182
    %v3743 = vpack.c.b16 %v3199, %v3183
    %v3744 = vpack.c.b16 %v3200, %v3184
    %v3745 = vpack.c.b16 %v3201, %v3185
    %v3746 = vpack.c.b16 %v3202, %v3186
    %v3747 = vpack.c.b16 %v3203, %v3187
    %v3748 = vpack.c.b16 %v3204, %v3188
    %v3749 = vpack.c.b16 %v3205, %v3189
    %v3750 = vpack.c.b16 %v3206, %v3190
    %v3751 = vpack.c.b16 %v3207, %v3191
    %v3752 = vpack.c.b16 %v3208, %v3192
    %v3753 = vpack.c.b16 %v3209, %v3193
    %v3754 = vpack.c.b16 %v3226, %v3210
    %v3755 = vpack.c.b16 %v3227, %v3211
    %v3756 = vpack.c.b16 %v3228, %v3212
    %v3757 = vpack.c.b16 %v3229, %v3213
    %v3758 = vpack.c.b16 %v3230, %v3214
    %v3759 = vpack.c.b16 %v3231, %v3215
    %v3760 = vpack.c.b16 %v3232, %v3216
    %v3761 = vpack.c.b16 %v3233, %v3217
    %v3762 = vpack.c.b16 %v3234, %v3218
    %v3763 = vpack.c.b16 %v3235, %v3219
    %v3764 = vpack.c.b16 %v3236, %v3220
    %v3765 = vpack.c.b16 %v3237, %v3221
    %v3766 = vpack.c.b16 %v3238, %v3222
    %v3767 = vpack.c.b16 %v3239, %v3223
    %v3768 = vpack.c.b16 %v3240, %v3224
    %v3769 = vpack.c.b16 %v3241, %v3225
    %v3770 = vpack.c.b16 %v3258, %v3242
    %v3771 = vpack.c.b16 %v3259, %v3243
    %v3772 = vpack.c.b16 %v3260, %v3244
    %v3773 = vpack.c.b16 %v3261, %v3245
    %v3774 = vpack.c.b16 %v3262, %v3246
    %v3775 = vpack.c.b16 %v3263, %v3247
    %v3776 = vpack.c.b16 %v3264, %v3248
    %v3777 = vpack.c.b16 %v3265, %v3249
    %v3778 = vpack.c.b16 %v3266, %v3250
    %v3779 = vpack.c.b16 %v3267, %v3251
    %v3780 = vpack.c.b16 %v3268, %v3252
    %v3781 = vpack.c.b16 %v3269, %v3253
    %v3782 = vpack.c.b16 %v3270, %v3254
    %v3783 = vpack.c.b16 %v3271, %v3255
    %v3784 = vpack.c.b16 %v3272, %v3256
    %v3785 = vpack.c.b16 %v3273, %v3257
    %v3786 = vpack.c.b16 %v3274, %v3274
    %v3787 = vpack.c.b16 %v3275, %v3275
    %v3788 = vpack.c.b16 %v3276, %v3276
    %v3789 = vpack.c.b16 %v3277, %v3277
    %v3790 = vpack.c.b16 %v3278, %v3278
    %v3791 = vpack.c.b16 %v3279, %v3279
    %v3792 = vpack.c.b16 %v3280, %v3280
    %v3793 = vpack.c.b16 %v3281, %v3281
    %v3794 = vpack.c.b16 %v3282, %v3282
    %v3795 = vpack.c.b16 %v3283, %v3283
    %v3796 = vpack.c.b16 %v3284, %v3284
    %v3797 = vpack.c.b16 %v3285, %v3285
    %v3798 = vpack.c.b16 %v3286, %v3286
    %v3799 = vpack.c.b16 %v3287, %v3287
    %v3800 = vpack.c.b16 %v3288, %v3288
    %v3801 = vpack.c.b16 %v3289, %v3289
    %v4299 = vsel %vm1001, %v1189, 0
    %v4302 = vsel %vm1005, %v3786, 0
    %v4305 = vsel %vm1005, %v3787, 0
    %v4308 = vsel %vm1005, %v3788, 0
    %v4311 = vsel %vm1005, %v3789, 0
    %v4314 = vsel %vm1005, %v3790, 0
    %v4317 = vsel %vm1005, %v3791, 0
    %v4320 = vsel %vm1005, %v3792, 0
    %v4323 = vsel %vm1005, %v3793, 0
    %v4326 = vsel %vm1005, %v3794, 0
    %v4329 = vsel %vm1005, %v3795, 0
    %v4332 = vsel %vm1005, %v3796, 0
    %v4335 = vsel %vm1005, %v3797, 0
    %v4338 = vsel %vm1005, %v3798, 0
    %v4341 = vsel %vm1005, %v3799, 0
    %v4344 = vsel %vm1005, %v3800, 0
    %v4347 = vsel %vm1005, %v3801, 0
    %4349 = vmatprep.subr.bf16.mxu0 %v3403
    %4350 = vmatpush1.bf16.msra.mxu0 %v3402
    %4351 = vmatprep.subr.bf16.mxu0 %v3387
    %4352 = vmatpush1.bf16.msra.mxu0 %v3386
    %4353 = vmatprep.subr.bf16.mxu0 %v3371
    %4354 = vmatpush1.bf16.msra.mxu0 %v3370
    %4355 = vmatprep.subr.bf16.mxu0 %v3355
    %4356 = vmatpush1.bf16.msra.mxu0 %v3354
    %4357 = vmatprep.subr.bf16.mxu0 %v3339
    %4358 = vmatpush1.bf16.msra.mxu0 %v3338
    %4359 = vmatprep.subr.bf16.mxu0 %v3323
    %4360 = vmatpush1.bf16.msra.mxu0 %v3322
    %4361 = vmatprep.subr.bf16.mxu0 %v3307
    %4362 = vmatpush1.bf16.msra.mxu0 %v3306
    %4363 = vmatprep.subr.bf16.mxu0 %v3291
    %4364 = vmatpush1.bf16.msra.mxu0 %v3290
    %4365 = vmatprep.subr.bf16.mxu0 %v3531
    %4366 = vmatpush2.bf16.msra.mxu0 %v3530
    %4367 = vmatprep.subr.bf16.mxu0 %v3515
    %4368 = vmatpush2.bf16.msra.mxu0 %v3514
    %4369 = vmatprep.subr.bf16.mxu0 %v3499
    %4370 = vmatpush2.bf16.msra.mxu0 %v3498
    %4371 = vmatprep.subr.bf16.mxu0 %v3483
    %4372 = vmatpush2.bf16.msra.mxu0 %v3482
    %4373 = vmatprep.subr.bf16.mxu0 %v3467
    %4374 = vmatpush2.bf16.msra.mxu0 %v3466
    %4375 = vmatprep.subr.bf16.mxu0 %v3451
    %4376 = vmatpush2.bf16.msra.mxu0 %v3450
    %4377 = vmatprep.subr.bf16.mxu0 %v3435
    %4378 = vmatpush2.bf16.msra.mxu0 %v3434
    %4379 = vmatprep.subr.bf16.mxu0 %v3419
    %4380 = vmatpush2.bf16.msra.mxu0 %v3418
    %4381 = vmatprep.mubr.bf16.mxu0 %v1187
    %4382 = vmatmul.mubr.bf16.gmra.mxu0 %v1186
    %v4383 = vpop.f32.mrf.mxu0
    %v4384 = vadd.f32 %v1701, %v4383
    %v4385 = vpop.f32.mrf.mxu0
    %v4386 = vadd.f32 %v1705, %v4385
    %v4387 = vpop.f32.mrf.mxu0
    %v4388 = vpop.f32.mrf.mxu0
    %4389 = vdwg.mxu0
    %4390 = vmatprep.subr.bf16.mxu0 %v3659
    %4391 = vmatpush1.bf16.msra.mxu0 %v3658
    %4392 = vmatprep.subr.bf16.mxu0 %v3643
    %4393 = vmatpush1.bf16.msra.mxu0 %v3642
    %4394 = vmatprep.subr.bf16.mxu0 %v3627
    %4395 = vmatpush1.bf16.msra.mxu0 %v3626
    %4396 = vmatprep.subr.bf16.mxu0 %v3611
    %4397 = vmatpush1.bf16.msra.mxu0 %v3610
    %4398 = vmatprep.subr.bf16.mxu0 %v3595
    %4399 = vmatpush1.bf16.msra.mxu0 %v3594
    %4400 = vmatprep.subr.bf16.mxu0 %v3579
    %4401 = vmatpush1.bf16.msra.mxu0 %v3578
    %4402 = vmatprep.subr.bf16.mxu0 %v3563
    %4403 = vmatpush1.bf16.msra.mxu0 %v3562
    %4404 = vmatprep.subr.bf16.mxu0 %v3547
    %4405 = vmatpush1.bf16.msra.mxu0 %v3546
    %4406 = vmatprep.subr.bf16.mxu0 %v4305
    %4407 = vmatpush2.bf16.msra.mxu0 %v4302
    %4408 = vmatprep.subr.bf16.mxu0 %v3771
    %4409 = vmatpush2.bf16.msra.mxu0 %v3770
    %4410 = vmatprep.subr.bf16.mxu0 %v3755
    %4411 = vmatpush2.bf16.msra.mxu0 %v3754
    %4412 = vmatprep.subr.bf16.mxu0 %v3739
    %4413 = vmatpush2.bf16.msra.mxu0 %v3738
    %4414 = vmatprep.subr.bf16.mxu0 %v3723
    %4415 = vmatpush2.bf16.msra.mxu0 %v3722
    %4416 = vmatprep.subr.bf16.mxu0 %v3707
    %4417 = vmatpush2.bf16.msra.mxu0 %v3706
    %4418 = vmatprep.subr.bf16.mxu0 %v3691
    %4419 = vmatpush2.bf16.msra.mxu0 %v3690
    %4420 = vmatprep.subr.bf16.mxu0 %v3675
    %4421 = vmatpush2.bf16.msra.mxu0 %v3674
    %4422 = vmatprep.mubr.bf16.mxu0 %v4299
    %4423 = vmatmul.mubr.bf16.gmra.mxu0 %v1188
    %v4424 = vpop.f32.mrf.mxu0
    %v4425 = vadd.f32 %v4384, %v4424
    %v4426 = vpop.f32.mrf.mxu0
    %v4427 = vadd.f32 %v4386, %v4426
    %v4428 = vpop.f32.mrf.mxu0
    %v4429 = vpop.f32.mrf.mxu0
    %4430 = vdwg.mxu0
    %4431 = vmatprep.subr.bf16.mxu0 %v3405
    %4432 = vmatpush1.bf16.msra.mxu0 %v3404
    %4433 = vmatprep.subr.bf16.mxu0 %v3389
    %4434 = vmatpush1.bf16.msra.mxu0 %v3388
    %4435 = vmatprep.subr.bf16.mxu0 %v3373
    %4436 = vmatpush1.bf16.msra.mxu0 %v3372
    %4437 = vmatprep.subr.bf16.mxu0 %v3357
    %4438 = vmatpush1.bf16.msra.mxu0 %v3356
    %4439 = vmatprep.subr.bf16.mxu0 %v3341
    %4440 = vmatpush1.bf16.msra.mxu0 %v3340
    %4441 = vmatprep.subr.bf16.mxu0 %v3325
    %4442 = vmatpush1.bf16.msra.mxu0 %v3324
    %4443 = vmatprep.subr.bf16.mxu0 %v3309
    %4444 = vmatpush1.bf16.msra.mxu0 %v3308
    %4445 = vmatprep.subr.bf16.mxu0 %v3293
    %4446 = vmatpush1.bf16.msra.mxu0 %v3292
    %4447 = vmatprep.subr.bf16.mxu0 %v3533
    %4448 = vmatpush2.bf16.msra.mxu0 %v3532
    %4449 = vmatprep.subr.bf16.mxu0 %v3517
    %4450 = vmatpush2.bf16.msra.mxu0 %v3516
    %4451 = vmatprep.subr.bf16.mxu0 %v3501
    %4452 = vmatpush2.bf16.msra.mxu0 %v3500
    %4453 = vmatprep.subr.bf16.mxu0 %v3485
    %4454 = vmatpush2.bf16.msra.mxu0 %v3484
    %4455 = vmatprep.subr.bf16.mxu0 %v3469
    %4456 = vmatpush2.bf16.msra.mxu0 %v3468
    %4457 = vmatprep.subr.bf16.mxu0 %v3453
    %4458 = vmatpush2.bf16.msra.mxu0 %v3452
    %4459 = vmatprep.subr.bf16.mxu0 %v3437
    %4460 = vmatpush2.bf16.msra.mxu0 %v3436
    %4461 = vmatprep.subr.bf16.mxu0 %v3421
    %4462 = vmatpush2.bf16.msra.mxu0 %v3420
    %4463 = vmatprep.mubr.bf16.mxu0 %v1187
    %4464 = vmatmul.mubr.bf16.gmra.mxu0 %v1186
    %v4465 = vpop.f32.mrf.mxu0
    %v4466 = vadd.f32 %v1709, %v4465
    %v4467 = vpop.f32.mrf.mxu0
    %v4468 = vadd.f32 %v1713, %v4467
    %v4469 = vpop.f32.mrf.mxu0
    %v4470 = vpop.f32.mrf.mxu0
    %4471 = vdwg.mxu0
    %4472 = vmatprep.subr.bf16.mxu0 %v3661
    %4473 = vmatpush1.bf16.msra.mxu0 %v3660
    %4474 = vmatprep.subr.bf16.mxu0 %v3645
    %4475 = vmatpush1.bf16.msra.mxu0 %v3644
    %4476 = vmatprep.subr.bf16.mxu0 %v3629
    %4477 = vmatpush1.bf16.msra.mxu0 %v3628
    %4478 = vmatprep.subr.bf16.mxu0 %v3613
    %4479 = vmatpush1.bf16.msra.mxu0 %v3612
    %4480 = vmatprep.subr.bf16.mxu0 %v3597
    %4481 = vmatpush1.bf16.msra.mxu0 %v3596
    %4482 = vmatprep.subr.bf16.mxu0 %v3581
    %4483 = vmatpush1.bf16.msra.mxu0 %v3580
    %4484 = vmatprep.subr.bf16.mxu0 %v3565
    %4485 = vmatpush1.bf16.msra.mxu0 %v3564
    %4486 = vmatprep.subr.bf16.mxu0 %v3549
    %4487 = vmatpush1.bf16.msra.mxu0 %v3548
    %4488 = vmatprep.subr.bf16.mxu0 %v4311
    %4489 = vmatpush2.bf16.msra.mxu0 %v4308
    %4490 = vmatprep.subr.bf16.mxu0 %v3773
    %4491 = vmatpush2.bf16.msra.mxu0 %v3772
    %4492 = vmatprep.subr.bf16.mxu0 %v3757
    %4493 = vmatpush2.bf16.msra.mxu0 %v3756
    %4494 = vmatprep.subr.bf16.mxu0 %v3741
    %4495 = vmatpush2.bf16.msra.mxu0 %v3740
    %4496 = vmatprep.subr.bf16.mxu0 %v3725
    %4497 = vmatpush2.bf16.msra.mxu0 %v3724
    %4498 = vmatprep.subr.bf16.mxu0 %v3709
    %4499 = vmatpush2.bf16.msra.mxu0 %v3708
    %4500 = vmatprep.subr.bf16.mxu0 %v3693
    %4501 = vmatpush2.bf16.msra.mxu0 %v3692
    %4502 = vmatprep.subr.bf16.mxu0 %v3677
    %4503 = vmatpush2.bf16.msra.mxu0 %v3676
    %4504 = vmatprep.mubr.bf16.mxu0 %v4299
    %4505 = vmatmul.mubr.bf16.gmra.mxu0 %v1188
    %v4506 = vpop.f32.mrf.mxu0
    %v4507 = vadd.f32 %v4466, %v4506
    %v4508 = vpop.f32.mrf.mxu0
    %v4509 = vadd.f32 %v4468, %v4508
    %v4510 = vpop.f32.mrf.mxu0
    %v4511 = vpop.f32.mrf.mxu0
    %4512 = vdwg.mxu0
    %4513 = vmatprep.subr.bf16.mxu0 %v3407
    %4514 = vmatpush1.bf16.msra.mxu0 %v3406
    %4515 = vmatprep.subr.bf16.mxu0 %v3391
    %4516 = vmatpush1.bf16.msra.mxu0 %v3390
    %4517 = vmatprep.subr.bf16.mxu0 %v3375
    %4518 = vmatpush1.bf16.msra.mxu0 %v3374
    %4519 = vmatprep.subr.bf16.mxu0 %v3359
    %4520 = vmatpush1.bf16.msra.mxu0 %v3358
    %4521 = vmatprep.subr.bf16.mxu0 %v3343
    %4522 = vmatpush1.bf16.msra.mxu0 %v3342
    %4523 = vmatprep.subr.bf16.mxu0 %v3327
    %4524 = vmatpush1.bf16.msra.mxu0 %v3326
    %4525 = vmatprep.subr.bf16.mxu0 %v3311
    %4526 = vmatpush1.bf16.msra.mxu0 %v3310
    %4527 = vmatprep.subr.bf16.mxu0 %v3295
    %4528 = vmatpush1.bf16.msra.mxu0 %v3294
    %4529 = vmatprep.subr.bf16.mxu0 %v3535
    %4530 = vmatpush2.bf16.msra.mxu0 %v3534
    %4531 = vmatprep.subr.bf16.mxu0 %v3519
    %4532 = vmatpush2.bf16.msra.mxu0 %v3518
    %4533 = vmatprep.subr.bf16.mxu0 %v3503
    %4534 = vmatpush2.bf16.msra.mxu0 %v3502
    %4535 = vmatprep.subr.bf16.mxu0 %v3487
    %4536 = vmatpush2.bf16.msra.mxu0 %v3486
    %4537 = vmatprep.subr.bf16.mxu0 %v3471
    %4538 = vmatpush2.bf16.msra.mxu0 %v3470
    %4539 = vmatprep.subr.bf16.mxu0 %v3455
    %4540 = vmatpush2.bf16.msra.mxu0 %v3454
    %4541 = vmatprep.subr.bf16.mxu0 %v3439
    %4542 = vmatpush2.bf16.msra.mxu0 %v3438
    %4543 = vmatprep.subr.bf16.mxu0 %v3423
    %4544 = vmatpush2.bf16.msra.mxu0 %v3422
    %4545 = vmatprep.mubr.bf16.mxu0 %v1187
    %4546 = vmatmul.mubr.bf16.gmra.mxu0 %v1186
    %v4547 = vpop.f32.mrf.mxu0
    %v4548 = vadd.f32 %v1717, %v4547
    %v4549 = vpop.f32.mrf.mxu0
    %v4550 = vadd.f32 %v1721, %v4549
    %v4551 = vpop.f32.mrf.mxu0
    %v4552 = vpop.f32.mrf.mxu0
    %4553 = vdwg.mxu0
    %4554 = vmatprep.subr.bf16.mxu0 %v3663
    %4555 = vmatpush1.bf16.msra.mxu0 %v3662
    %4556 = vmatprep.subr.bf16.mxu0 %v3647
    %4557 = vmatpush1.bf16.msra.mxu0 %v3646
    %4558 = vmatprep.subr.bf16.mxu0 %v3631
    %4559 = vmatpush1.bf16.msra.mxu0 %v3630
    %4560 = vmatprep.subr.bf16.mxu0 %v3615
    %4561 = vmatpush1.bf16.msra.mxu0 %v3614
    %4562 = vmatprep.subr.bf16.mxu0 %v3599
    %4563 = vmatpush1.bf16.msra.mxu0 %v3598
    %4564 = vmatprep.subr.bf16.mxu0 %v3583
    %4565 = vmatpush1.bf16.msra.mxu0 %v3582
    %4566 = vmatprep.subr.bf16.mxu0 %v3567
    %4567 = vmatpush1.bf16.msra.mxu0 %v3566
    %4568 = vmatprep.subr.bf16.mxu0 %v3551
    %4569 = vmatpush1.bf16.msra.mxu0 %v3550
    %4570 = vmatprep.subr.bf16.mxu0 %v4317
    %4571 = vmatpush2.bf16.msra.mxu0 %v4314
    %4572 = vmatprep.subr.bf16.mxu0 %v3775
    %4573 = vmatpush2.bf16.msra.mxu0 %v3774
    %4574 = vmatprep.subr.bf16.mxu0 %v3759
    %4575 = vmatpush2.bf16.msra.mxu0 %v3758
    %4576 = vmatprep.subr.bf16.mxu0 %v3743
    %4577 = vmatpush2.bf16.msra.mxu0 %v3742
    %4578 = vmatprep.subr.bf16.mxu0 %v3727
    %4579 = vmatpush2.bf16.msra.mxu0 %v3726
    %4580 = vmatprep.subr.bf16.mxu0 %v3711
    %4581 = vmatpush2.bf16.msra.mxu0 %v3710
    %4582 = vmatprep.subr.bf16.mxu0 %v3695
    %4583 = vmatpush2.bf16.msra.mxu0 %v3694
    %4584 = vmatprep.subr.bf16.mxu0 %v3679
    %4585 = vmatpush2.bf16.msra.mxu0 %v3678
    %4586 = vmatprep.mubr.bf16.mxu0 %v4299
    %4587 = vmatmul.mubr.bf16.gmra.mxu0 %v1188
    %v4588 = vpop.f32.mrf.mxu0
    %v4589 = vadd.f32 %v4548, %v4588
    %v4590 = vpop.f32.mrf.mxu0
    %v4591 = vadd.f32 %v4550, %v4590
    %v4592 = vpop.f32.mrf.mxu0
    %v4593 = vpop.f32.mrf.mxu0
    %4594 = vdwg.mxu0
    %4595 = vmatprep.subr.bf16.mxu0 %v3409
    %4596 = vmatpush1.bf16.msra.mxu0 %v3408
    %4597 = vmatprep.subr.bf16.mxu0 %v3393
    %4598 = vmatpush1.bf16.msra.mxu0 %v3392
    %4599 = vmatprep.subr.bf16.mxu0 %v3377
    %4600 = vmatpush1.bf16.msra.mxu0 %v3376
    %4601 = vmatprep.subr.bf16.mxu0 %v3361
    %4602 = vmatpush1.bf16.msra.mxu0 %v3360
    %4603 = vmatprep.subr.bf16.mxu0 %v3345
    %4604 = vmatpush1.bf16.msra.mxu0 %v3344
    %4605 = vmatprep.subr.bf16.mxu0 %v3329
    %4606 = vmatpush1.bf16.msra.mxu0 %v3328
    %4607 = vmatprep.subr.bf16.mxu0 %v3313
    %4608 = vmatpush1.bf16.msra.mxu0 %v3312
    %4609 = vmatprep.subr.bf16.mxu0 %v3297
    %4610 = vmatpush1.bf16.msra.mxu0 %v3296
    %4611 = vmatprep.subr.bf16.mxu0 %v3537
    %4612 = vmatpush2.bf16.msra.mxu0 %v3536
    %4613 = vmatprep.subr.bf16.mxu0 %v3521
    %4614 = vmatpush2.bf16.msra.mxu0 %v3520
    %4615 = vmatprep.subr.bf16.mxu0 %v3505
    %4616 = vmatpush2.bf16.msra.mxu0 %v3504
    %4617 = vmatprep.subr.bf16.mxu0 %v3489
    %4618 = vmatpush2.bf16.msra.mxu0 %v3488
    %4619 = vmatprep.subr.bf16.mxu0 %v3473
    %4620 = vmatpush2.bf16.msra.mxu0 %v3472
    %4621 = vmatprep.subr.bf16.mxu0 %v3457
    %4622 = vmatpush2.bf16.msra.mxu0 %v3456
    %4623 = vmatprep.subr.bf16.mxu0 %v3441
    %4624 = vmatpush2.bf16.msra.mxu0 %v3440
    %4625 = vmatprep.subr.bf16.mxu0 %v3425
    %4626 = vmatpush2.bf16.msra.mxu0 %v3424
    %4627 = vmatprep.mubr.bf16.mxu0 %v1187
    %4628 = vmatmul.mubr.bf16.gmra.mxu0 %v1186
    %v4629 = vpop.f32.mrf.mxu0
    %v4630 = vadd.f32 %v1725, %v4629
    %v4631 = vpop.f32.mrf.mxu0
    %v4632 = vadd.f32 %v1729, %v4631
    %v4633 = vpop.f32.mrf.mxu0
    %v4634 = vpop.f32.mrf.mxu0
    %4635 = vdwg.mxu0
    %4636 = vmatprep.subr.bf16.mxu0 %v3665
    %4637 = vmatpush1.bf16.msra.mxu0 %v3664
    %4638 = vmatprep.subr.bf16.mxu0 %v3649
    %4639 = vmatpush1.bf16.msra.mxu0 %v3648
    %4640 = vmatprep.subr.bf16.mxu0 %v3633
    %4641 = vmatpush1.bf16.msra.mxu0 %v3632
    %4642 = vmatprep.subr.bf16.mxu0 %v3617
    %4643 = vmatpush1.bf16.msra.mxu0 %v3616
    %4644 = vmatprep.subr.bf16.mxu0 %v3601
    %4645 = vmatpush1.bf16.msra.mxu0 %v3600
    %4646 = vmatprep.subr.bf16.mxu0 %v3585
    %4647 = vmatpush1.bf16.msra.mxu0 %v3584
    %4648 = vmatprep.subr.bf16.mxu0 %v3569
    %4649 = vmatpush1.bf16.msra.mxu0 %v3568
    %4650 = vmatprep.subr.bf16.mxu0 %v3553
    %4651 = vmatpush1.bf16.msra.mxu0 %v3552
    %4652 = vmatprep.subr.bf16.mxu0 %v4323
    %4653 = vmatpush2.bf16.msra.mxu0 %v4320
    %4654 = vmatprep.subr.bf16.mxu0 %v3777
    %4655 = vmatpush2.bf16.msra.mxu0 %v3776
    %4656 = vmatprep.subr.bf16.mxu0 %v3761
    %4657 = vmatpush2.bf16.msra.mxu0 %v3760
    %4658 = vmatprep.subr.bf16.mxu0 %v3745
    %4659 = vmatpush2.bf16.msra.mxu0 %v3744
    %4660 = vmatprep.subr.bf16.mxu0 %v3729
    %4661 = vmatpush2.bf16.msra.mxu0 %v3728
    %4662 = vmatprep.subr.bf16.mxu0 %v3713
    %4663 = vmatpush2.bf16.msra.mxu0 %v3712
    %4664 = vmatprep.subr.bf16.mxu0 %v3697
    %4665 = vmatpush2.bf16.msra.mxu0 %v3696
    %4666 = vmatprep.subr.bf16.mxu0 %v3681
    %4667 = vmatpush2.bf16.msra.mxu0 %v3680
    %4668 = vmatprep.mubr.bf16.mxu0 %v4299
    %4669 = vmatmul.mubr.bf16.gmra.mxu0 %v1188
    %v4670 = vpop.f32.mrf.mxu0
    %v4671 = vadd.f32 %v4630, %v4670
    %v4672 = vpop.f32.mrf.mxu0
    %v4673 = vadd.f32 %v4632, %v4672
    %v4674 = vpop.f32.mrf.mxu0
    %v4675 = vpop.f32.mrf.mxu0
    %4676 = vdwg.mxu0
    %4677 = vmatprep.subr.bf16.mxu0 %v3411
    %4678 = vmatpush1.bf16.msra.mxu0 %v3410
    %4679 = vmatprep.subr.bf16.mxu0 %v3395
    %4680 = vmatpush1.bf16.msra.mxu0 %v3394
    %4681 = vmatprep.subr.bf16.mxu0 %v3379
    %4682 = vmatpush1.bf16.msra.mxu0 %v3378
    %4683 = vmatprep.subr.bf16.mxu0 %v3363
    %4684 = vmatpush1.bf16.msra.mxu0 %v3362
    %4685 = vmatprep.subr.bf16.mxu0 %v3347
    %4686 = vmatpush1.bf16.msra.mxu0 %v3346
    %4687 = vmatprep.subr.bf16.mxu0 %v3331
    %4688 = vmatpush1.bf16.msra.mxu0 %v3330
    %4689 = vmatprep.subr.bf16.mxu0 %v3315
    %4690 = vmatpush1.bf16.msra.mxu0 %v3314
    %4691 = vmatprep.subr.bf16.mxu0 %v3299
    %4692 = vmatpush1.bf16.msra.mxu0 %v3298
    %4693 = vmatprep.subr.bf16.mxu0 %v3539
    %4694 = vmatpush2.bf16.msra.mxu0 %v3538
    %4695 = vmatprep.subr.bf16.mxu0 %v3523
    %4696 = vmatpush2.bf16.msra.mxu0 %v3522
    %4697 = vmatprep.subr.bf16.mxu0 %v3507
    %4698 = vmatpush2.bf16.msra.mxu0 %v3506
    %4699 = vmatprep.subr.bf16.mxu0 %v3491
    %4700 = vmatpush2.bf16.msra.mxu0 %v3490
    %4701 = vmatprep.subr.bf16.mxu0 %v3475
    %4702 = vmatpush2.bf16.msra.mxu0 %v3474
    %4703 = vmatprep.subr.bf16.mxu0 %v3459
    %4704 = vmatpush2.bf16.msra.mxu0 %v3458
    %4705 = vmatprep.subr.bf16.mxu0 %v3443
    %4706 = vmatpush2.bf16.msra.mxu0 %v3442
    %4707 = vmatprep.subr.bf16.mxu0 %v3427
    %4708 = vmatpush2.bf16.msra.mxu0 %v3426
    %4709 = vmatprep.mubr.bf16.mxu0 %v1187
    %4710 = vmatmul.mubr.bf16.gmra.mxu0 %v1186
    %v4711 = vpop.f32.mrf.mxu0
    %v4712 = vadd.f32 %v1733, %v4711
    %v4713 = vpop.f32.mrf.mxu0
    %v4714 = vadd.f32 %v1737, %v4713
    %v4715 = vpop.f32.mrf.mxu0
    %v4716 = vpop.f32.mrf.mxu0
    %4717 = vdwg.mxu0
    %4718 = vmatprep.subr.bf16.mxu0 %v3667
    %4719 = vmatpush1.bf16.msra.mxu0 %v3666
    %4720 = vmatprep.subr.bf16.mxu0 %v3651
    %4721 = vmatpush1.bf16.msra.mxu0 %v3650
    %4722 = vmatprep.subr.bf16.mxu0 %v3635
    %4723 = vmatpush1.bf16.msra.mxu0 %v3634
    %4724 = vmatprep.subr.bf16.mxu0 %v3619
    %4725 = vmatpush1.bf16.msra.mxu0 %v3618
    %4726 = vmatprep.subr.bf16.mxu0 %v3603
    %4727 = vmatpush1.bf16.msra.mxu0 %v3602
    %4728 = vmatprep.subr.bf16.mxu0 %v3587
    %4729 = vmatpush1.bf16.msra.mxu0 %v3586
    %4730 = vmatprep.subr.bf16.mxu0 %v3571
    %4731 = vmatpush1.bf16.msra.mxu0 %v3570
    %4732 = vmatprep.subr.bf16.mxu0 %v3555
    %4733 = vmatpush1.bf16.msra.mxu0 %v3554
    %4734 = vmatprep.subr.bf16.mxu0 %v4329
    %4735 = vmatpush2.bf16.msra.mxu0 %v4326
    %4736 = vmatprep.subr.bf16.mxu0 %v3779
    %4737 = vmatpush2.bf16.msra.mxu0 %v3778
    %4738 = vmatprep.subr.bf16.mxu0 %v3763
    %4739 = vmatpush2.bf16.msra.mxu0 %v3762
    %4740 = vmatprep.subr.bf16.mxu0 %v3747
    %4741 = vmatpush2.bf16.msra.mxu0 %v3746
    %4742 = vmatprep.subr.bf16.mxu0 %v3731
    %4743 = vmatpush2.bf16.msra.mxu0 %v3730
    %4744 = vmatprep.subr.bf16.mxu0 %v3715
    %4745 = vmatpush2.bf16.msra.mxu0 %v3714
    %4746 = vmatprep.subr.bf16.mxu0 %v3699
    %4747 = vmatpush2.bf16.msra.mxu0 %v3698
    %4748 = vmatprep.subr.bf16.mxu0 %v3683
    %4749 = vmatpush2.bf16.msra.mxu0 %v3682
    %4750 = vmatprep.mubr.bf16.mxu0 %v4299
    %4751 = vmatmul.mubr.bf16.gmra.mxu0 %v1188
    %v4752 = vpop.f32.mrf.mxu0
    %v4753 = vadd.f32 %v4712, %v4752
    %v4754 = vpop.f32.mrf.mxu0
    %v4755 = vadd.f32 %v4714, %v4754
    %v4756 = vpop.f32.mrf.mxu0
    %v4757 = vpop.f32.mrf.mxu0
    %4758 = vdwg.mxu0
    %4759 = vmatprep.subr.bf16.mxu0 %v3413
    %4760 = vmatpush1.bf16.msra.mxu0 %v3412
    %4761 = vmatprep.subr.bf16.mxu0 %v3397
    %4762 = vmatpush1.bf16.msra.mxu0 %v3396
    %4763 = vmatprep.subr.bf16.mxu0 %v3381
    %4764 = vmatpush1.bf16.msra.mxu0 %v3380
    %4765 = vmatprep.subr.bf16.mxu0 %v3365
    %4766 = vmatpush1.bf16.msra.mxu0 %v3364
    %4767 = vmatprep.subr.bf16.mxu0 %v3349
    %4768 = vmatpush1.bf16.msra.mxu0 %v3348
    %4769 = vmatprep.subr.bf16.mxu0 %v3333
    %4770 = vmatpush1.bf16.msra.mxu0 %v3332
    %4771 = vmatprep.subr.bf16.mxu0 %v3317
    %4772 = vmatpush1.bf16.msra.mxu0 %v3316
    %4773 = vmatprep.subr.bf16.mxu0 %v3301
    %4774 = vmatpush1.bf16.msra.mxu0 %v3300
    %4775 = vmatprep.subr.bf16.mxu0 %v3541
    %4776 = vmatpush2.bf16.msra.mxu0 %v3540
    %4777 = vmatprep.subr.bf16.mxu0 %v3525
    %4778 = vmatpush2.bf16.msra.mxu0 %v3524
    %4779 = vmatprep.subr.bf16.mxu0 %v3509
    %4780 = vmatpush2.bf16.msra.mxu0 %v3508
    %4781 = vmatprep.subr.bf16.mxu0 %v3493
    %4782 = vmatpush2.bf16.msra.mxu0 %v3492
    %4783 = vmatprep.subr.bf16.mxu0 %v3477
    %4784 = vmatpush2.bf16.msra.mxu0 %v3476
    %4785 = vmatprep.subr.bf16.mxu0 %v3461
    %4786 = vmatpush2.bf16.msra.mxu0 %v3460
    %4787 = vmatprep.subr.bf16.mxu0 %v3445
    %4788 = vmatpush2.bf16.msra.mxu0 %v3444
    %4789 = vmatprep.subr.bf16.mxu0 %v3429
    %4790 = vmatpush2.bf16.msra.mxu0 %v3428
    %4791 = vmatprep.mubr.bf16.mxu0 %v1187
    %4792 = vmatmul.mubr.bf16.gmra.mxu0 %v1186
    %v4793 = vpop.f32.mrf.mxu0
    %v4794 = vadd.f32 %v1741, %v4793
    %v4795 = vpop.f32.mrf.mxu0
    %v4796 = vadd.f32 %v1745, %v4795
    %v4797 = vpop.f32.mrf.mxu0
    %v4798 = vpop.f32.mrf.mxu0
    %4799 = vdwg.mxu0
    %4800 = vmatprep.subr.bf16.mxu0 %v3669
    %4801 = vmatpush1.bf16.msra.mxu0 %v3668
    %4802 = vmatprep.subr.bf16.mxu0 %v3653
    %4803 = vmatpush1.bf16.msra.mxu0 %v3652
    %4804 = vmatprep.subr.bf16.mxu0 %v3637
    %4805 = vmatpush1.bf16.msra.mxu0 %v3636
    %4806 = vmatprep.subr.bf16.mxu0 %v3621
    %4807 = vmatpush1.bf16.msra.mxu0 %v3620
    %4808 = vmatprep.subr.bf16.mxu0 %v3605
    %4809 = vmatpush1.bf16.msra.mxu0 %v3604
    %4810 = vmatprep.subr.bf16.mxu0 %v3589
    %4811 = vmatpush1.bf16.msra.mxu0 %v3588
    %4812 = vmatprep.subr.bf16.mxu0 %v3573
    %4813 = vmatpush1.bf16.msra.mxu0 %v3572
    %4814 = vmatprep.subr.bf16.mxu0 %v3557
    %4815 = vmatpush1.bf16.msra.mxu0 %v3556
    %4816 = vmatprep.subr.bf16.mxu0 %v4335
    %4817 = vmatpush2.bf16.msra.mxu0 %v4332
    %4818 = vmatprep.subr.bf16.mxu0 %v3781
    %4819 = vmatpush2.bf16.msra.mxu0 %v3780
    %4820 = vmatprep.subr.bf16.mxu0 %v3765
    %4821 = vmatpush2.bf16.msra.mxu0 %v3764
    %4822 = vmatprep.subr.bf16.mxu0 %v3749
    %4823 = vmatpush2.bf16.msra.mxu0 %v3748
    %4824 = vmatprep.subr.bf16.mxu0 %v3733
    %4825 = vmatpush2.bf16.msra.mxu0 %v3732
    %4826 = vmatprep.subr.bf16.mxu0 %v3717
    %4827 = vmatpush2.bf16.msra.mxu0 %v3716
    %4828 = vmatprep.subr.bf16.mxu0 %v3701
    %4829 = vmatpush2.bf16.msra.mxu0 %v3700
    %4830 = vmatprep.subr.bf16.mxu0 %v3685
    %4831 = vmatpush2.bf16.msra.mxu0 %v3684
    %4832 = vmatprep.mubr.bf16.mxu0 %v4299
    %4833 = vmatmul.mubr.bf16.gmra.mxu0 %v1188
    %v4834 = vpop.f32.mrf.mxu0
    %v4835 = vadd.f32 %v4794, %v4834
    %v4836 = vpop.f32.mrf.mxu0
    %v4837 = vadd.f32 %v4796, %v4836
    %v4838 = vpop.f32.mrf.mxu0
    %v4839 = vpop.f32.mrf.mxu0
    %4840 = vdwg.mxu0
    %4841 = vmatprep.subr.bf16.mxu0 %v3415
    %4842 = vmatpush1.bf16.msra.mxu0 %v3414
    %4843 = vmatprep.subr.bf16.mxu0 %v3399
    %4844 = vmatpush1.bf16.msra.mxu0 %v3398
    %4845 = vmatprep.subr.bf16.mxu0 %v3383
    %4846 = vmatpush1.bf16.msra.mxu0 %v3382
    %4847 = vmatprep.subr.bf16.mxu0 %v3367
    %4848 = vmatpush1.bf16.msra.mxu0 %v3366
    %4849 = vmatprep.subr.bf16.mxu0 %v3351
    %4850 = vmatpush1.bf16.msra.mxu0 %v3350
    %4851 = vmatprep.subr.bf16.mxu0 %v3335
    %4852 = vmatpush1.bf16.msra.mxu0 %v3334
    %4853 = vmatprep.subr.bf16.mxu0 %v3319
    %4854 = vmatpush1.bf16.msra.mxu0 %v3318
    %4855 = vmatprep.subr.bf16.mxu0 %v3303
    %4856 = vmatpush1.bf16.msra.mxu0 %v3302
    %4857 = vmatprep.subr.bf16.mxu0 %v3543
    %4858 = vmatpush2.bf16.msra.mxu0 %v3542
    %4859 = vmatprep.subr.bf16.mxu0 %v3527
    %4860 = vmatpush2.bf16.msra.mxu0 %v3526
    %4861 = vmatprep.subr.bf16.mxu0 %v3511
    %4862 = vmatpush2.bf16.msra.mxu0 %v3510
    %4863 = vmatprep.subr.bf16.mxu0 %v3495
    %4864 = vmatpush2.bf16.msra.mxu0 %v3494
    %4865 = vmatprep.subr.bf16.mxu0 %v3479
    %4866 = vmatpush2.bf16.msra.mxu0 %v3478
    %4867 = vmatprep.subr.bf16.mxu0 %v3463
    %4868 = vmatpush2.bf16.msra.mxu0 %v3462
    %4869 = vmatprep.subr.bf16.mxu0 %v3447
    %4870 = vmatpush2.bf16.msra.mxu0 %v3446
    %4871 = vmatprep.subr.bf16.mxu0 %v3431
    %4872 = vmatpush2.bf16.msra.mxu0 %v3430
    %4873 = vmatprep.mubr.bf16.mxu0 %v1187
    %4874 = vmatmul.mubr.bf16.gmra.mxu0 %v1186
    %v4875 = vpop.f32.mrf.mxu0
    %v4876 = vadd.f32 %v1749, %v4875
    %v4877 = vpop.f32.mrf.mxu0
    %v4878 = vadd.f32 %v1753, %v4877
    %v4879 = vpop.f32.mrf.mxu0
    %v4880 = vpop.f32.mrf.mxu0
    %4881 = vdwg.mxu0
    %4882 = vmatprep.subr.bf16.mxu0 %v3671
    %4883 = vmatpush1.bf16.msra.mxu0 %v3670
    %4884 = vmatprep.subr.bf16.mxu0 %v3655
    %4885 = vmatpush1.bf16.msra.mxu0 %v3654
    %4886 = vmatprep.subr.bf16.mxu0 %v3639
    %4887 = vmatpush1.bf16.msra.mxu0 %v3638
    %4888 = vmatprep.subr.bf16.mxu0 %v3623
    %4889 = vmatpush1.bf16.msra.mxu0 %v3622
    %4890 = vmatprep.subr.bf16.mxu0 %v3607
    %4891 = vmatpush1.bf16.msra.mxu0 %v3606
    %4892 = vmatprep.subr.bf16.mxu0 %v3591
    %4893 = vmatpush1.bf16.msra.mxu0 %v3590
    %4894 = vmatprep.subr.bf16.mxu0 %v3575
    %4895 = vmatpush1.bf16.msra.mxu0 %v3574
    %4896 = vmatprep.subr.bf16.mxu0 %v3559
    %4897 = vmatpush1.bf16.msra.mxu0 %v3558
    %4898 = vmatprep.subr.bf16.mxu0 %v4341
    %4899 = vmatpush2.bf16.msra.mxu0 %v4338
    %4900 = vmatprep.subr.bf16.mxu0 %v3783
    %4901 = vmatpush2.bf16.msra.mxu0 %v3782
    %4902 = vmatprep.subr.bf16.mxu0 %v3767
    %4903 = vmatpush2.bf16.msra.mxu0 %v3766
    %4904 = vmatprep.subr.bf16.mxu0 %v3751
    %4905 = vmatpush2.bf16.msra.mxu0 %v3750
    %4906 = vmatprep.subr.bf16.mxu0 %v3735
    %4907 = vmatpush2.bf16.msra.mxu0 %v3734
    %4908 = vmatprep.subr.bf16.mxu0 %v3719
    %4909 = vmatpush2.bf16.msra.mxu0 %v3718
    %4910 = vmatprep.subr.bf16.mxu0 %v3703
    %4911 = vmatpush2.bf16.msra.mxu0 %v3702
    %4912 = vmatprep.subr.bf16.mxu0 %v3687
    %4913 = vmatpush2.bf16.msra.mxu0 %v3686
    %4914 = vmatprep.mubr.bf16.mxu0 %v4299
    %4915 = vmatmul.mubr.bf16.gmra.mxu0 %v1188
    %v4916 = vpop.f32.mrf.mxu0
    %v4917 = vadd.f32 %v4876, %v4916
    %v4918 = vpop.f32.mrf.mxu0
    %v4919 = vadd.f32 %v4878, %v4918
    %v4920 = vpop.f32.mrf.mxu0
    %v4921 = vpop.f32.mrf.mxu0
    %4922 = vdwg.mxu0
    %4923 = vmatprep.subr.bf16.mxu0 %v3417
    %4924 = vmatpush1.bf16.msra.mxu0 %v3416
    %4925 = vmatprep.subr.bf16.mxu0 %v3401
    %4926 = vmatpush1.bf16.msra.mxu0 %v3400
    %4927 = vmatprep.subr.bf16.mxu0 %v3385
    %4928 = vmatpush1.bf16.msra.mxu0 %v3384
    %4929 = vmatprep.subr.bf16.mxu0 %v3369
    %4930 = vmatpush1.bf16.msra.mxu0 %v3368
    %4931 = vmatprep.subr.bf16.mxu0 %v3353
    %4932 = vmatpush1.bf16.msra.mxu0 %v3352
    %4933 = vmatprep.subr.bf16.mxu0 %v3337
    %4934 = vmatpush1.bf16.msra.mxu0 %v3336
    %4935 = vmatprep.subr.bf16.mxu0 %v3321
    %4936 = vmatpush1.bf16.msra.mxu0 %v3320
    %4937 = vmatprep.subr.bf16.mxu0 %v3305
    %4938 = vmatpush1.bf16.msra.mxu0 %v3304
    %4939 = vmatprep.subr.bf16.mxu0 %v3545
    %4940 = vmatpush2.bf16.msra.mxu0 %v3544
    %4941 = vmatprep.subr.bf16.mxu0 %v3529
    %4942 = vmatpush2.bf16.msra.mxu0 %v3528
    %4943 = vmatprep.subr.bf16.mxu0 %v3513
    %4944 = vmatpush2.bf16.msra.mxu0 %v3512
    %4945 = vmatprep.subr.bf16.mxu0 %v3497
    %4946 = vmatpush2.bf16.msra.mxu0 %v3496
    %4947 = vmatprep.subr.bf16.mxu0 %v3481
    %4948 = vmatpush2.bf16.msra.mxu0 %v3480
    %4949 = vmatprep.subr.bf16.mxu0 %v3465
    %4950 = vmatpush2.bf16.msra.mxu0 %v3464
    %4951 = vmatprep.subr.bf16.mxu0 %v3449
    %4952 = vmatpush2.bf16.msra.mxu0 %v3448
    %4953 = vmatprep.subr.bf16.mxu0 %v3433
    %4954 = vmatpush2.bf16.msra.mxu0 %v3432
    %4955 = vmatprep.mubr.bf16.mxu0 %v1187
    %4956 = vmatmul.mubr.bf16.gmra.mxu0 %v1186
    %v4957 = vpop.f32.mrf.mxu0
    %v4958 = vadd.f32 %v1757, %v4957
    %v4959 = vpop.f32.mrf.mxu0
    %v4960 = vadd.f32 %v1761, %v4959
    %v4961 = vpop.f32.mrf.mxu0
    %v4962 = vpop.f32.mrf.mxu0
    %4963 = vdwg.mxu0
    %4964 = vmatprep.subr.bf16.mxu0 %v3673
    %4965 = vmatpush1.bf16.msra.mxu0 %v3672
    %4966 = vmatprep.subr.bf16.mxu0 %v3657
    %4967 = vmatpush1.bf16.msra.mxu0 %v3656
    %4968 = vmatprep.subr.bf16.mxu0 %v3641
    %4969 = vmatpush1.bf16.msra.mxu0 %v3640
    %4970 = vmatprep.subr.bf16.mxu0 %v3625
    %4971 = vmatpush1.bf16.msra.mxu0 %v3624
    %4972 = vmatprep.subr.bf16.mxu0 %v3609
    %4973 = vmatpush1.bf16.msra.mxu0 %v3608
    %4974 = vmatprep.subr.bf16.mxu0 %v3593
    %4975 = vmatpush1.bf16.msra.mxu0 %v3592
    %4976 = vmatprep.subr.bf16.mxu0 %v3577
    %4977 = vmatpush1.bf16.msra.mxu0 %v3576
    %4978 = vmatprep.subr.bf16.mxu0 %v3561
    %4979 = vmatpush1.bf16.msra.mxu0 %v3560
    %4980 = vmatprep.subr.bf16.mxu0 %v4347
    %4981 = vmatpush2.bf16.msra.mxu0 %v4344
    %4982 = vmatprep.subr.bf16.mxu0 %v3785
    %4983 = vmatpush2.bf16.msra.mxu0 %v3784
    %4984 = vmatprep.subr.bf16.mxu0 %v3769
    %4985 = vmatpush2.bf16.msra.mxu0 %v3768
    %4986 = vmatprep.subr.bf16.mxu0 %v3753
    %4987 = vmatpush2.bf16.msra.mxu0 %v3752
    %4988 = vmatprep.subr.bf16.mxu0 %v3737
    %4989 = vmatpush2.bf16.msra.mxu0 %v3736
    %4990 = vmatprep.subr.bf16.mxu0 %v3721
    %4991 = vmatpush2.bf16.msra.mxu0 %v3720
    %4992 = vmatprep.subr.bf16.mxu0 %v3705
    %4993 = vmatpush2.bf16.msra.mxu0 %v3704
    %4994 = vmatprep.subr.bf16.mxu0 %v3689
    %4995 = vmatpush2.bf16.msra.mxu0 %v3688
    %4996 = vmatprep.mubr.bf16.mxu0 %v4299
    %4997 = vmatmul.mubr.bf16.gmra.mxu0 %v1188
    %v4998 = vpop.f32.mrf.mxu0
    %v4999 = vadd.f32 %v4958, %v4998
    %v5000 = vpop.f32.mrf.mxu0
    %v5001 = vadd.f32 %v4960, %v5000
    %v5002 = vpop.f32.mrf.mxu0
    %v5003 = vpop.f32.mrf.mxu0
    %5004 = vdwg.mxu0
    %v5005 = vmax.f32 %v4425, 0.0
    %v5006 = vmax.f32 %v4427, 0.0
    %v5007 = vmax.f32 %v4507, 0.0
    %v5008 = vmax.f32 %v4509, 0.0
    %v5009 = vmax.f32 %v4589, 0.0
    %v5010 = vmax.f32 %v4591, 0.0
    %v5011 = vmax.f32 %v4671, 0.0
    %v5012 = vmax.f32 %v4673, 0.0
    %v5013 = vmax.f32 %v4753, 0.0
    %v5014 = vmax.f32 %v4755, 0.0
    %v5015 = vmax.f32 %v4835, 0.0
    %v5016 = vmax.f32 %v4837, 0.0
    %v5017 = vmax.f32 %v4917, 0.0
    %v5018 = vmax.f32 %v4919, 0.0
    %v5019 = vmax.f32 %v4999, 0.0
    %v5020 = vmax.f32 %v5001, 0.0
    %v5021 = vpack.c.bf16 %v5005, %v5005
    %v5022 = vpack.c.bf16 %v5006, %v5006
    %v5023 = vpack.c.bf16 %v5007, %v5007
    %v5024 = vpack.c.bf16 %v5008, %v5008
    %v5025 = vpack.c.bf16 %v5009, %v5009
    %v5026 = vpack.c.bf16 %v5010, %v5010
    %v5027 = vpack.c.bf16 %v5011, %v5011
    %v5028 = vpack.c.bf16 %v5012, %v5012
    %v5029 = vpack.c.bf16 %v5013, %v5013
    %v5030 = vpack.c.bf16 %v5014, %v5014
    %v5031 = vpack.c.bf16 %v5015, %v5015
    %v5032 = vpack.c.bf16 %v5016, %v5016
    %v5033 = vpack.c.bf16 %v5017, %v5017
    %v5034 = vpack.c.bf16 %v5018, %v5018
    %v5035 = vpack.c.bf16 %v5019, %v5019
    %v5036 = vpack.c.bf16 %v5020, %v5020
    %v5037 = vld [vmem:[%s7] sm:$0xf]
    %v5038 = vld [vmem:[%s7 + $0x4] sm:$0xf]
    %v5039 = vld [vmem:[%s7 + $0x8] sm:$0xf]
    %v5040 = vld [vmem:[%s7 + $0xc] sm:$0xf]
    %v5041 = vld [vmem:[%s7 + $0x10] sm:$0xf]
    %v5042 = vld [vmem:[%s7 + $0x14] sm:$0xf]
    %v5043 = vld [vmem:[%s7 + $0x18] sm:$0xf]
    %v5044 = vld [vmem:[%s7 + $0x1c] sm:$0xf]
    %v5045 = vld [vmem:[%s7 + $0x20] sm:$0xf]
    %v5046 = vld [vmem:[%s7 + $0x24] sm:$0xf]
    %v5047 = vld [vmem:[%s7 + $0x28] sm:$0xf]
    %v5048 = vld [vmem:[%s7 + $0x2c] sm:$0xf]
    %v5049 = vld [vmem:[%s7 + $0x30] sm:$0xf]
    %v5050 = vld [vmem:[%s7 + $0x34] sm:$0xf]
    %v5051 = vld [vmem:[%s7 + $0x38] sm:$0xf]
    %v5052 = vld [vmem:[%s7 + $0x3c] sm:$0xf]
    %v5053 = vld [vmem:[%s7 + $0x40] sm:$0xf]
    %v5054 = vld [vmem:[%s7 + $0x44] sm:$0xf]
    %v5055 = vld [vmem:[%s7 + $0x48] sm:$0xf]
    %v5056 = vld [vmem:[%s7 + $0x4c] sm:$0xf]
    %v5057 = vld [vmem:[%s7 + $0x50] sm:$0xf]
    %v5058 = vld [vmem:[%s7 + $0x54] sm:$0xf]
    %v5059 = vld [vmem:[%s7 + $0x58] sm:$0xf]
    %v5060 = vld [vmem:[%s7 + $0x5c] sm:$0xf]
    %v5061 = vld [vmem:[%s7 + $0x60] sm:$0xf]
    %v5062 = vld [vmem:[%s7 + $0x64] sm:$0xf]
    %v5063 = vld [vmem:[%s7 + $0x68] sm:$0xf]
    %v5064 = vld [vmem:[%s7 + $0x6c] sm:$0xf]
    %v5065 = vld [vmem:[%s7 + $0x70] sm:$0xf]
    %v5066 = vld [vmem:[%s7 + $0x74] sm:$0xf]
    %v5067 = vld [vmem:[%s7 + $0x78] sm:$0xf]
    %v5068 = vld [vmem:[%s7 + $0x7c] sm:$0xf]
    %v5069 = vld [vmem:[%s7 + $0x80] sm:$0xf]
    %v5070 = vld [vmem:[%s7 + $0x84] sm:$0xf]
    %v5071 = vld [vmem:[%s7 + $0x88] sm:$0xf]
    %v5072 = vld [vmem:[%s7 + $0x8c] sm:$0xf]
    %v5073 = vld [vmem:[%s7 + $0x90] sm:$0xf]
    %v5074 = vld [vmem:[%s7 + $0x94] sm:$0xf]
    %v5075 = vld [vmem:[%s7 + $0x98] sm:$0xf]
    %v5076 = vld [vmem:[%s7 + $0x9c] sm:$0xf]
    %v5077 = vld [vmem:[%s7 + $0xa0] sm:$0xf]
    %v5078 = vld [vmem:[%s7 + $0xa4] sm:$0xf]
    %v5079 = vld [vmem:[%s7 + $0xa8] sm:$0xf]
    %v5080 = vld [vmem:[%s7 + $0xac] sm:$0xf]
    %v5081 = vld [vmem:[%s7 + $0xb0] sm:$0xf]
    %v5082 = vld [vmem:[%s7 + $0xb4] sm:$0xf]
    %v5083 = vld [vmem:[%s7 + $0xb8] sm:$0xf]
    %v5084 = vld [vmem:[%s7 + $0xbc] sm:$0xf]
    %v5085 = vld [vmem:[%s7 + $0xc0] sm:$0xf]
    %v5086 = vld [vmem:[%s7 + $0xc4] sm:$0xf]
    %v5087 = vld [vmem:[%s7 + $0xc8] sm:$0xf]
    %v5088 = vld [vmem:[%s7 + $0xcc] sm:$0xf]
    %v5089 = vld [vmem:[%s7 + $0xd0] sm:$0xf]
    %v5090 = vld [vmem:[%s7 + $0xd4] sm:$0xf]
    %v5091 = vld [vmem:[%s7 + $0xd8] sm:$0xf]
    %v5092 = vld [vmem:[%s7 + $0xdc] sm:$0xf]
    %v5093 = vld [vmem:[%s7 + $0xe0] sm:$0xf]
    %v5094 = vld [vmem:[%s7 + $0xe4] sm:$0xf]
    %v5095 = vld [vmem:[%s7 + $0xe8] sm:$0xf]
    %v5096 = vld [vmem:[%s7 + $0xec] sm:$0xf]
    %v5097 = vld [vmem:[%s7 + $0xf0] sm:$0xf]
    %v5098 = vld [vmem:[%s7 + $0xf4] sm:$0xf]
    %v5099 = vld [vmem:[%s7 + $0xf8] sm:$0xf]
    %v5100 = vld [vmem:[%s7 + $0xfc] sm:$0xf]
    %v5101 = vld [vmem:[%s7 + $0x100] sm:$0xf]
    %v5102 = vld [vmem:[%s7 + $0x104] sm:$0xf]
    %v5103 = vld [vmem:[%s7 + $0x108] sm:$0xf]
    %v5104 = vld [vmem:[%s7 + $0x10c] sm:$0xf]
    %v5105 = vld [vmem:[%s7 + $0x110] sm:$0xf]
    %v5106 = vld [vmem:[%s7 + $0x114] sm:$0xf]
    %v5107 = vld [vmem:[%s7 + $0x118] sm:$0xf]
    %v5108 = vld [vmem:[%s7 + $0x11c] sm:$0xf]
    %v5109 = vld [vmem:[%s7 + $0x120] sm:$0xf]
    %v5110 = vld [vmem:[%s7 + $0x124] sm:$0xf]
    %v5111 = vld [vmem:[%s7 + $0x128] sm:$0xf]
    %v5112 = vld [vmem:[%s7 + $0x12c] sm:$0xf]
    %v5113 = vld [vmem:[%s7 + $0x130] sm:$0xf]
    %v5114 = vld [vmem:[%s7 + $0x134] sm:$0xf]
    %v5115 = vld [vmem:[%s7 + $0x138] sm:$0xf]
    %v5116 = vld [vmem:[%s7 + $0x13c] sm:$0xf]
    %v5117 = vld [vmem:[%s7 + $0x140] sm:$0xf]
    %v5118 = vld [vmem:[%s7 + $0x144] sm:$0xf]
    %v5119 = vld [vmem:[%s7 + $0x148] sm:$0xf]
    %v5120 = vld [vmem:[%s7 + $0x14c] sm:$0xf]
    %v5121 = vld [vmem:[%s7 + $0x150] sm:$0xf]
    %v5122 = vld [vmem:[%s7 + $0x154] sm:$0xf]
    %v5123 = vld [vmem:[%s7 + $0x158] sm:$0xf]
    %v5124 = vld [vmem:[%s7 + $0x15c] sm:$0xf]
    %v5125 = vld [vmem:[%s7 + $0x160] sm:$0xf]
    %v5126 = vld [vmem:[%s7 + $0x164] sm:$0xf]
    %v5127 = vld [vmem:[%s7 + $0x168] sm:$0xf]
    %v5128 = vld [vmem:[%s7 + $0x16c] sm:$0xf]
    %v5129 = vld [vmem:[%s7 + $0x170] sm:$0xf]
    %v5130 = vld [vmem:[%s7 + $0x174] sm:$0xf]
    %v5131 = vld [vmem:[%s7 + $0x178] sm:$0xf]
    %v5132 = vld [vmem:[%s7 + $0x17c] sm:$0xf]
    %v5133 = vld [vmem:[%s7 + $0x180] sm:$0xf]
    %v5134 = vld [vmem:[%s7 + $0x184] sm:$0xf]
    %v5135 = vld [vmem:[%s7 + $0x188] sm:$0xf]
    %v5136 = vld [vmem:[%s7 + $0x18c] sm:$0xf]
    %v5137 = vld [vmem:[%s7 + $0x190] sm:$0xf]
    %v5138 = vld [vmem:[%s7 + $0x194] sm:$0xf]
    %v5139 = vld [vmem:[%s7 + $0x198] sm:$0xf]
    %v5140 = vld [vmem:[%s7 + $0x19c] sm:$0xf]
    %v5141 = vld [vmem:[%s7 + $0x1a0] sm:$0xf]
    %v5142 = vld [vmem:[%s7 + $0x1a4] sm:$0xf]
    %v5143 = vld [vmem:[%s7 + $0x1a8] sm:$0xf]
    %v5144 = vld [vmem:[%s7 + $0x1ac] sm:$0xf]
    %v5145 = vld [vmem:[%s7 + $0x1b0] sm:$0xf]
    %v5146 = vld [vmem:[%s7 + $0x1b4] sm:$0xf]
    %v5147 = vld [vmem:[%s7 + $0x1b8] sm:$0xf]
    %v5148 = vld [vmem:[%s7 + $0x1bc] sm:$0xf]
    %v5149 = vld [vmem:[%s7 + $0x1c0] sm:$0xf]
    %v5150 = vld [vmem:[%s7 + $0x1c4] sm:$0xf]
    %v5151 = vld [vmem:[%s7 + $0x1c8] sm:$0xf]
    %v5152 = vld [vmem:[%s7 + $0x1cc] sm:$0xf]
    %v5153 = vld [vmem:[%s7 + $0x1d0] sm:$0xf]
    %v5154 = vld [vmem:[%s7 + $0x1d4] sm:$0xf]
    %v5155 = vld [vmem:[%s7 + $0x1d8] sm:$0xf]
    %v5156 = vld [vmem:[%s7 + $0x1dc] sm:$0xf]
    %v5157 = vld [vmem:[%s7 + $0x1e0] sm:$0xf]
    %v5158 = vld [vmem:[%s7 + $0x1e4] sm:$0xf]
    %v5159 = vld [vmem:[%s7 + $0x1e8] sm:$0xf]
    %v5160 = vld [vmem:[%s7 + $0x1ec] sm:$0xf]
    %v5161 = vld [vmem:[%s7 + $0x1f0] sm:$0xf]
    %v5162 = vld [vmem:[%s7 + $0x1f4] sm:$0xf]
    %v5163 = vld [vmem:[%s7 + $0x1f8] sm:$0xf]
    %v5164 = vld [vmem:[%s7 + $0x1fc] sm:$0xf]
    %v5165 = vld [vmem:[%s7 + $0x200] sm:$0xf]
    %v5166 = vld [vmem:[%s7 + $0x204] sm:$0xf]
    %v5167 = vld [vmem:[%s7 + $0x208] sm:$0xf]
    %v5168 = vld [vmem:[%s7 + $0x20c] sm:$0xf]
    %v5169 = vld [vmem:[%s7 + $0x210] sm:$0xf]
    %v5170 = vld [vmem:[%s7 + $0x214] sm:$0xf]
    %v5171 = vld [vmem:[%s7 + $0x218] sm:$0xf]
    %v5172 = vld [vmem:[%s7 + $0x21c] sm:$0xf]
    %v5173 = vld [vmem:[%s7 + $0x220] sm:$0xf]
    %v5174 = vld [vmem:[%s7 + $0x224] sm:$0xf]
    %v5175 = vld [vmem:[%s7 + $0x228] sm:$0xf]
    %v5176 = vld [vmem:[%s7 + $0x22c] sm:$0xf]
    %v5177 = vld [vmem:[%s7 + $0x230] sm:$0xf]
    %v5178 = vld [vmem:[%s7 + $0x234] sm:$0xf]
    %v5179 = vld [vmem:[%s7 + $0x238] sm:$0xf]
    %v5180 = vld [vmem:[%s7 + $0x23c] sm:$0xf]
    %v5181 = vld [vmem:[%s7 + $0x240] sm:$0xf]
    %v5182 = vld [vmem:[%s7 + $0x244] sm:$0xf]
    %v5183 = vld [vmem:[%s7 + $0x248] sm:$0xf]
    %v5184 = vld [vmem:[%s7 + $0x24c] sm:$0xf]
    %v5185 = vld [vmem:[%s7 + $0x250] sm:$0xf]
    %v5186 = vld [vmem:[%s7 + $0x254] sm:$0xf]
    %v5187 = vld [vmem:[%s7 + $0x258] sm:$0xf]
    %v5188 = vld [vmem:[%s7 + $0x25c] sm:$0xf]
    %v5189 = vld [vmem:[%s7 + $0x260] sm:$0xf]
    %v5190 = vld [vmem:[%s7 + $0x264] sm:$0xf]
    %v5191 = vld [vmem:[%s7 + $0x268] sm:$0xf]
    %v5192 = vld [vmem:[%s7 + $0x26c] sm:$0xf]
    %v5193 = vld [vmem:[%s7 + $0x270] sm:$0xf]
    %v5194 = vld [vmem:[%s7 + $0x274] sm:$0xf]
    %v5195 = vld [vmem:[%s7 + $0x278] sm:$0xf]
    %v5196 = vld [vmem:[%s7 + $0x27c] sm:$0xf]
    %v5197 = vld [vmem:[%s7 + $0x280] sm:$0xf]
    %v5198 = vld [vmem:[%s7 + $0x284] sm:$0xf]
    %v5199 = vld [vmem:[%s7 + $0x288] sm:$0xf]
    %v5200 = vld [vmem:[%s7 + $0x28c] sm:$0xf]
    %v5201 = vld [vmem:[%s7 + $0x290] sm:$0xf]
    %v5202 = vld [vmem:[%s7 + $0x294] sm:$0xf]
    %v5203 = vld [vmem:[%s7 + $0x298] sm:$0xf]
    %v5204 = vld [vmem:[%s7 + $0x29c] sm:$0xf]
    %v5205 = vld [vmem:[%s7 + $0x2a0] sm:$0xf]
    %v5206 = vld [vmem:[%s7 + $0x2a4] sm:$0xf]
    %v5207 = vld [vmem:[%s7 + $0x2a8] sm:$0xf]
    %v5208 = vld [vmem:[%s7 + $0x2ac] sm:$0xf]
    %v5209 = vld [vmem:[%s7 + $0x2b0] sm:$0xf]
    %v5210 = vld [vmem:[%s7 + $0x2b4] sm:$0xf]
    %v5211 = vld [vmem:[%s7 + $0x2b8] sm:$0xf]
    %v5212 = vld [vmem:[%s7 + $0x2bc] sm:$0xf]
    %v5213 = vld [vmem:[%s7 + $0x2c0] sm:$0xf]
    %v5214 = vld [vmem:[%s7 + $0x2c4] sm:$0xf]
    %v5215 = vld [vmem:[%s7 + $0x2c8] sm:$0xf]
    %v5216 = vld [vmem:[%s7 + $0x2cc] sm:$0xf]
    %v5217 = vld [vmem:[%s7 + $0x2d0] sm:$0xf]
    %v5218 = vld [vmem:[%s7 + $0x2d4] sm:$0xf]
    %v5219 = vld [vmem:[%s7 + $0x2d8] sm:$0xf]
    %v5220 = vld [vmem:[%s7 + $0x2dc] sm:$0xf]
    %v5221 = vld [vmem:[%s7 + $0x2e0] sm:$0xf]
    %v5222 = vld [vmem:[%s7 + $0x2e4] sm:$0xf]
    %v5223 = vld [vmem:[%s7 + $0x2e8] sm:$0xf]
    %v5224 = vld [vmem:[%s7 + $0x2ec] sm:$0xf]
    %v5225 = vld [vmem:[%s7 + $0x2f0] sm:$0xf]
    %v5226 = vld [vmem:[%s7 + $0x2f4] sm:$0xf]
    %v5227 = vld [vmem:[%s7 + $0x2f8] sm:$0xf]
    %v5228 = vld [vmem:[%s7 + $0x2fc] sm:$0xf]
    %v5229 = vld [vmem:[%s7 + $0x300] sm:$0xf]
    %v5230 = vld [vmem:[%s7 + $0x304] sm:$0xf]
    %v5231 = vld [vmem:[%s7 + $0x308] sm:$0xf]
    %v5232 = vld [vmem:[%s7 + $0x30c] sm:$0xf]
    %v5233 = vld [vmem:[%s7 + $0x310] sm:$0xf]
    %v5234 = vld [vmem:[%s7 + $0x314] sm:$0xf]
    %v5235 = vld [vmem:[%s7 + $0x318] sm:$0xf]
    %v5236 = vld [vmem:[%s7 + $0x31c] sm:$0xf]
    %v5237 = vld [vmem:[%s7 + $0x320] sm:$0xf]
    %v5238 = vld [vmem:[%s7 + $0x324] sm:$0xf]
    %v5239 = vld [vmem:[%s7 + $0x328] sm:$0xf]
    %v5240 = vld [vmem:[%s7 + $0x32c] sm:$0xf]
    %v5241 = vld [vmem:[%s7 + $0x330] sm:$0xf]
    %v5242 = vld [vmem:[%s7 + $0x334] sm:$0xf]
    %v5243 = vld [vmem:[%s7 + $0x338] sm:$0xf]
    %v5244 = vld [vmem:[%s7 + $0x33c] sm:$0xf]
    %v5245 = vld [vmem:[%s7 + $0x340] sm:$0xf]
    %v5246 = vld [vmem:[%s7 + $0x344] sm:$0xf]
    %v5247 = vld [vmem:[%s7 + $0x348] sm:$0xf]
    %v5248 = vld [vmem:[%s7 + $0x34c] sm:$0xf]
    %v5249 = vld [vmem:[%s7 + $0x350] sm:$0xf]
    %v5250 = vld [vmem:[%s7 + $0x354] sm:$0xf]
    %v5251 = vld [vmem:[%s7 + $0x358] sm:$0xf]
    %v5252 = vld [vmem:[%s7 + $0x35c] sm:$0xf]
    %v5253 = vld [vmem:[%s7 + $0x360] sm:$0xf]
    %v5254 = vld [vmem:[%s7 + $0x364] sm:$0xf]
    %v5255 = vld [vmem:[%s7 + $0x368] sm:$0xf]
    %v5256 = vld [vmem:[%s7 + $0x36c] sm:$0xf]
    %v5257 = vld [vmem:[%s7 + $0x370] sm:$0xf]
    %v5258 = vld [vmem:[%s7 + $0x374] sm:$0xf]
    %v5259 = vld [vmem:[%s7 + $0x378] sm:$0xf]
    %v5260 = vld [vmem:[%s7 + $0x37c] sm:$0xf]
    %v5261 = vld [vmem:[%s7 + $0x380] sm:$0xf]
    %v5262 = vld [vmem:[%s7 + $0x384] sm:$0xf]
    %v5263 = vld [vmem:[%s7 + $0x388] sm:$0xf]
    %v5264 = vld [vmem:[%s7 + $0x38c] sm:$0xf]
    %v5265 = vld [vmem:[%s7 + $0x390] sm:$0xf]
    %v5266 = vld [vmem:[%s7 + $0x394] sm:$0xf]
    %v5267 = vld [vmem:[%s7 + $0x398] sm:$0xf]
    %v5268 = vld [vmem:[%s7 + $0x39c] sm:$0xf]
    %v5269 = vld [vmem:[%s7 + $0x3a0] sm:$0xf]
    %v5270 = vld [vmem:[%s7 + $0x3a4] sm:$0xf]
    %v5271 = vld [vmem:[%s7 + $0x3a8] sm:$0xf]
    %v5272 = vld [vmem:[%s7 + $0x3ac] sm:$0xf]
    %v5273 = vld [vmem:[%s7 + $0x3b0] sm:$0xf]
    %v5274 = vld [vmem:[%s7 + $0x3b4] sm:$0xf]
    %v5275 = vld [vmem:[%s7 + $0x3b8] sm:$0xf]
    %v5276 = vld [vmem:[%s7 + $0x3bc] sm:$0xf]
    %v5277 = vld [vmem:[%s7 + $0x3c0] sm:$0xf]
    %v5278 = vld [vmem:[%s7 + $0x3c4] sm:$0xf]
    %v5279 = vld [vmem:[%s7 + $0x3c8] sm:$0xf]
    %v5280 = vld [vmem:[%s7 + $0x3cc] sm:$0xf]
    %v5281 = vld [vmem:[%s7 + $0x3d0] sm:$0xf]
    %v5282 = vld [vmem:[%s7 + $0x3d4] sm:$0xf]
    %v5283 = vld [vmem:[%s7 + $0x3d8] sm:$0xf]
    %v5284 = vld [vmem:[%s7 + $0x3dc] sm:$0xf]
    %v5285 = vld [vmem:[%s7 + $0x3e0] sm:$0xf]
    %v5286 = vld [vmem:[%s7 + $0x3e4] sm:$0xf]
    %v5287 = vld [vmem:[%s8] sm:$0x1]
    %v5289 = vlaneseq
    %v5290 = vshrl.u32 %v5289, 7
    %v5291 = vsub.s32 0, %v5290
    %v5292 = vrot.slane %v5287, %v5291
    %v5544 = vunpack.c.l.b16 %v5037
    %v5545 = vunpack.c.l.b16 %v5038
    %v5546 = vunpack.c.l.b16 %v5039
    %v5547 = vunpack.c.l.b16 %v5040
    %v5548 = vunpack.c.l.b16 %v5041
    %v5549 = vunpack.c.l.b16 %v5042
    %v5550 = vunpack.c.l.b16 %v5043
    %v5551 = vunpack.c.l.b16 %v5044
    %v5552 = vunpack.c.l.b16 %v5045
    %v5553 = vunpack.c.l.b16 %v5046
    %v5554 = vunpack.c.l.b16 %v5047
    %v5555 = vunpack.c.l.b16 %v5048
    %v5556 = vunpack.c.l.b16 %v5049
    %v5557 = vunpack.c.l.b16 %v5050
    %v5558 = vunpack.c.l.b16 %v5051
    %v5559 = vunpack.c.l.b16 %v5052
    %v5560 = vunpack.c.l.b16 %v5053
    %v5561 = vunpack.c.l.b16 %v5054
    %v5562 = vunpack.c.l.b16 %v5055
    %v5563 = vunpack.c.l.b16 %v5056
    %v5564 = vunpack.c.l.b16 %v5057
    %v5565 = vunpack.c.l.b16 %v5058
    %v5566 = vunpack.c.l.b16 %v5059
    %v5567 = vunpack.c.l.b16 %v5060
    %v5568 = vunpack.c.l.b16 %v5061
    %v5569 = vunpack.c.l.b16 %v5062
    %v5570 = vunpack.c.l.b16 %v5063
    %v5571 = vunpack.c.l.b16 %v5064
    %v5572 = vunpack.c.l.b16 %v5065
    %v5573 = vunpack.c.l.b16 %v5066
    %v5574 = vunpack.c.l.b16 %v5067
    %v5575 = vunpack.c.l.b16 %v5068
    %v5576 = vunpack.c.l.b16 %v5069
    %v5577 = vunpack.c.l.b16 %v5070
    %v5578 = vunpack.c.l.b16 %v5071
    %v5579 = vunpack.c.l.b16 %v5072
    %v5580 = vunpack.c.l.b16 %v5073
    %v5581 = vunpack.c.l.b16 %v5074
    %v5582 = vunpack.c.l.b16 %v5075
    %v5583 = vunpack.c.l.b16 %v5076
    %v5584 = vunpack.c.l.b16 %v5077
    %v5585 = vunpack.c.l.b16 %v5078
    %v5586 = vunpack.c.l.b16 %v5079
    %v5587 = vunpack.c.l.b16 %v5080
    %v5588 = vunpack.c.l.b16 %v5081
    %v5589 = vunpack.c.l.b16 %v5082
    %v5590 = vunpack.c.l.b16 %v5083
    %v5591 = vunpack.c.l.b16 %v5084
    %v5592 = vunpack.c.l.b16 %v5085
    %v5593 = vunpack.c.l.b16 %v5086
    %v5594 = vunpack.c.l.b16 %v5087
    %v5595 = vunpack.c.l.b16 %v5088
    %v5596 = vunpack.c.l.b16 %v5089
    %v5597 = vunpack.c.l.b16 %v5090
    %v5598 = vunpack.c.l.b16 %v5091
    %v5599 = vunpack.c.l.b16 %v5092
    %v5600 = vunpack.c.l.b16 %v5093
    %v5601 = vunpack.c.l.b16 %v5094
    %v5602 = vunpack.c.l.b16 %v5095
    %v5603 = vunpack.c.l.b16 %v5096
    %v5604 = vunpack.c.l.b16 %v5097
    %v5605 = vunpack.c.l.b16 %v5098
    %v5606 = vunpack.c.l.b16 %v5099
    %v5607 = vunpack.c.l.b16 %v5100
    %v5608 = vunpack.c.l.b16 %v5101
    %v5609 = vunpack.c.l.b16 %v5102
    %v5610 = vunpack.c.l.b16 %v5103
    %v5611 = vunpack.c.l.b16 %v5104
    %v5612 = vunpack.c.l.b16 %v5105
    %v5613 = vunpack.c.l.b16 %v5106
    %v5614 = vunpack.c.l.b16 %v5107
    %v5615 = vunpack.c.l.b16 %v5108
    %v5616 = vunpack.c.l.b16 %v5109
    %v5617 = vunpack.c.l.b16 %v5110
    %v5618 = vunpack.c.l.b16 %v5111
    %v5619 = vunpack.c.l.b16 %v5112
    %v5620 = vunpack.c.l.b16 %v5113
    %v5621 = vunpack.c.l.b16 %v5114
    %v5622 = vunpack.c.l.b16 %v5115
    %v5623 = vunpack.c.l.b16 %v5116
    %v5624 = vunpack.c.l.b16 %v5117
    %v5625 = vunpack.c.l.b16 %v5118
    %v5626 = vunpack.c.l.b16 %v5119
    %v5627 = vunpack.c.l.b16 %v5120
    %v5628 = vunpack.c.l.b16 %v5121
    %v5629 = vunpack.c.l.b16 %v5122
    %v5630 = vunpack.c.l.b16 %v5123
    %v5631 = vunpack.c.l.b16 %v5124
    %v5632 = vunpack.c.l.b16 %v5125
    %v5633 = vunpack.c.l.b16 %v5126
    %v5634 = vunpack.c.l.b16 %v5127
    %v5635 = vunpack.c.l.b16 %v5128
    %v5636 = vunpack.c.l.b16 %v5129
    %v5637 = vunpack.c.l.b16 %v5130
    %v5638 = vunpack.c.l.b16 %v5131
    %v5639 = vunpack.c.l.b16 %v5132
    %v5640 = vunpack.c.l.b16 %v5133
    %v5641 = vunpack.c.l.b16 %v5134
    %v5642 = vunpack.c.l.b16 %v5135
    %v5643 = vunpack.c.l.b16 %v5136
    %v5644 = vunpack.c.l.b16 %v5137
    %v5645 = vunpack.c.l.b16 %v5138
    %v5646 = vunpack.c.l.b16 %v5139
    %v5647 = vunpack.c.l.b16 %v5140
    %v5648 = vunpack.c.l.b16 %v5141
    %v5649 = vunpack.c.l.b16 %v5142
    %v5650 = vunpack.c.l.b16 %v5143
    %v5651 = vunpack.c.l.b16 %v5144
    %v5652 = vunpack.c.l.b16 %v5145
    %v5653 = vunpack.c.l.b16 %v5146
    %v5654 = vunpack.c.l.b16 %v5147
    %v5655 = vunpack.c.l.b16 %v5148
    %v5656 = vunpack.c.l.b16 %v5149
    %v5657 = vunpack.c.l.b16 %v5150
    %v5658 = vunpack.c.l.b16 %v5151
    %v5659 = vunpack.c.l.b16 %v5152
    %v5660 = vunpack.c.l.b16 %v5153
    %v5661 = vunpack.c.l.b16 %v5154
    %v5662 = vunpack.c.l.b16 %v5155
    %v5663 = vunpack.c.l.b16 %v5156
    %v5664 = vunpack.c.l.b16 %v5157
    %v5665 = vunpack.c.l.b16 %v5158
    %v5666 = vunpack.c.l.b16 %v5159
    %v5667 = vunpack.c.l.b16 %v5160
    %v5668 = vunpack.c.l.b16 %v5161
    %v5669 = vunpack.c.l.b16 %v5162
    %v5670 = vunpack.c.l.b16 %v5163
    %v5671 = vunpack.c.l.b16 %v5164
    %v5672 = vunpack.c.l.b16 %v5165
    %v5673 = vunpack.c.l.b16 %v5166
    %v5674 = vunpack.c.l.b16 %v5167
    %v5675 = vunpack.c.l.b16 %v5168
    %v5676 = vunpack.c.l.b16 %v5169
    %v5677 = vunpack.c.l.b16 %v5170
    %v5678 = vunpack.c.l.b16 %v5171
    %v5679 = vunpack.c.l.b16 %v5172
    %v5680 = vunpack.c.l.b16 %v5173
    %v5681 = vunpack.c.l.b16 %v5174
    %v5682 = vunpack.c.l.b16 %v5175
    %v5683 = vunpack.c.l.b16 %v5176
    %v5684 = vunpack.c.l.b16 %v5177
    %v5685 = vunpack.c.l.b16 %v5178
    %v5686 = vunpack.c.l.b16 %v5179
    %v5687 = vunpack.c.l.b16 %v5180
    %v5688 = vunpack.c.l.b16 %v5181
    %v5689 = vunpack.c.l.b16 %v5182
    %v5690 = vunpack.c.l.b16 %v5183
    %v5691 = vunpack.c.l.b16 %v5184
    %v5692 = vunpack.c.l.b16 %v5185
    %v5693 = vunpack.c.l.b16 %v5186
    %v5694 = vunpack.c.l.b16 %v5187
    %v5695 = vunpack.c.l.b16 %v5188
    %v5696 = vunpack.c.l.b16 %v5189
    %v5697 = vunpack.c.l.b16 %v5190
    %v5698 = vunpack.c.l.b16 %v5191
    %v5699 = vunpack.c.l.b16 %v5192
    %v5700 = vunpack.c.l.b16 %v5193
    %v5701 = vunpack.c.l.b16 %v5194
    %v5702 = vunpack.c.l.b16 %v5195
    %v5703 = vunpack.c.l.b16 %v5196
    %v5704 = vunpack.c.l.b16 %v5197
    %v5705 = vunpack.c.l.b16 %v5198
    %v5706 = vunpack.c.l.b16 %v5199
    %v5707 = vunpack.c.l.b16 %v5200
    %v5708 = vunpack.c.l.b16 %v5201
    %v5709 = vunpack.c.l.b16 %v5202
    %v5710 = vunpack.c.l.b16 %v5203
    %v5711 = vunpack.c.l.b16 %v5204
    %v5712 = vunpack.c.l.b16 %v5205
    %v5713 = vunpack.c.l.b16 %v5206
    %v5714 = vunpack.c.l.b16 %v5207
    %v5715 = vunpack.c.l.b16 %v5208
    %v5716 = vunpack.c.l.b16 %v5209
    %v5717 = vunpack.c.l.b16 %v5210
    %v5718 = vunpack.c.l.b16 %v5211
    %v5719 = vunpack.c.l.b16 %v5212
    %v5720 = vunpack.c.l.b16 %v5213
    %v5721 = vunpack.c.l.b16 %v5214
    %v5722 = vunpack.c.l.b16 %v5215
    %v5723 = vunpack.c.l.b16 %v5216
    %v5724 = vunpack.c.l.b16 %v5217
    %v5725 = vunpack.c.l.b16 %v5218
    %v5726 = vunpack.c.l.b16 %v5219
    %v5727 = vunpack.c.l.b16 %v5220
    %v5728 = vunpack.c.l.b16 %v5221
    %v5729 = vunpack.c.l.b16 %v5222
    %v5730 = vunpack.c.l.b16 %v5223
    %v5731 = vunpack.c.l.b16 %v5224
    %v5732 = vunpack.c.l.b16 %v5225
    %v5733 = vunpack.c.l.b16 %v5226
    %v5734 = vunpack.c.l.b16 %v5227
    %v5735 = vunpack.c.l.b16 %v5228
    %v5736 = vunpack.c.l.b16 %v5229
    %v5737 = vunpack.c.l.b16 %v5230
    %v5738 = vunpack.c.l.b16 %v5231
    %v5739 = vunpack.c.l.b16 %v5232
    %v5740 = vunpack.c.l.b16 %v5233
    %v5741 = vunpack.c.l.b16 %v5234
    %v5742 = vunpack.c.l.b16 %v5235
    %v5743 = vunpack.c.l.b16 %v5236
    %v5744 = vunpack.c.l.b16 %v5237
    %v5745 = vunpack.c.l.b16 %v5238
    %v5746 = vunpack.c.l.b16 %v5239
    %v5747 = vunpack.c.l.b16 %v5240
    %v5748 = vunpack.c.l.b16 %v5241
    %v5749 = vunpack.c.l.b16 %v5242
    %v5750 = vunpack.c.l.b16 %v5243
    %v5751 = vunpack.c.l.b16 %v5244
    %v5752 = vunpack.c.l.b16 %v5245
    %v5753 = vunpack.c.l.b16 %v5246
    %v5754 = vunpack.c.l.b16 %v5247
    %v5755 = vunpack.c.l.b16 %v5248
    %v5756 = vunpack.c.l.b16 %v5249
    %v5757 = vunpack.c.l.b16 %v5250
    %v5758 = vunpack.c.l.b16 %v5251
    %v5759 = vunpack.c.l.b16 %v5252
    %v5760 = vunpack.c.l.b16 %v5253
    %v5761 = vunpack.c.l.b16 %v5254
    %v5762 = vunpack.c.l.b16 %v5255
    %v5763 = vunpack.c.l.b16 %v5256
    %v5764 = vunpack.c.l.b16 %v5257
    %v5765 = vunpack.c.l.b16 %v5258
    %v5766 = vunpack.c.l.b16 %v5259
    %v5767 = vunpack.c.l.b16 %v5260
    %v5768 = vunpack.c.l.b16 %v5261
    %v5769 = vunpack.c.l.b16 %v5262
    %v5770 = vunpack.c.l.b16 %v5263
    %v5771 = vunpack.c.l.b16 %v5264
    %v5772 = vunpack.c.l.b16 %v5265
    %v5773 = vunpack.c.l.b16 %v5266
    %v5774 = vunpack.c.l.b16 %v5267
    %v5775 = vunpack.c.l.b16 %v5268
    %v5776 = vunpack.c.l.b16 %v5269
    %v5777 = vunpack.c.l.b16 %v5270
    %v5778 = vunpack.c.l.b16 %v5271
    %v5779 = vunpack.c.l.b16 %v5272
    %v5780 = vunpack.c.l.b16 %v5273
    %v5781 = vunpack.c.l.b16 %v5274
    %v5782 = vunpack.c.l.b16 %v5275
    %v5783 = vunpack.c.l.b16 %v5276
    %v5784 = vunpack.c.l.b16 %v5277
    %v5785 = vunpack.c.l.b16 %v5278
    %v5786 = vunpack.c.l.b16 %v5279
    %v5787 = vunpack.c.l.b16 %v5280
    %v5788 = vunpack.c.l.b16 %v5281
    %v5789 = vunpack.c.l.b16 %v5282
    %v5790 = vunpack.c.l.b16 %v5283
    %v5791 = vunpack.c.l.b16 %v5284
    %v5792 = vunpack.c.l.b16 %v5285
    %v5793 = vunpack.c.l.b16 %v5286
    %v5794 = vpack.c.b16 %v5545, %v5544
    %v5795 = vpack.c.b16 %v5547, %v5546
    %v5796 = vpack.c.b16 %v5549, %v5548
    %v5797 = vpack.c.b16 %v5551, %v5550
    %v5798 = vpack.c.b16 %v5553, %v5552
    %v5799 = vpack.c.b16 %v5555, %v5554
    %v5800 = vpack.c.b16 %v5557, %v5556
    %v5801 = vpack.c.b16 %v5559, %v5558
    %v5802 = vpack.c.b16 %v5561, %v5560
    %v5803 = vpack.c.b16 %v5563, %v5562
    %v5804 = vpack.c.b16 %v5565, %v5564
    %v5805 = vpack.c.b16 %v5567, %v5566
    %v5806 = vpack.c.b16 %v5569, %v5568
    %v5807 = vpack.c.b16 %v5571, %v5570
    %v5808 = vpack.c.b16 %v5573, %v5572
    %v5809 = vpack.c.b16 %v5575, %v5574
    %v5810 = vpack.c.b16 %v5577, %v5576
    %v5811 = vpack.c.b16 %v5579, %v5578
    %v5812 = vpack.c.b16 %v5581, %v5580
    %v5813 = vpack.c.b16 %v5583, %v5582
    %v5814 = vpack.c.b16 %v5585, %v5584
    %v5815 = vpack.c.b16 %v5587, %v5586
    %v5816 = vpack.c.b16 %v5589, %v5588
    %v5817 = vpack.c.b16 %v5591, %v5590
    %v5818 = vpack.c.b16 %v5593, %v5592
    %v5819 = vpack.c.b16 %v5595, %v5594
    %v5820 = vpack.c.b16 %v5597, %v5596
    %v5821 = vpack.c.b16 %v5599, %v5598
    %v5822 = vpack.c.b16 %v5601, %v5600
    %v5823 = vpack.c.b16 %v5603, %v5602
    %v5824 = vpack.c.b16 %v5605, %v5604
    %v5825 = vpack.c.b16 %v5607, %v5606
    %v5826 = vpack.c.b16 %v5609, %v5608
    %v5827 = vpack.c.b16 %v5611, %v5610
    %v5828 = vpack.c.b16 %v5613, %v5612
    %v5829 = vpack.c.b16 %v5615, %v5614
    %v5830 = vpack.c.b16 %v5617, %v5616
    %v5831 = vpack.c.b16 %v5619, %v5618
    %v5832 = vpack.c.b16 %v5621, %v5620
    %v5833 = vpack.c.b16 %v5623, %v5622
    %v5834 = vpack.c.b16 %v5625, %v5624
    %v5835 = vpack.c.b16 %v5627, %v5626
    %v5836 = vpack.c.b16 %v5629, %v5628
    %v5837 = vpack.c.b16 %v5631, %v5630
    %v5838 = vpack.c.b16 %v5633, %v5632
    %v5839 = vpack.c.b16 %v5635, %v5634
    %v5840 = vpack.c.b16 %v5637, %v5636
    %v5841 = vpack.c.b16 %v5639, %v5638
    %v5842 = vpack.c.b16 %v5641, %v5640
    %v5843 = vpack.c.b16 %v5643, %v5642
    %v5844 = vpack.c.b16 %v5645, %v5644
    %v5845 = vpack.c.b16 %v5647, %v5646
    %v5846 = vpack.c.b16 %v5649, %v5648
    %v5847 = vpack.c.b16 %v5651, %v5650
    %v5848 = vpack.c.b16 %v5653, %v5652
    %v5849 = vpack.c.b16 %v5655, %v5654
    %v5850 = vpack.c.b16 %v5657, %v5656
    %v5851 = vpack.c.b16 %v5659, %v5658
    %v5852 = vpack.c.b16 %v5661, %v5660
    %v5853 = vpack.c.b16 %v5663, %v5662
    %v5854 = vpack.c.b16 %v5665, %v5664
    %v5855 = vpack.c.b16 %v5667, %v5666
    %v5856 = vpack.c.b16 %v5669, %v5668
    %v5857 = vpack.c.b16 %v5671, %v5670
    %v5858 = vpack.c.b16 %v5673, %v5672
    %v5859 = vpack.c.b16 %v5675, %v5674
    %v5860 = vpack.c.b16 %v5677, %v5676
    %v5861 = vpack.c.b16 %v5679, %v5678
    %v5862 = vpack.c.b16 %v5681, %v5680
    %v5863 = vpack.c.b16 %v5683, %v5682
    %v5864 = vpack.c.b16 %v5685, %v5684
    %v5865 = vpack.c.b16 %v5687, %v5686
    %v5866 = vpack.c.b16 %v5689, %v5688
    %v5867 = vpack.c.b16 %v5691, %v5690
    %v5868 = vpack.c.b16 %v5693, %v5692
    %v5869 = vpack.c.b16 %v5695, %v5694
    %v5870 = vpack.c.b16 %v5697, %v5696
    %v5871 = vpack.c.b16 %v5699, %v5698
    %v5872 = vpack.c.b16 %v5701, %v5700
    %v5873 = vpack.c.b16 %v5703, %v5702
    %v5874 = vpack.c.b16 %v5705, %v5704
    %v5875 = vpack.c.b16 %v5707, %v5706
    %v5876 = vpack.c.b16 %v5709, %v5708
    %v5877 = vpack.c.b16 %v5711, %v5710
    %v5878 = vpack.c.b16 %v5713, %v5712
    %v5879 = vpack.c.b16 %v5715, %v5714
    %v5880 = vpack.c.b16 %v5717, %v5716
    %v5881 = vpack.c.b16 %v5719, %v5718
    %v5882 = vpack.c.b16 %v5721, %v5720
    %v5883 = vpack.c.b16 %v5723, %v5722
    %v5884 = vpack.c.b16 %v5725, %v5724
    %v5885 = vpack.c.b16 %v5727, %v5726
    %v5886 = vpack.c.b16 %v5729, %v5728
    %v5887 = vpack.c.b16 %v5731, %v5730
    %v5888 = vpack.c.b16 %v5733, %v5732
    %v5889 = vpack.c.b16 %v5735, %v5734
    %v5890 = vpack.c.b16 %v5737, %v5736
    %v5891 = vpack.c.b16 %v5739, %v5738
    %v5892 = vpack.c.b16 %v5741, %v5740
    %v5893 = vpack.c.b16 %v5743, %v5742
    %v5894 = vpack.c.b16 %v5745, %v5744
    %v5895 = vpack.c.b16 %v5747, %v5746
    %v5896 = vpack.c.b16 %v5749, %v5748
    %v5897 = vpack.c.b16 %v5751, %v5750
    %v5898 = vpack.c.b16 %v5753, %v5752
    %v5899 = vpack.c.b16 %v5755, %v5754
    %v5900 = vpack.c.b16 %v5757, %v5756
    %v5901 = vpack.c.b16 %v5759, %v5758
    %v5902 = vpack.c.b16 %v5761, %v5760
    %v5903 = vpack.c.b16 %v5763, %v5762
    %v5904 = vpack.c.b16 %v5765, %v5764
    %v5905 = vpack.c.b16 %v5767, %v5766
    %v5906 = vpack.c.b16 %v5769, %v5768
    %v5907 = vpack.c.b16 %v5771, %v5770
    %v5908 = vpack.c.b16 %v5773, %v5772
    %v5909 = vpack.c.b16 %v5775, %v5774
    %v5910 = vpack.c.b16 %v5777, %v5776
    %v5911 = vpack.c.b16 %v5779, %v5778
    %v5912 = vpack.c.b16 %v5781, %v5780
    %v5913 = vpack.c.b16 %v5783, %v5782
    %v5914 = vpack.c.b16 %v5785, %v5784
    %v5915 = vpack.c.b16 %v5787, %v5786
    %v5916 = vpack.c.b16 %v5789, %v5788
    %v5917 = vpack.c.b16 %v5791, %v5790
    %v5918 = vpack.c.b16 %v5793, %v5792
    %vm6044 = vcmask 654336
    %v6046 = vsel %vm6044, %v5036, 0
    %6048 = vmatprep.subr.bf16.mxu0 0
    %6049 = vmatpush1.bf16.msra.mxu0 %v5801
    %6050 = vmatprep.subr.bf16.mxu0 0
    %6051 = vmatpush1.bf16.msra.mxu0 %v5800
    %6052 = vmatprep.subr.bf16.mxu0 0
    %6053 = vmatpush1.bf16.msra.mxu0 %v5799
    %6054 = vmatprep.subr.bf16.mxu0 0
    %6055 = vmatpush1.bf16.msra.mxu0 %v5798
    %6056 = vmatprep.subr.bf16.mxu0 0
    %6057 = vmatpush1.bf16.msra.mxu0 %v5797
    %6058 = vmatprep.subr.bf16.mxu0 0
    %6059 = vmatpush1.bf16.msra.mxu0 %v5796
    %6060 = vmatprep.subr.bf16.mxu0 0
    %6061 = vmatpush1.bf16.msra.mxu0 %v5795
    %6062 = vmatprep.subr.bf16.mxu0 0
    %6063 = vmatpush1.bf16.msra.mxu0 %v5794
    %6064 = vmatprep.subr.bf16.mxu0 0
    %6065 = vmatpush2.bf16.msra.mxu0 %v5809
    %6066 = vmatprep.subr.bf16.mxu0 0
    %6067 = vmatpush2.bf16.msra.mxu0 %v5808
    %6068 = vmatprep.subr.bf16.mxu0 0
    %6069 = vmatpush2.bf16.msra.mxu0 %v5807
    %6070 = vmatprep.subr.bf16.mxu0 0
    %6071 = vmatpush2.bf16.msra.mxu0 %v5806
    %6072 = vmatprep.subr.bf16.mxu0 0
    %6073 = vmatpush2.bf16.msra.mxu0 %v5805
    %6074 = vmatprep.subr.bf16.mxu0 0
    %6075 = vmatpush2.bf16.msra.mxu0 %v5804
    %6076 = vmatprep.subr.bf16.mxu0 0
    %6077 = vmatpush2.bf16.msra.mxu0 %v5803
    %6078 = vmatprep.subr.bf16.mxu0 0
    %6079 = vmatpush2.bf16.msra.mxu0 %v5802
    %6080 = vmatprep.mubr.bf16.mxu0 %v5022
    %6081 = vmatmul.mubr.bf16.gmra.mxu0 %v5021
    %v6082 = vpop.f32.mrf.mxu0
    %v6083 = vadd.f32 %v5292, %v6082
    %v6084 = vpop.f32.mrf.mxu0
    %v6085 = vpop.f32.mrf.mxu0
    %v6086 = vpop.f32.mrf.mxu0
    %6087 = vdwg.mxu0
    %6088 = vmatprep.subr.bf16.mxu0 0
    %6089 = vmatpush1.bf16.msra.mxu0 %v5817
    %6090 = vmatprep.subr.bf16.mxu0 0
    %6091 = vmatpush1.bf16.msra.mxu0 %v5816
    %6092 = vmatprep.subr.bf16.mxu0 0
    %6093 = vmatpush1.bf16.msra.mxu0 %v5815
    %6094 = vmatprep.subr.bf16.mxu0 0
    %6095 = vmatpush1.bf16.msra.mxu0 %v5814
    %6096 = vmatprep.subr.bf16.mxu0 0
    %6097 = vmatpush1.bf16.msra.mxu0 %v5813
    %6098 = vmatprep.subr.bf16.mxu0 0
    %6099 = vmatpush1.bf16.msra.mxu0 %v5812
    %6100 = vmatprep.subr.bf16.mxu0 0
    %6101 = vmatpush1.bf16.msra.mxu0 %v5811
    %6102 = vmatprep.subr.bf16.mxu0 0
    %6103 = vmatpush1.bf16.msra.mxu0 %v5810
    %6104 = vmatprep.subr.bf16.mxu0 0
    %6105 = vmatpush2.bf16.msra.mxu0 %v5825
    %6106 = vmatprep.subr.bf16.mxu0 0
    %6107 = vmatpush2.bf16.msra.mxu0 %v5824
    %6108 = vmatprep.subr.bf16.mxu0 0
    %6109 = vmatpush2.bf16.msra.mxu0 %v5823
    %6110 = vmatprep.subr.bf16.mxu0 0
    %6111 = vmatpush2.bf16.msra.mxu0 %v5822
    %6112 = vmatprep.subr.bf16.mxu0 0
    %6113 = vmatpush2.bf16.msra.mxu0 %v5821
    %6114 = vmatprep.subr.bf16.mxu0 0
    %6115 = vmatpush2.bf16.msra.mxu0 %v5820
    %6116 = vmatprep.subr.bf16.mxu0 0
    %6117 = vmatpush2.bf16.msra.mxu0 %v5819
    %6118 = vmatprep.subr.bf16.mxu0 0
    %6119 = vmatpush2.bf16.msra.mxu0 %v5818
    %6120 = vmatprep.mubr.bf16.mxu0 %v5024
    %6121 = vmatmul.mubr.bf16.gmra.mxu0 %v5023
    %v6122 = vpop.f32.mrf.mxu0
    %v6123 = vadd.f32 %v6083, %v6122
    %v6124 = vpop.f32.mrf.mxu0
    %v6125 = vpop.f32.mrf.mxu0
    %v6126 = vpop.f32.mrf.mxu0
    %6127 = vdwg.mxu0
    %6128 = vmatprep.subr.bf16.mxu0 0
    %6129 = vmatpush1.bf16.msra.mxu0 %v5833
    %6130 = vmatprep.subr.bf16.mxu0 0
    %6131 = vmatpush1.bf16.msra.mxu0 %v5832
    %6132 = vmatprep.subr.bf16.mxu0 0
    %6133 = vmatpush1.bf16.msra.mxu0 %v5831
    %6134 = vmatprep.subr.bf16.mxu0 0
    %6135 = vmatpush1.bf16.msra.mxu0 %v5830
    %6136 = vmatprep.subr.bf16.mxu0 0
    %6137 = vmatpush1.bf16.msra.mxu0 %v5829
    %6138 = vmatprep.subr.bf16.mxu0 0
    %6139 = vmatpush1.bf16.msra.mxu0 %v5828
    %6140 = vmatprep.subr.bf16.mxu0 0
    %6141 = vmatpush1.bf16.msra.mxu0 %v5827
    %6142 = vmatprep.subr.bf16.mxu0 0
    %6143 = vmatpush1.bf16.msra.mxu0 %v5826
    %6144 = vmatprep.subr.bf16.mxu0 0
    %6145 = vmatpush2.bf16.msra.mxu0 %v5841
    %6146 = vmatprep.subr.bf16.mxu0 0
    %6147 = vmatpush2.bf16.msra.mxu0 %v5840
    %6148 = vmatprep.subr.bf16.mxu0 0
    %6149 = vmatpush2.bf16.msra.mxu0 %v5839
    %6150 = vmatprep.subr.bf16.mxu0 0
    %6151 = vmatpush2.bf16.msra.mxu0 %v5838
    %6152 = vmatprep.subr.bf16.mxu0 0
    %6153 = vmatpush2.bf16.msra.mxu0 %v5837
    %6154 = vmatprep.subr.bf16.mxu0 0
    %6155 = vmatpush2.bf16.msra.mxu0 %v5836
    %6156 = vmatprep.subr.bf16.mxu0 0
    %6157 = vmatpush2.bf16.msra.mxu0 %v5835
    %6158 = vmatprep.subr.bf16.mxu0 0
    %6159 = vmatpush2.bf16.msra.mxu0 %v5834
    %6160 = vmatprep.mubr.bf16.mxu0 %v5026
    %6161 = vmatmul.mubr.bf16.gmra.mxu0 %v5025
    %v6162 = vpop.f32.mrf.mxu0
    %v6163 = vadd.f32 %v6123, %v6162
    %v6164 = vpop.f32.mrf.mxu0
    %v6165 = vpop.f32.mrf.mxu0
    %v6166 = vpop.f32.mrf.mxu0
    %6167 = vdwg.mxu0
    %6168 = vmatprep.subr.bf16.mxu0 0
    %6169 = vmatpush1.bf16.msra.mxu0 %v5849
    %6170 = vmatprep.subr.bf16.mxu0 0
    %6171 = vmatpush1.bf16.msra.mxu0 %v5848
    %6172 = vmatprep.subr.bf16.mxu0 0
    %6173 = vmatpush1.bf16.msra.mxu0 %v5847
    %6174 = vmatprep.subr.bf16.mxu0 0
    %6175 = vmatpush1.bf16.msra.mxu0 %v5846
    %6176 = vmatprep.subr.bf16.mxu0 0
    %6177 = vmatpush1.bf16.msra.mxu0 %v5845
    %6178 = vmatprep.subr.bf16.mxu0 0
    %6179 = vmatpush1.bf16.msra.mxu0 %v5844
    %6180 = vmatprep.subr.bf16.mxu0 0
    %6181 = vmatpush1.bf16.msra.mxu0 %v5843
    %6182 = vmatprep.subr.bf16.mxu0 0
    %6183 = vmatpush1.bf16.msra.mxu0 %v5842
    %6184 = vmatprep.subr.bf16.mxu0 0
    %6185 = vmatpush2.bf16.msra.mxu0 %v5857
    %6186 = vmatprep.subr.bf16.mxu0 0
    %6187 = vmatpush2.bf16.msra.mxu0 %v5856
    %6188 = vmatprep.subr.bf16.mxu0 0
    %6189 = vmatpush2.bf16.msra.mxu0 %v5855
    %6190 = vmatprep.subr.bf16.mxu0 0
    %6191 = vmatpush2.bf16.msra.mxu0 %v5854
    %6192 = vmatprep.subr.bf16.mxu0 0
    %6193 = vmatpush2.bf16.msra.mxu0 %v5853
    %6194 = vmatprep.subr.bf16.mxu0 0
    %6195 = vmatpush2.bf16.msra.mxu0 %v5852
    %6196 = vmatprep.subr.bf16.mxu0 0
    %6197 = vmatpush2.bf16.msra.mxu0 %v5851
    %6198 = vmatprep.subr.bf16.mxu0 0
    %6199 = vmatpush2.bf16.msra.mxu0 %v5850
    %6200 = vmatprep.mubr.bf16.mxu0 %v5028
    %6201 = vmatmul.mubr.bf16.gmra.mxu0 %v5027
    %v6202 = vpop.f32.mrf.mxu0
    %v6203 = vadd.f32 %v6163, %v6202
    %v6204 = vpop.f32.mrf.mxu0
    %v6205 = vpop.f32.mrf.mxu0
    %v6206 = vpop.f32.mrf.mxu0
    %6207 = vdwg.mxu0
    %6208 = vmatprep.subr.bf16.mxu0 0
    %6209 = vmatpush1.bf16.msra.mxu0 %v5865
    %6210 = vmatprep.subr.bf16.mxu0 0
    %6211 = vmatpush1.bf16.msra.mxu0 %v5864
    %6212 = vmatprep.subr.bf16.mxu0 0
    %6213 = vmatpush1.bf16.msra.mxu0 %v5863
    %6214 = vmatprep.subr.bf16.mxu0 0
    %6215 = vmatpush1.bf16.msra.mxu0 %v5862
    %6216 = vmatprep.subr.bf16.mxu0 0
    %6217 = vmatpush1.bf16.msra.mxu0 %v5861
    %6218 = vmatprep.subr.bf16.mxu0 0
    %6219 = vmatpush1.bf16.msra.mxu0 %v5860
    %6220 = vmatprep.subr.bf16.mxu0 0
    %6221 = vmatpush1.bf16.msra.mxu0 %v5859
    %6222 = vmatprep.subr.bf16.mxu0 0
    %6223 = vmatpush1.bf16.msra.mxu0 %v5858
    %6224 = vmatprep.subr.bf16.mxu0 0
    %6225 = vmatpush2.bf16.msra.mxu0 %v5873
    %6226 = vmatprep.subr.bf16.mxu0 0
    %6227 = vmatpush2.bf16.msra.mxu0 %v5872
    %6228 = vmatprep.subr.bf16.mxu0 0
    %6229 = vmatpush2.bf16.msra.mxu0 %v5871
    %6230 = vmatprep.subr.bf16.mxu0 0
    %6231 = vmatpush2.bf16.msra.mxu0 %v5870
    %6232 = vmatprep.subr.bf16.mxu0 0
    %6233 = vmatpush2.bf16.msra.mxu0 %v5869
    %6234 = vmatprep.subr.bf16.mxu0 0
    %6235 = vmatpush2.bf16.msra.mxu0 %v5868
    %6236 = vmatprep.subr.bf16.mxu0 0
    %6237 = vmatpush2.bf16.msra.mxu0 %v5867
    %6238 = vmatprep.subr.bf16.mxu0 0
    %6239 = vmatpush2.bf16.msra.mxu0 %v5866
    %6240 = vmatprep.mubr.bf16.mxu0 %v5030
    %6241 = vmatmul.mubr.bf16.gmra.mxu0 %v5029
    %v6242 = vpop.f32.mrf.mxu0
    %v6243 = vadd.f32 %v6203, %v6242
    %v6244 = vpop.f32.mrf.mxu0
    %v6245 = vpop.f32.mrf.mxu0
    %v6246 = vpop.f32.mrf.mxu0
    %6247 = vdwg.mxu0
    %6248 = vmatprep.subr.bf16.mxu0 0
    %6249 = vmatpush1.bf16.msra.mxu0 %v5881
    %6250 = vmatprep.subr.bf16.mxu0 0
    %6251 = vmatpush1.bf16.msra.mxu0 %v5880
    %6252 = vmatprep.subr.bf16.mxu0 0
    %6253 = vmatpush1.bf16.msra.mxu0 %v5879
    %6254 = vmatprep.subr.bf16.mxu0 0
    %6255 = vmatpush1.bf16.msra.mxu0 %v5878
    %6256 = vmatprep.subr.bf16.mxu0 0
    %6257 = vmatpush1.bf16.msra.mxu0 %v5877
    %6258 = vmatprep.subr.bf16.mxu0 0
    %6259 = vmatpush1.bf16.msra.mxu0 %v5876
    %6260 = vmatprep.subr.bf16.mxu0 0
    %6261 = vmatpush1.bf16.msra.mxu0 %v5875
    %6262 = vmatprep.subr.bf16.mxu0 0
    %6263 = vmatpush1.bf16.msra.mxu0 %v5874
    %6264 = vmatprep.subr.bf16.mxu0 0
    %6265 = vmatpush2.bf16.msra.mxu0 %v5889
    %6266 = vmatprep.subr.bf16.mxu0 0
    %6267 = vmatpush2.bf16.msra.mxu0 %v5888
    %6268 = vmatprep.subr.bf16.mxu0 0
    %6269 = vmatpush2.bf16.msra.mxu0 %v5887
    %6270 = vmatprep.subr.bf16.mxu0 0
    %6271 = vmatpush2.bf16.msra.mxu0 %v5886
    %6272 = vmatprep.subr.bf16.mxu0 0
    %6273 = vmatpush2.bf16.msra.mxu0 %v5885
    %6274 = vmatprep.subr.bf16.mxu0 0
    %6275 = vmatpush2.bf16.msra.mxu0 %v5884
    %6276 = vmatprep.subr.bf16.mxu0 0
    %6277 = vmatpush2.bf16.msra.mxu0 %v5883
    %6278 = vmatprep.subr.bf16.mxu0 0
    %6279 = vmatpush2.bf16.msra.mxu0 %v5882
    %6280 = vmatprep.mubr.bf16.mxu0 %v5032
    %6281 = vmatmul.mubr.bf16.gmra.mxu0 %v5031
    %v6282 = vpop.f32.mrf.mxu0
    %v6283 = vadd.f32 %v6243, %v6282
    %v6284 = vpop.f32.mrf.mxu0
    %v6285 = vpop.f32.mrf.mxu0
    %v6286 = vpop.f32.mrf.mxu0
    %6287 = vdwg.mxu0
    %6288 = vmatprep.subr.bf16.mxu0 0
    %6289 = vmatpush1.bf16.msra.mxu0 %v5897
    %6290 = vmatprep.subr.bf16.mxu0 0
    %6291 = vmatpush1.bf16.msra.mxu0 %v5896
    %6292 = vmatprep.subr.bf16.mxu0 0
    %6293 = vmatpush1.bf16.msra.mxu0 %v5895
    %6294 = vmatprep.subr.bf16.mxu0 0
    %6295 = vmatpush1.bf16.msra.mxu0 %v5894
    %6296 = vmatprep.subr.bf16.mxu0 0
    %6297 = vmatpush1.bf16.msra.mxu0 %v5893
    %6298 = vmatprep.subr.bf16.mxu0 0
    %6299 = vmatpush1.bf16.msra.mxu0 %v5892
    %6300 = vmatprep.subr.bf16.mxu0 0
    %6301 = vmatpush1.bf16.msra.mxu0 %v5891
    %6302 = vmatprep.subr.bf16.mxu0 0
    %6303 = vmatpush1.bf16.msra.mxu0 %v5890
    %6304 = vmatprep.subr.bf16.mxu0 0
    %6305 = vmatpush2.bf16.msra.mxu0 %v5905
    %6306 = vmatprep.subr.bf16.mxu0 0
    %6307 = vmatpush2.bf16.msra.mxu0 %v5904
    %6308 = vmatprep.subr.bf16.mxu0 0
    %6309 = vmatpush2.bf16.msra.mxu0 %v5903
    %6310 = vmatprep.subr.bf16.mxu0 0
    %6311 = vmatpush2.bf16.msra.mxu0 %v5902
    %6312 = vmatprep.subr.bf16.mxu0 0
    %6313 = vmatpush2.bf16.msra.mxu0 %v5901
    %6314 = vmatprep.subr.bf16.mxu0 0
    %6315 = vmatpush2.bf16.msra.mxu0 %v5900
    %6316 = vmatprep.subr.bf16.mxu0 0
    %6317 = vmatpush2.bf16.msra.mxu0 %v5899
    %6318 = vmatprep.subr.bf16.mxu0 0
    %6319 = vmatpush2.bf16.msra.mxu0 %v5898
    %6320 = vmatprep.mubr.bf16.mxu0 %v5034
    %6321 = vmatmul.mubr.bf16.gmra.mxu0 %v5033
    %v6322 = vpop.f32.mrf.mxu0
    %v6323 = vadd.f32 %v6283, %v6322
    %v6324 = vpop.f32.mrf.mxu0
    %v6325 = vpop.f32.mrf.mxu0
    %v6326 = vpop.f32.mrf.mxu0
    %6327 = vdwg.mxu0
    %6328 = vmatprep.subr.bf16.mxu0 0
    %6329 = vmatpush1.bf16.msra.mxu0 %v5913
    %6330 = vmatprep.subr.bf16.mxu0 0
    %6331 = vmatpush1.bf16.msra.mxu0 %v5912
    %6332 = vmatprep.subr.bf16.mxu0 0
    %6333 = vmatpush1.bf16.msra.mxu0 %v5911
    %6334 = vmatprep.subr.bf16.mxu0 0
    %6335 = vmatpush1.bf16.msra.mxu0 %v5910
    %6336 = vmatprep.subr.bf16.mxu0 0
    %6337 = vmatpush1.bf16.msra.mxu0 %v5909
    %6338 = vmatprep.subr.bf16.mxu0 0
    %6339 = vmatpush1.bf16.msra.mxu0 %v5908
    %6340 = vmatprep.subr.bf16.mxu0 0
    %6341 = vmatpush1.bf16.msra.mxu0 %v5907
    %6342 = vmatprep.subr.bf16.mxu0 0
    %6343 = vmatpush1.bf16.msra.mxu0 %v5906
    %6344 = vmatprep.subr.bf16.mxu0 0
    %6345 = vmatpush2.bf16.msra.mxu0 0
    %6346 = vmatprep.subr.bf16.mxu0 0
    %6347 = vmatpush2.bf16.msra.mxu0 0
    %6348 = vmatprep.subr.bf16.mxu0 0
    %6349 = vmatpush2.bf16.msra.mxu0 0
    %6350 = vmatprep.subr.bf16.mxu0 0
    %6351 = vmatpush2.bf16.msra.mxu0 %v5918
    %6352 = vmatprep.subr.bf16.mxu0 0
    %6353 = vmatpush2.bf16.msra.mxu0 %v5917
    %6354 = vmatprep.subr.bf16.mxu0 0
    %6355 = vmatpush2.bf16.msra.mxu0 %v5916
    %6356 = vmatprep.subr.bf16.mxu0 0
    %6357 = vmatpush2.bf16.msra.mxu0 %v5915
    %6358 = vmatprep.subr.bf16.mxu0 0
    %6359 = vmatpush2.bf16.msra.mxu0 %v5914
    %6360 = vmatprep.mubr.bf16.mxu0 %v6046
    %6361 = vmatmul.mubr.bf16.gmra.mxu0 %v5035
    %v6362 = vpop.f32.mrf.mxu0
    %v6363 = vadd.f32 %v6323, %v6362
    %v6364 = vpop.f32.mrf.mxu0
    %v6365 = vpop.f32.mrf.mxu0
    %v6366 = vpop.f32.mrf.mxu0
    %6367 = vdwg.mxu0
    %6368 = vst [vmem:[#allocation2] sm:$0xff] %v6363
    // Predicated region
    $region38: #{tpu_custom_call.1} parent=1 // pred_check
      _
    $region39: #{tpu_custom_call.1} parent=1 // pred_check_branch
      %6370 = sbr.rel (0) target = $region41
    $region40: #{tpu_custom_call.1} parent=1 // pred_region
      %s6372 = ssub.s32 128, 128
      %6373 = vsyncadd [#allocation3], %s6372
      %s6375 = sshll.u32 [#allocation2], 4
      %s6376 = int_to_ptr.vmem [resolvable:$true] %s6375
      %6378 = dma.vmem_to_hbm [thread:$0]  %s6376, 128, %s9, [#allocation3]
    $region41: #{tpu_custom_call.1} parent=1 // pred_fallthru
      _
    // Predicated region
    $region42: #{tpu_custom_call.1} parent=1 // pred_check
      _
    $region43: #{tpu_custom_call.1} parent=1 // pred_check_branch
      %6380 = sbr.rel (0) target = $region45
    $region44: #{tpu_custom_call.1} parent=1 // pred_region
      %6381 = dma.done [#allocation3], 128
    $region45: #{tpu_custom_call.1} parent=1 // pred_fallthru
      _
    %6382 = vsyncpa [#allocation3], 1

</llo_original>
